<compile_context>
chip_gen: v7x
topology: tpu7x:2x2x1
jax: 0.10.0
libtpu: 0.0.40
codegen_flags: <defaults>
</compile_context>

<pallas_src>
import jax
import jax.numpy as jnp
from jax.experimental import pallas as pl
from jax.experimental.pallas import tpu as pltpu


# ----------------------------- Pallas kernel -------------------------------

def _gru_head_kernel(lengths_ref, emb_ref,
                     w_ih1, w_hh1, w2, gate_b,
                     fc_w, fc_b, fc2_w, fc2_b, fco_w, fco_b,
                     out_ref):
    T, B, E = emb_ref.shape                 # per-block shapes (B = batch tile)
    Hg = w_hh1.shape[0]                     # lane-aligned per-gate width (128*k)
    G3 = 3 * Hg

    # Clamp so lengths > T can never leave the zero init state silently.
    last_idx = jnp.minimum(lengths_ref[...] - 1, T - 1)      # (B, 1) int32

    # ---- hoisted weight / bias loads (reused by every unrolled step)
    w_hh1_v = w_hh1[...]                                      # (Hg, 3Hg) bf16
    w2_v = w2[...]                                            # (2Hg, 6Hg) bf16 block-diag
    b_ih1_v = gate_b[0:1, :]                                  # (1, 3Hg) f32
    b_hh1_v = jnp.broadcast_to(gate_b[1:2, :], (B, G3))
    b_ih2_v = jnp.broadcast_to(gate_b[2:3, :], (B, G3))
    b_hh2_v = jnp.broadcast_to(gate_b[3:4, :], (B, G3))

    # ---- layer-1 input projection hoisted out of the recurrence:
    # one (T*B, E) @ (E, 3Hg) bf16 matmul instead of T serial (B, E) matmuls.
    emb_flat = emb_ref[...].reshape(T * B, E)                 # bf16
    gx1_all = (jnp.dot(emb_flat, w_ih1[...],
                       preferred_element_type=jnp.float32)
               + b_ih1_v)                                     # (T*B, 3Hg) f32

    def gates(gx, gh, h):
        # PyTorch GRU gate order r, z, n; gh_n must stay separate from gx_n.
        # Slices are lane-aligned (Hg multiple of 128). Math in f32.
        r = jax.nn.sigmoid(gx[:, 0:Hg] + gh[:, 0:Hg])
        z = jax.nn.sigmoid(gx[:, Hg:2 * Hg] + gh[:, Hg:2 * Hg])
        n = jnp.tanh(gx[:, 2 * Hg:3 * Hg] + r * gh[:, 2 * Hg:3 * Hg])
        return (1.0 - z) * n + z * h

    def cell1(t, h1):
        gx = gx1_all[t * B:(t + 1) * B, :]                    # static sublane slice
        gh = jnp.dot(h1.astype(jnp.bfloat16), w_hh1_v,
                     preferred_element_type=jnp.float32) + b_hh1_v
        return gates(gx, gh, h1)

    def cell2(x, h2):
        # Fused layer-2 step: one MXU push for both gx2 and gh2 via the
        # block-diagonal [x|h2] (B, 2Hg) @ (2Hg, 6Hg) weight.
        xh = jnp.concatenate([x, h2], axis=-1).astype(jnp.bfloat16)
        g = jnp.dot(xh, w2_v, preferred_element_type=jnp.float32)   # (B, 6Hg)
        gx = g[:, 0:G3] + b_ih2_v
        gh = g[:, G3:2 * G3] + b_hh2_v
        return gates(gx, gh, h2)

    zeros_bh = jnp.zeros((B, Hg), jnp.float32)
    h1, h2, last = zeros_bh, zeros_bh, zeros_bh

    # ---- wavefront-pipelined, fully unrolled recurrence (T static & small):
    # iteration t advances layer 1 to step t while layer 2 processes step t-1,
    # so the two recurrent matmul chains are independent within an iteration.
    for t in range(T):
        h1_new = cell1(t, h1)
        if t > 0:
            h2 = cell2(h1, h2)                                # layer-2 step t-1
            last = jnp.where(last_idx == (t - 1), h2, last)
        h1 = h1_new
    h2 = cell2(h1, h2)                                        # flush: step T-1
    last = jnp.where(last_idx == (T - 1), h2, last)

    # ---- MLP head: fc(+folded BN1) -> ReLU -> fc2(+folded BN2) -> ReLU -> fc_out
    # (dropout layers are identity in eval mode)
    y = jnp.maximum(jnp.dot(last.astype(jnp.bfloat16), fc_w[...],
                            preferred_element_type=jnp.float32) + fc_b[...], 0.0)
    y = jnp.maximum(jnp.dot(y.astype(jnp.bfloat16), fc2_w[...],
                            preferred_element_type=jnp.float32) + fc2_b[...], 0.0)
    y = jnp.dot(y.astype(jnp.bfloat16), fco_w[...],
                preferred_element_type=jnp.float32) + fco_b[...]
    out_ref[...] = y


# ------------------------------ host wrapper --------------------------------

_WEIGHT_NAMES = ("w_ih1", "w_hh1", "w2", "gate_b",
                 "fc_w", "fc_b", "fc2_w", "fc2_b", "fco_w", "fco_b")


def gru_model_forward(emb_seq_tbe, lengths, params, *, block_b=None):
    """emb_seq_tbe: (T, B, E) f32 (time-major), lengths: (B,) int32 -> (B,) f32.

    block_b: batch tile. Keep block_b == B on v5e/v6e (single TC, whole problem
    fits VMEM); pick B // block_b >= 2 on v7x so both TensorCores get work, and
    size the (T, block_b, E) / (T*block_b, 3Hg) buffers against ~32 MiB scoped
    VMEM (raise via vmem_limit_bytes if needed).
    """
    T, B, E = emb_seq_tbe.shape
    out_size = params["fco_w"].shape[1]
    if block_b is None:
        block_b = B
    assert B % block_b == 0, "block_b must divide B"
    assert block_b % 8 == 0, "block_b must be a multiple of 8 (sublane rule)"
    grid = (B // block_b,)

    lengths_2d = lengths.reshape(B, 1).astype(jnp.int32)
    emb_bf16 = emb_seq_tbe.astype(jnp.bfloat16)   # halve emb DMA bytes
    weights = [params[n] for n in _WEIGHT_NAMES]

    def rep_spec(arr):
        nd = arr.ndim                    # replicate whole array across batch grid
        return pl.BlockSpec(arr.shape, lambda b, nd=nd: (0,) * nd)

    in_specs = (
        [pl.BlockSpec((block_b, 1), lambda b: (b, 0)),          # lengths
         pl.BlockSpec((T, block_b, E), lambda b: (0, b, 0))]    # emb (batch-tiled)
        + [rep_spec(w) for w in weights]
    )
    out_spec = pl.BlockSpec((block_b, out_size), lambda b: (b, 0))

    out = pl.pallas_call(
        _gru_head_kernel,
        out_shape=jax.ShapeDtypeStruct((B, out_size), jnp.float32),
        grid=grid,
        in_specs=in_specs,
        out_specs=out_spec,
        compiler_params=pltpu.CompilerParams(
            dimension_semantics=("parallel",)),
    )(lengths_2d, emb_bf16, *weights)
    return out[:, 0]                     # .squeeze(-1)


# --------------------------- parameter creation -----------------------------

def xavier_uniform(key, fan_out, fan_in):
    bound = jnp.sqrt(6.0 / (fan_in + fan_out))
    # stored transposed: (fan_in, fan_out) so the kernel does x @ W
    return jax.random.uniform(key, (fan_in, fan_out), jnp.float32, -bound, bound)


def make_params(key, emb_specs, hidden_size, output_size):
    E = sum(d for _, d in emb_specs)
    H = hidden_size
    Hg = ((H + 127) // 128) * 128        # lane-aligned per-gate width
    H2, H4 = H // 2, H // 4
    eps = 1e-5
    keys = jax.random.split(key, 16)

    # Embedding tables, N(0,1), padding_idx=0 row zeroed.
    emb_tables = []
    for i, (vocab, dim) in enumerate(emb_specs):
        tbl = jax.random.normal(keys[i], (vocab, dim), jnp.float32)
        tbl = tbl.at[0].set(0.0)
        emb_tables.append(tbl)

    def pad_gate_cols(w):
        # (K, 3H) with gates [r|z|n] -> (K, 3Hg), each gate on its own 128-lane block
        K = w.shape[0]
        out = jnp.zeros((K, 3 * Hg), jnp.float32)
        for g in range(3):
            out = out.at[:, g * Hg:g * Hg + H].set(w[:, g * H:(g + 1) * H])
        return out

    def pad_rows(w, rows):
        out = jnp.zeros((rows, w.shape[1]), jnp.float32)
        return out.at[:w.shape[0], :].set(w)

    # GRU layer 0: weight_ih (3H, E) -> stored (E, 3Hg); weight_hh (3H, H) -> (Hg, 3Hg)
    w_ih1 = pad_gate_cols(xavier_uniform(keys[8], 3 * H, E))
    w_hh1 = pad_rows(pad_gate_cols(xavier_uniform(keys[9], 3 * H, H)), Hg)
    # GRU layer 1, fused block-diagonal so [x|h] @ w2 == [x@w_ih2 | h@w_hh2]
    w_ih2 = pad_rows(pad_gate_cols(xavier_uniform(keys[10], 3 * H, H)), Hg)
    w_hh2 = pad_rows(pad_gate_cols(xavier_uniform(keys[11], 3 * H, H)), Hg)
    w2 = jnp.zeros((2 * Hg, 6 * Hg), jnp.float32)
    w2 = w2.at[:Hg, :3 * Hg].set(w_ih2).at[Hg:, 3 * Hg:].set(w_hh2)
    # GRU biases (PyTorch zero-init); rows: b_ih1, b_hh1, b_ih2, b_hh2.
    gate_b = jnp.zeros((4, 3 * Hg), jnp.float32)

    def bn_fold(n):
        # fresh BatchNorm1d (eval): gamma=1, beta=0, running_mean=0, running_var=1
        gamma = jnp.ones((n,), jnp.float32)
        beta = jnp.zeros((n,), jnp.float32)
        mean = jnp.zeros((n,), jnp.float32)
        var = jnp.ones((n,), jnp.float32)
        scale = gamma / jnp.sqrt(var + eps)
        shift = beta - mean * scale
        return scale, shift

    bn1_s, bn1_b = bn_fold(H2)
    bn2_s, bn2_b = bn_fold(H4)

    # Head with eval-mode BatchNorm folded into the linear layers.
    fc_w = xavier_uniform(keys[12], H2, H) * bn1_s[None, :]          # (H, H2)
    fc_b = (jnp.zeros((H2,), jnp.float32) * bn1_s + bn1_b).reshape(1, H2)
    fc2_w = xavier_uniform(keys[13], H4, H2) * bn2_s[None, :]        # (H2, H4)
    fc2_b = (jnp.zeros((H4,), jnp.float32) * bn2_s + bn2_b).reshape(1, H4)
    fco_w = xavier_uniform(keys[14], output_size, H4)                # (H4, out)
    fco_b = jnp.zeros((1, output_size), jnp.float32)

    bf = jnp.bfloat16
    params = {
        "w_ih1": w_ih1.astype(bf),
        "w_hh1": w_hh1.astype(bf),
        "w2": w2.astype(bf),
        "gate_b": gate_b,                         # f32 (added to f32 accumulators)
        "fc_w": pad_rows(fc_w, Hg).astype(bf),    # rows padded for padded hidden cols
        "fc_b": fc_b,
        "fc2_w": fc2_w.astype(bf),
        "fc2_b": fc2_b,
        "fco_w": fco_w.astype(bf),
        "fco_b": fco_b,
    }
    return emb_tables, params


def embed_and_concat(x, emb_tables):
    """x: (B, T, F) int32 -> (T, B, E) f32 (embedding gather glue, plain JAX)."""
    # TODO(synk): embedding gathers stay as plain-JAX glue (data-dependent
    # per-feature gathers; not worth a manual Pallas DMA gather at these sizes).
    embs = [jnp.take(tbl, x[:, :, i], axis=0) for i, tbl in enumerate(emb_tables)]
    all_emb = jnp.concatenate(embs, axis=-1)          # (B, T, E)
    return jnp.transpose(all_emb, (1, 0, 2))          # (T, B, E), time-major


# --------------------------------- main -------------------------------------

if __name__ == "__main__":
    key = jax.random.PRNGKey(0)

    # Small, forward-consistent shapes.
    B, T = 8, 8
    hidden_size = 32
    output_size = 1
    # embeddings_for_features: {feat: (vocab_size, emb_dim)}; sum of dims = 32.
    emb_specs = [(10, 8), (12, 8), (7, 16)]
    F = len(emb_specs)

    k_par, k_x, k_len = jax.random.split(key, 3)
    emb_tables, params = make_params(k_par, emb_specs, hidden_size, output_size)

    # Integer feature indices (avoid 0 = padding row for valid positions).
    xs = []
    xkeys = jax.random.split(k_x, F)
    for i, (vocab, _) in enumerate(emb_specs):
        xs.append(jax.random.randint(xkeys[i], (B, T, 1), 1, vocab, dtype=jnp.int32))
    x = jnp.concatenate(xs, axis=-1)                  # (B, T, F)

    lengths = jax.random.randint(k_len, (B,), 1, T + 1, dtype=jnp.int32)

    emb_seq = embed_and_concat(x, emb_tables)         # (T, B, E)
    out = gru_model_forward(emb_seq, lengths, params)  # (B,)
    jax.block_until_ready(out)
    assert out.shape == (B,)
    print("KERNEL_OK")
</pallas_src>

<mosaic_0001>
module attributes {stable_mosaic.version = 11 : i64} {
  func.func @_gru_head_kernel(%arg0: i32, %arg1: memref<8x1xi32, #tpu.memory_space<vmem>>, %arg2: memref<8x8x32xbf16, #tpu.memory_space<vmem>>, %arg3: memref<32x384xbf16, #tpu.memory_space<vmem>>, %arg4: memref<128x384xbf16, #tpu.memory_space<vmem>>, %arg5: memref<256x768xbf16, #tpu.memory_space<vmem>>, %arg6: memref<4x384xf32, #tpu.memory_space<vmem>>, %arg7: memref<128x16xbf16, #tpu.memory_space<vmem>>, %arg8: memref<1x16xf32, #tpu.memory_space<vmem>>, %arg9: memref<16x8xbf16, #tpu.memory_space<vmem>>, %arg10: memref<1x8xf32, #tpu.memory_space<vmem>>, %arg11: memref<8x1xbf16, #tpu.memory_space<vmem>>, %arg12: memref<1x1xf32, #tpu.memory_space<vmem>>, %arg13: memref<8x1xf32, #tpu.memory_space<vmem>>) attributes {dimension_semantics = [#tpu.dimension_semantics<parallel>], iteration_bounds = array<i64: 1>, scalar_prefetch = 0 : i64, scratch_operands = 0 : i64, tpu.core_type = #tpu.core_type<tc>, window_params = [{transform_indices = @transform_0, window_bounds = array<i64: 8, 1>}, {transform_indices = @transform_1, window_bounds = array<i64: 8, 8, 32>}, {pipeline_mode = #tpu.pipeline_mode<synchronous>, transform_indices = @transform_2, window_bounds = array<i64: 32, 384>}, {pipeline_mode = #tpu.pipeline_mode<synchronous>, transform_indices = @transform_3, window_bounds = array<i64: 128, 384>}, {pipeline_mode = #tpu.pipeline_mode<synchronous>, transform_indices = @transform_4, window_bounds = array<i64: 256, 768>}, {pipeline_mode = #tpu.pipeline_mode<synchronous>, transform_indices = @transform_5, window_bounds = array<i64: 4, 384>}, {pipeline_mode = #tpu.pipeline_mode<synchronous>, transform_indices = @transform_6, window_bounds = array<i64: 128, 16>}, {pipeline_mode = #tpu.pipeline_mode<synchronous>, transform_indices = @transform_7, window_bounds = array<i64: 1, 16>}, {pipeline_mode = #tpu.pipeline_mode<synchronous>, transform_indices = @transform_8, window_bounds = array<i64: 16, 8>}, {pipeline_mode = #tpu.pipeline_mode<synchronous>, transform_indices = @transform_9, window_bounds = array<i64: 1, 8>}, {pipeline_mode = #tpu.pipeline_mode<synchronous>, transform_indices = @transform_10, window_bounds = array<i64: 8, 1>}, {pipeline_mode = #tpu.pipeline_mode<synchronous>, transform_indices = @transform_11, window_bounds = array<i64: 1, 1>}, {transform_indices = @transform_12, window_bounds = array<i64: 8, 1>}]} {
    %c0 = arith.constant 0 : index
    %c0_0 = arith.constant 0 : index
    %0 = vector.load %arg1[%c0, %c0_0] : memref<8x1xi32, #tpu.memory_space<vmem>>, vector<8x1xi32>
    %c1_i32 = arith.constant 1 : i32
    %1 = vector.broadcast %c1_i32 : i32 to vector<8x1xi32>
    %2 = arith.subi %0, %1 : vector<8x1xi32>
    %c7_i32 = arith.constant 7 : i32
    %3 = vector.broadcast %c7_i32 : i32 to vector<8x1xi32>
    %4 = arith.minsi %2, %3 : vector<8x1xi32>
    %c0_1 = arith.constant 0 : index
    %c0_2 = arith.constant 0 : index
    %5 = vector.load %arg4[%c0_1, %c0_2] : memref<128x384xbf16, #tpu.memory_space<vmem>>, vector<128x384xbf16>
    %c0_3 = arith.constant 0 : index
    %c0_4 = arith.constant 0 : index
    %6 = vector.load %arg5[%c0_3, %c0_4] : memref<256x768xbf16, #tpu.memory_space<vmem>>, vector<256x768xbf16>
    %c0_5 = arith.constant 0 : index
    %c0_6 = arith.constant 0 : index
    %7 = vector.load %arg6[%c0_5, %c0_6] : memref<4x384xf32, #tpu.memory_space<vmem>>, vector<1x384xf32>
    %c1 = arith.constant 1 : index
    %c0_7 = arith.constant 0 : index
    %8 = vector.load %arg6[%c1, %c0_7] : memref<4x384xf32, #tpu.memory_space<vmem>>, vector<1x384xf32>
    %9 = vector.shape_cast %8 : vector<1x384xf32> to vector<1x384xf32>
    %10 = vector.broadcast %9 : vector<1x384xf32> to vector<8x384xf32>
    %c2 = arith.constant 2 : index
    %c0_8 = arith.constant 0 : index
    %11 = vector.load %arg6[%c2, %c0_8] : memref<4x384xf32, #tpu.memory_space<vmem>>, vector<1x384xf32>
    %12 = vector.shape_cast %11 : vector<1x384xf32> to vector<1x384xf32>
    %13 = vector.broadcast %12 : vector<1x384xf32> to vector<8x384xf32>
    %c3 = arith.constant 3 : index
    %c0_9 = arith.constant 0 : index
    %14 = vector.load %arg6[%c3, %c0_9] : memref<4x384xf32, #tpu.memory_space<vmem>>, vector<1x384xf32>
    %15 = vector.shape_cast %14 : vector<1x384xf32> to vector<1x384xf32>
    %16 = vector.broadcast %15 : vector<1x384xf32> to vector<8x384xf32>
    %c0_10 = arith.constant 0 : index
    %c0_11 = arith.constant 0 : index
    %c0_12 = arith.constant 0 : index
    %17 = vector.load %arg2[%c0_10, %c0_11, %c0_12] : memref<8x8x32xbf16, #tpu.memory_space<vmem>>, vector<8x8x32xbf16>
    %18 = vector.shape_cast %17 : vector<8x8x32xbf16> to vector<64x32xbf16>
    %c0_13 = arith.constant 0 : index
    %c0_14 = arith.constant 0 : index
    %19 = vector.load %arg3[%c0_13, %c0_14] : memref<32x384xbf16, #tpu.memory_space<vmem>>, vector<32x384xbf16>
    %cst = arith.constant dense<0.000000e+00> : vector<64x384xf32>
    %20 = tpu.matmul %18, %19, %cst {dimension_numbers = #tpu.dot_dimension_numbers<[1], [0], [0], [1], [0, 0, 1, 1], [], []>} : vector<64x32xbf16>, vector<32x384xbf16>, vector<64x384xf32> -> vector<64x384xf32>
    %21 = vector.broadcast %7 : vector<1x384xf32> to vector<64x384xf32>
    %22 = arith.addf %20, %21 : vector<64x384xf32>
    %cst_15 = arith.constant 0.000000e+00 : f32
    %23 = vector.broadcast %cst_15 : f32 to vector<8x128xf32>
    %24 = vector.extract_strided_slice %22 {offsets = [0, 0], sizes = [8, 384], strides = [1, 1]} : vector<64x384xf32> to vector<8x384xf32>
    %25 = arith.truncf %23 : vector<8x128xf32> to vector<8x128xbf16>
    %cst_16 = arith.constant dense<0.000000e+00> : vector<8x384xf32>
    %26 = tpu.matmul %25, %5, %cst_16 {dimension_numbers = #tpu.dot_dimension_numbers<[1], [0], [0], [1], [0, 0, 1, 1], [], []>} : vector<8x128xbf16>, vector<128x384xbf16>, vector<8x384xf32> -> vector<8x384xf32>
    %27 = arith.addf %26, %10 : vector<8x384xf32>
    %28 = vector.extract_strided_slice %24 {offsets = [0, 0], sizes = [8, 128], strides = [1, 1]} : vector<8x384xf32> to vector<8x128xf32>
    %29 = vector.extract_strided_slice %27 {offsets = [0, 0], sizes = [8, 128], strides = [1, 1]} : vector<8x384xf32> to vector<8x128xf32>
    %30 = arith.addf %28, %29 : vector<8x128xf32>
    %31 = arith.negf %30 : vector<8x128xf32>
    %32 = math.exp %31 : vector<8x128xf32>
    %cst_17 = arith.constant 1.000000e+00 : f32
    %33 = vector.broadcast %cst_17 : f32 to vector<8x128xf32>
    %34 = arith.addf %33, %32 : vector<8x128xf32>
    %35 = arith.divf %33, %34 : vector<8x128xf32>
    %36 = vector.extract_strided_slice %24 {offsets = [0, 128], sizes = [8, 128], strides = [1, 1]} : vector<8x384xf32> to vector<8x128xf32>
    %37 = vector.extract_strided_slice %27 {offsets = [0, 128], sizes = [8, 128], strides = [1, 1]} : vector<8x384xf32> to vector<8x128xf32>
    %38 = arith.addf %36, %37 : vector<8x128xf32>
    %39 = arith.negf %38 : vector<8x128xf32>
    %40 = math.exp %39 : vector<8x128xf32>
    %cst_18 = arith.constant 1.000000e+00 : f32
    %41 = vector.broadcast %cst_18 : f32 to vector<8x128xf32>
    %42 = arith.addf %41, %40 : vector<8x128xf32>
    %43 = arith.divf %41, %42 : vector<8x128xf32>
    %44 = vector.extract_strided_slice %24 {offsets = [0, 256], sizes = [8, 128], strides = [1, 1]} : vector<8x384xf32> to vector<8x128xf32>
    %45 = vector.extract_strided_slice %27 {offsets = [0, 256], sizes = [8, 128], strides = [1, 1]} : vector<8x384xf32> to vector<8x128xf32>
    %46 = arith.mulf %35, %45 : vector<8x128xf32>
    %47 = arith.addf %44, %46 : vector<8x128xf32>
    %48 = math.tanh %47 : vector<8x128xf32>
    %cst_19 = arith.constant 1.000000e+00 : f32
    %49 = vector.broadcast %cst_19 : f32 to vector<8x128xf32>
    %50 = arith.subf %49, %43 : vector<8x128xf32>
    %51 = arith.mulf %50, %48 : vector<8x128xf32>
    %52 = arith.mulf %43, %23 : vector<8x128xf32>
    %53 = arith.addf %51, %52 : vector<8x128xf32>
    %54 = vector.extract_strided_slice %22 {offsets = [8, 0], sizes = [8, 384], strides = [1, 1]} : vector<64x384xf32> to vector<8x384xf32>
    %55 = arith.truncf %53 : vector<8x128xf32> to vector<8x128xbf16>
    %cst_20 = arith.constant dense<0.000000e+00> : vector<8x384xf32>
    %56 = tpu.matmul %55, %5, %cst_20 {dimension_numbers = #tpu.dot_dimension_numbers<[1], [0], [0], [1], [0, 0, 1, 1], [], []>} : vector<8x128xbf16>, vector<128x384xbf16>, vector<8x384xf32> -> vector<8x384xf32>
    %57 = arith.addf %56, %10 : vector<8x384xf32>
    %58 = vector.extract_strided_slice %54 {offsets = [0, 0], sizes = [8, 128], strides = [1, 1]} : vector<8x384xf32> to vector<8x128xf32>
    %59 = vector.extract_strided_slice %57 {offsets = [0, 0], sizes = [8, 128], strides = [1, 1]} : vector<8x384xf32> to vector<8x128xf32>
    %60 = arith.addf %58, %59 : vector<8x128xf32>
    %61 = arith.negf %60 : vector<8x128xf32>
    %62 = math.exp %61 : vector<8x128xf32>
    %cst_21 = arith.constant 1.000000e+00 : f32
    %63 = vector.broadcast %cst_21 : f32 to vector<8x128xf32>
    %64 = arith.addf %63, %62 : vector<8x128xf32>
    %65 = arith.divf %63, %64 : vector<8x128xf32>
    %66 = vector.extract_strided_slice %54 {offsets = [0, 128], sizes = [8, 128], strides = [1, 1]} : vector<8x384xf32> to vector<8x128xf32>
    %67 = vector.extract_strided_slice %57 {offsets = [0, 128], sizes = [8, 128], strides = [1, 1]} : vector<8x384xf32> to vector<8x128xf32>
    %68 = arith.addf %66, %67 : vector<8x128xf32>
    %69 = arith.negf %68 : vector<8x128xf32>
    %70 = math.exp %69 : vector<8x128xf32>
    %cst_22 = arith.constant 1.000000e+00 : f32
    %71 = vector.broadcast %cst_22 : f32 to vector<8x128xf32>
    %72 = arith.addf %71, %70 : vector<8x128xf32>
    %73 = arith.divf %71, %72 : vector<8x128xf32>
    %74 = vector.extract_strided_slice %54 {offsets = [0, 256], sizes = [8, 128], strides = [1, 1]} : vector<8x384xf32> to vector<8x128xf32>
    %75 = vector.extract_strided_slice %57 {offsets = [0, 256], sizes = [8, 128], strides = [1, 1]} : vector<8x384xf32> to vector<8x128xf32>
    %76 = arith.mulf %65, %75 : vector<8x128xf32>
    %77 = arith.addf %74, %76 : vector<8x128xf32>
    %78 = math.tanh %77 : vector<8x128xf32>
    %cst_23 = arith.constant 1.000000e+00 : f32
    %79 = vector.broadcast %cst_23 : f32 to vector<8x128xf32>
    %80 = arith.subf %79, %73 : vector<8x128xf32>
    %81 = arith.mulf %80, %78 : vector<8x128xf32>
    %82 = arith.mulf %73, %53 : vector<8x128xf32>
    %83 = arith.addf %81, %82 : vector<8x128xf32>
    %84 = tpu.concatenate %53, %23 in 1 : vector<8x128xf32>, vector<8x128xf32> -> vector<8x256xf32>
    %85 = arith.truncf %84 : vector<8x256xf32> to vector<8x256xbf16>
    %cst_24 = arith.constant dense<0.000000e+00> : vector<8x768xf32>
    %86 = tpu.matmul %85, %6, %cst_24 {dimension_numbers = #tpu.dot_dimension_numbers<[1], [0], [0], [1], [0, 0, 1, 1], [], []>} : vector<8x256xbf16>, vector<256x768xbf16>, vector<8x768xf32> -> vector<8x768xf32>
    %87 = vector.extract_strided_slice %86 {offsets = [0, 0], sizes = [8, 384], strides = [1, 1]} : vector<8x768xf32> to vector<8x384xf32>
    %88 = arith.addf %87, %13 : vector<8x384xf32>
    %89 = vector.extract_strided_slice %86 {offsets = [0, 384], sizes = [8, 384], strides = [1, 1]} : vector<8x768xf32> to vector<8x384xf32>
    %90 = arith.addf %89, %16 : vector<8x384xf32>
    %91 = vector.extract_strided_slice %88 {offsets = [0, 0], sizes = [8, 128], strides = [1, 1]} : vector<8x384xf32> to vector<8x128xf32>
    %92 = vector.extract_strided_slice %90 {offsets = [0, 0], sizes = [8, 128], strides = [1, 1]} : vector<8x384xf32> to vector<8x128xf32>
    %93 = arith.addf %91, %92 : vector<8x128xf32>
    %94 = arith.negf %93 : vector<8x128xf32>
    %95 = math.exp %94 : vector<8x128xf32>
    %cst_25 = arith.constant 1.000000e+00 : f32
    %96 = vector.broadcast %cst_25 : f32 to vector<8x128xf32>
    %97 = arith.addf %96, %95 : vector<8x128xf32>
    %98 = arith.divf %96, %97 : vector<8x128xf32>
    %99 = vector.extract_strided_slice %88 {offsets = [0, 128], sizes = [8, 128], strides = [1, 1]} : vector<8x384xf32> to vector<8x128xf32>
    %100 = vector.extract_strided_slice %90 {offsets = [0, 128], sizes = [8, 128], strides = [1, 1]} : vector<8x384xf32> to vector<8x128xf32>
    %101 = arith.addf %99, %100 : vector<8x128xf32>
    %102 = arith.negf %101 : vector<8x128xf32>
    %103 = math.exp %102 : vector<8x128xf32>
    %cst_26 = arith.constant 1.000000e+00 : f32
    %104 = vector.broadcast %cst_26 : f32 to vector<8x128xf32>
    %105 = arith.addf %104, %103 : vector<8x128xf32>
    %106 = arith.divf %104, %105 : vector<8x128xf32>
    %107 = vector.extract_strided_slice %88 {offsets = [0, 256], sizes = [8, 128], strides = [1, 1]} : vector<8x384xf32> to vector<8x128xf32>
    %108 = vector.extract_strided_slice %90 {offsets = [0, 256], sizes = [8, 128], strides = [1, 1]} : vector<8x384xf32> to vector<8x128xf32>
    %109 = arith.mulf %98, %108 : vector<8x128xf32>
    %110 = arith.addf %107, %109 : vector<8x128xf32>
    %111 = math.tanh %110 : vector<8x128xf32>
    %cst_27 = arith.constant 1.000000e+00 : f32
    %112 = vector.broadcast %cst_27 : f32 to vector<8x128xf32>
    %113 = arith.subf %112, %106 : vector<8x128xf32>
    %114 = arith.mulf %113, %111 : vector<8x128xf32>
    %115 = arith.mulf %106, %23 : vector<8x128xf32>
    %116 = arith.addf %114, %115 : vector<8x128xf32>
    %c0_i32 = arith.constant 0 : i32
    %117 = vector.broadcast %c0_i32 : i32 to vector<8x1xi32>
    %118 = arith.cmpi eq, %4, %117 : vector<8x1xi32>
    %119 = vector.shape_cast %118 : vector<8x1xi1> to vector<8x1xi1>
    %120 = vector.broadcast %119 : vector<8x1xi1> to vector<8x128xi1>
    %121 = arith.select %120, %116, %23 : vector<8x128xi1>, vector<8x128xf32>
    %122 = vector.extract_strided_slice %22 {offsets = [16, 0], sizes = [8, 384], strides = [1, 1]} : vector<64x384xf32> to vector<8x384xf32>
    %123 = arith.truncf %83 : vector<8x128xf32> to vector<8x128xbf16>
    %cst_28 = arith.constant dense<0.000000e+00> : vector<8x384xf32>
    %124 = tpu.matmul %123, %5, %cst_28 {dimension_numbers = #tpu.dot_dimension_numbers<[1], [0], [0], [1], [0, 0, 1, 1], [], []>} : vector<8x128xbf16>, vector<128x384xbf16>, vector<8x384xf32> -> vector<8x384xf32>
    %125 = arith.addf %124, %10 : vector<8x384xf32>
    %126 = vector.extract_strided_slice %122 {offsets = [0, 0], sizes = [8, 128], strides = [1, 1]} : vector<8x384xf32> to vector<8x128xf32>
    %127 = vector.extract_strided_slice %125 {offsets = [0, 0], sizes = [8, 128], strides = [1, 1]} : vector<8x384xf32> to vector<8x128xf32>
    %128 = arith.addf %126, %127 : vector<8x128xf32>
    %129 = arith.negf %128 : vector<8x128xf32>
    %130 = math.exp %129 : vector<8x128xf32>
    %cst_29 = arith.constant 1.000000e+00 : f32
    %131 = vector.broadcast %cst_29 : f32 to vector<8x128xf32>
    %132 = arith.addf %131, %130 : vector<8x128xf32>
    %133 = arith.divf %131, %132 : vector<8x128xf32>
    %134 = vector.extract_strided_slice %122 {offsets = [0, 128], sizes = [8, 128], strides = [1, 1]} : vector<8x384xf32> to vector<8x128xf32>
    %135 = vector.extract_strided_slice %125 {offsets = [0, 128], sizes = [8, 128], strides = [1, 1]} : vector<8x384xf32> to vector<8x128xf32>
    %136 = arith.addf %134, %135 : vector<8x128xf32>
    %137 = arith.negf %136 : vector<8x128xf32>
    %138 = math.exp %137 : vector<8x128xf32>
    %cst_30 = arith.constant 1.000000e+00 : f32
    %139 = vector.broadcast %cst_30 : f32 to vector<8x128xf32>
    %140 = arith.addf %139, %138 : vector<8x128xf32>
    %141 = arith.divf %139, %140 : vector<8x128xf32>
    %142 = vector.extract_strided_slice %122 {offsets = [0, 256], sizes = [8, 128], strides = [1, 1]} : vector<8x384xf32> to vector<8x128xf32>
    %143 = vector.extract_strided_slice %125 {offsets = [0, 256], sizes = [8, 128], strides = [1, 1]} : vector<8x384xf32> to vector<8x128xf32>
    %144 = arith.mulf %133, %143 : vector<8x128xf32>
    %145 = arith.addf %142, %144 : vector<8x128xf32>
    %146 = math.tanh %145 : vector<8x128xf32>
    %cst_31 = arith.constant 1.000000e+00 : f32
    %147 = vector.broadcast %cst_31 : f32 to vector<8x128xf32>
    %148 = arith.subf %147, %141 : vector<8x128xf32>
    %149 = arith.mulf %148, %146 : vector<8x128xf32>
    %150 = arith.mulf %141, %83 : vector<8x128xf32>
    %151 = arith.addf %149, %150 : vector<8x128xf32>
    %152 = tpu.concatenate %83, %116 in 1 : vector<8x128xf32>, vector<8x128xf32> -> vector<8x256xf32>
    %153 = arith.truncf %152 : vector<8x256xf32> to vector<8x256xbf16>
    %cst_32 = arith.constant dense<0.000000e+00> : vector<8x768xf32>
    %154 = tpu.matmul %153, %6, %cst_32 {dimension_numbers = #tpu.dot_dimension_numbers<[1], [0], [0], [1], [0, 0, 1, 1], [], []>} : vector<8x256xbf16>, vector<256x768xbf16>, vector<8x768xf32> -> vector<8x768xf32>
    %155 = vector.extract_strided_slice %154 {offsets = [0, 0], sizes = [8, 384], strides = [1, 1]} : vector<8x768xf32> to vector<8x384xf32>
    %156 = arith.addf %155, %13 : vector<8x384xf32>
    %157 = vector.extract_strided_slice %154 {offsets = [0, 384], sizes = [8, 384], strides = [1, 1]} : vector<8x768xf32> to vector<8x384xf32>
    %158 = arith.addf %157, %16 : vector<8x384xf32>
    %159 = vector.extract_strided_slice %156 {offsets = [0, 0], sizes = [8, 128], strides = [1, 1]} : vector<8x384xf32> to vector<8x128xf32>
    %160 = vector.extract_strided_slice %158 {offsets = [0, 0], sizes = [8, 128], strides = [1, 1]} : vector<8x384xf32> to vector<8x128xf32>
    %161 = arith.addf %159, %160 : vector<8x128xf32>
    %162 = arith.negf %161 : vector<8x128xf32>
    %163 = math.exp %162 : vector<8x128xf32>
    %cst_33 = arith.constant 1.000000e+00 : f32
    %164 = vector.broadcast %cst_33 : f32 to vector<8x128xf32>
    %165 = arith.addf %164, %163 : vector<8x128xf32>
    %166 = arith.divf %164, %165 : vector<8x128xf32>
    %167 = vector.extract_strided_slice %156 {offsets = [0, 128], sizes = [8, 128], strides = [1, 1]} : vector<8x384xf32> to vector<8x128xf32>
    %168 = vector.extract_strided_slice %158 {offsets = [0, 128], sizes = [8, 128], strides = [1, 1]} : vector<8x384xf32> to vector<8x128xf32>
    %169 = arith.addf %167, %168 : vector<8x128xf32>
    %170 = arith.negf %169 : vector<8x128xf32>
    %171 = math.exp %170 : vector<8x128xf32>
    %cst_34 = arith.constant 1.000000e+00 : f32
    %172 = vector.broadcast %cst_34 : f32 to vector<8x128xf32>
    %173 = arith.addf %172, %171 : vector<8x128xf32>
    %174 = arith.divf %172, %173 : vector<8x128xf32>
    %175 = vector.extract_strided_slice %156 {offsets = [0, 256], sizes = [8, 128], strides = [1, 1]} : vector<8x384xf32> to vector<8x128xf32>
    %176 = vector.extract_strided_slice %158 {offsets = [0, 256], sizes = [8, 128], strides = [1, 1]} : vector<8x384xf32> to vector<8x128xf32>
    %177 = arith.mulf %166, %176 : vector<8x128xf32>
    %178 = arith.addf %175, %177 : vector<8x128xf32>
    %179 = math.tanh %178 : vector<8x128xf32>
    %cst_35 = arith.constant 1.000000e+00 : f32
    %180 = vector.broadcast %cst_35 : f32 to vector<8x128xf32>
    %181 = arith.subf %180, %174 : vector<8x128xf32>
    %182 = arith.mulf %181, %179 : vector<8x128xf32>
    %183 = arith.mulf %174, %116 : vector<8x128xf32>
    %184 = arith.addf %182, %183 : vector<8x128xf32>
    %c1_i32_36 = arith.constant 1 : i32
    %185 = vector.broadcast %c1_i32_36 : i32 to vector<8x1xi32>
    %186 = arith.cmpi eq, %4, %185 : vector<8x1xi32>
    %187 = vector.shape_cast %186 : vector<8x1xi1> to vector<8x1xi1>
    %188 = vector.broadcast %187 : vector<8x1xi1> to vector<8x128xi1>
    %189 = arith.select %188, %184, %121 : vector<8x128xi1>, vector<8x128xf32>
    %190 = vector.extract_strided_slice %22 {offsets = [24, 0], sizes = [8, 384], strides = [1, 1]} : vector<64x384xf32> to vector<8x384xf32>
    %191 = arith.truncf %151 : vector<8x128xf32> to vector<8x128xbf16>
    %cst_37 = arith.constant dense<0.000000e+00> : vector<8x384xf32>
    %192 = tpu.matmul %191, %5, %cst_37 {dimension_numbers = #tpu.dot_dimension_numbers<[1], [0], [0], [1], [0, 0, 1, 1], [], []>} : vector<8x128xbf16>, vector<128x384xbf16>, vector<8x384xf32> -> vector<8x384xf32>
    %193 = arith.addf %192, %10 : vector<8x384xf32>
    %194 = vector.extract_strided_slice %190 {offsets = [0, 0], sizes = [8, 128], strides = [1, 1]} : vector<8x384xf32> to vector<8x128xf32>
    %195 = vector.extract_strided_slice %193 {offsets = [0, 0], sizes = [8, 128], strides = [1, 1]} : vector<8x384xf32> to vector<8x128xf32>
    %196 = arith.addf %194, %195 : vector<8x128xf32>
    %197 = arith.negf %196 : vector<8x128xf32>
    %198 = math.exp %197 : vector<8x128xf32>
    %cst_38 = arith.constant 1.000000e+00 : f32
    %199 = vector.broadcast %cst_38 : f32 to vector<8x128xf32>
    %200 = arith.addf %199, %198 : vector<8x128xf32>
    %201 = arith.divf %199, %200 : vector<8x128xf32>
    %202 = vector.extract_strided_slice %190 {offsets = [0, 128], sizes = [8, 128], strides = [1, 1]} : vector<8x384xf32> to vector<8x128xf32>
    %203 = vector.extract_strided_slice %193 {offsets = [0, 128], sizes = [8, 128], strides = [1, 1]} : vector<8x384xf32> to vector<8x128xf32>
    %204 = arith.addf %202, %203 : vector<8x128xf32>
    %205 = arith.negf %204 : vector<8x128xf32>
    %206 = math.exp %205 : vector<8x128xf32>
    %cst_39 = arith.constant 1.000000e+00 : f32
    %207 = vector.broadcast %cst_39 : f32 to vector<8x128xf32>
    %208 = arith.addf %207, %206 : vector<8x128xf32>
    %209 = arith.divf %207, %208 : vector<8x128xf32>
    %210 = vector.extract_strided_slice %190 {offsets = [0, 256], sizes = [8, 128], strides = [1, 1]} : vector<8x384xf32> to vector<8x128xf32>
    %211 = vector.extract_strided_slice %193 {offsets = [0, 256], sizes = [8, 128], strides = [1, 1]} : vector<8x384xf32> to vector<8x128xf32>
    %212 = arith.mulf %201, %211 : vector<8x128xf32>
    %213 = arith.addf %210, %212 : vector<8x128xf32>
    %214 = math.tanh %213 : vector<8x128xf32>
    %cst_40 = arith.constant 1.000000e+00 : f32
    %215 = vector.broadcast %cst_40 : f32 to vector<8x128xf32>
    %216 = arith.subf %215, %209 : vector<8x128xf32>
    %217 = arith.mulf %216, %214 : vector<8x128xf32>
    %218 = arith.mulf %209, %151 : vector<8x128xf32>
    %219 = arith.addf %217, %218 : vector<8x128xf32>
    %220 = tpu.concatenate %151, %184 in 1 : vector<8x128xf32>, vector<8x128xf32> -> vector<8x256xf32>
    %221 = arith.truncf %220 : vector<8x256xf32> to vector<8x256xbf16>
    %cst_41 = arith.constant dense<0.000000e+00> : vector<8x768xf32>
    %222 = tpu.matmul %221, %6, %cst_41 {dimension_numbers = #tpu.dot_dimension_numbers<[1], [0], [0], [1], [0, 0, 1, 1], [], []>} : vector<8x256xbf16>, vector<256x768xbf16>, vector<8x768xf32> -> vector<8x768xf32>
    %223 = vector.extract_strided_slice %222 {offsets = [0, 0], sizes = [8, 384], strides = [1, 1]} : vector<8x768xf32> to vector<8x384xf32>
    %224 = arith.addf %223, %13 : vector<8x384xf32>
    %225 = vector.extract_strided_slice %222 {offsets = [0, 384], sizes = [8, 384], strides = [1, 1]} : vector<8x768xf32> to vector<8x384xf32>
    %226 = arith.addf %225, %16 : vector<8x384xf32>
    %227 = vector.extract_strided_slice %224 {offsets = [0, 0], sizes = [8, 128], strides = [1, 1]} : vector<8x384xf32> to vector<8x128xf32>
    %228 = vector.extract_strided_slice %226 {offsets = [0, 0], sizes = [8, 128], strides = [1, 1]} : vector<8x384xf32> to vector<8x128xf32>
    %229 = arith.addf %227, %228 : vector<8x128xf32>
    %230 = arith.negf %229 : vector<8x128xf32>
    %231 = math.exp %230 : vector<8x128xf32>
    %cst_42 = arith.constant 1.000000e+00 : f32
    %232 = vector.broadcast %cst_42 : f32 to vector<8x128xf32>
    %233 = arith.addf %232, %231 : vector<8x128xf32>
    %234 = arith.divf %232, %233 : vector<8x128xf32>
    %235 = vector.extract_strided_slice %224 {offsets = [0, 128], sizes = [8, 128], strides = [1, 1]} : vector<8x384xf32> to vector<8x128xf32>
    %236 = vector.extract_strided_slice %226 {offsets = [0, 128], sizes = [8, 128], strides = [1, 1]} : vector<8x384xf32> to vector<8x128xf32>
    %237 = arith.addf %235, %236 : vector<8x128xf32>
    %238 = arith.negf %237 : vector<8x128xf32>
    %239 = math.exp %238 : vector<8x128xf32>
    %cst_43 = arith.constant 1.000000e+00 : f32
    %240 = vector.broadcast %cst_43 : f32 to vector<8x128xf32>
    %241 = arith.addf %240, %239 : vector<8x128xf32>
    %242 = arith.divf %240, %241 : vector<8x128xf32>
    %243 = vector.extract_strided_slice %224 {offsets = [0, 256], sizes = [8, 128], strides = [1, 1]} : vector<8x384xf32> to vector<8x128xf32>
    %244 = vector.extract_strided_slice %226 {offsets = [0, 256], sizes = [8, 128], strides = [1, 1]} : vector<8x384xf32> to vector<8x128xf32>
    %245 = arith.mulf %234, %244 : vector<8x128xf32>
    %246 = arith.addf %243, %245 : vector<8x128xf32>
    %247 = math.tanh %246 : vector<8x128xf32>
    %cst_44 = arith.constant 1.000000e+00 : f32
    %248 = vector.broadcast %cst_44 : f32 to vector<8x128xf32>
    %249 = arith.subf %248, %242 : vector<8x128xf32>
    %250 = arith.mulf %249, %247 : vector<8x128xf32>
    %251 = arith.mulf %242, %184 : vector<8x128xf32>
    %252 = arith.addf %250, %251 : vector<8x128xf32>
    %c2_i32 = arith.constant 2 : i32
    %253 = vector.broadcast %c2_i32 : i32 to vector<8x1xi32>
    %254 = arith.cmpi eq, %4, %253 : vector<8x1xi32>
    %255 = vector.shape_cast %254 : vector<8x1xi1> to vector<8x1xi1>
    %256 = vector.broadcast %255 : vector<8x1xi1> to vector<8x128xi1>
    %257 = arith.select %256, %252, %189 : vector<8x128xi1>, vector<8x128xf32>
    %258 = vector.extract_strided_slice %22 {offsets = [32, 0], sizes = [8, 384], strides = [1, 1]} : vector<64x384xf32> to vector<8x384xf32>
    %259 = arith.truncf %219 : vector<8x128xf32> to vector<8x128xbf16>
    %cst_45 = arith.constant dense<0.000000e+00> : vector<8x384xf32>
    %260 = tpu.matmul %259, %5, %cst_45 {dimension_numbers = #tpu.dot_dimension_numbers<[1], [0], [0], [1], [0, 0, 1, 1], [], []>} : vector<8x128xbf16>, vector<128x384xbf16>, vector<8x384xf32> -> vector<8x384xf32>
    %261 = arith.addf %260, %10 : vector<8x384xf32>
    %262 = vector.extract_strided_slice %258 {offsets = [0, 0], sizes = [8, 128], strides = [1, 1]} : vector<8x384xf32> to vector<8x128xf32>
    %263 = vector.extract_strided_slice %261 {offsets = [0, 0], sizes = [8, 128], strides = [1, 1]} : vector<8x384xf32> to vector<8x128xf32>
    %264 = arith.addf %262, %263 : vector<8x128xf32>
    %265 = arith.negf %264 : vector<8x128xf32>
    %266 = math.exp %265 : vector<8x128xf32>
    %cst_46 = arith.constant 1.000000e+00 : f32
    %267 = vector.broadcast %cst_46 : f32 to vector<8x128xf32>
    %268 = arith.addf %267, %266 : vector<8x128xf32>
    %269 = arith.divf %267, %268 : vector<8x128xf32>
    %270 = vector.extract_strided_slice %258 {offsets = [0, 128], sizes = [8, 128], strides = [1, 1]} : vector<8x384xf32> to vector<8x128xf32>
    %271 = vector.extract_strided_slice %261 {offsets = [0, 128], sizes = [8, 128], strides = [1, 1]} : vector<8x384xf32> to vector<8x128xf32>
    %272 = arith.addf %270, %271 : vector<8x128xf32>
    %273 = arith.negf %272 : vector<8x128xf32>
    %274 = math.exp %273 : vector<8x128xf32>
    %cst_47 = arith.constant 1.000000e+00 : f32
    %275 = vector.broadcast %cst_47 : f32 to vector<8x128xf32>
    %276 = arith.addf %275, %274 : vector<8x128xf32>
    %277 = arith.divf %275, %276 : vector<8x128xf32>
    %278 = vector.extract_strided_slice %258 {offsets = [0, 256], sizes = [8, 128], strides = [1, 1]} : vector<8x384xf32> to vector<8x128xf32>
    %279 = vector.extract_strided_slice %261 {offsets = [0, 256], sizes = [8, 128], strides = [1, 1]} : vector<8x384xf32> to vector<8x128xf32>
    %280 = arith.mulf %269, %279 : vector<8x128xf32>
    %281 = arith.addf %278, %280 : vector<8x128xf32>
    %282 = math.tanh %281 : vector<8x128xf32>
    %cst_48 = arith.constant 1.000000e+00 : f32
    %283 = vector.broadcast %cst_48 : f32 to vector<8x128xf32>
    %284 = arith.subf %283, %277 : vector<8x128xf32>
    %285 = arith.mulf %284, %282 : vector<8x128xf32>
    %286 = arith.mulf %277, %219 : vector<8x128xf32>
    %287 = arith.addf %285, %286 : vector<8x128xf32>
    %288 = tpu.concatenate %219, %252 in 1 : vector<8x128xf32>, vector<8x128xf32> -> vector<8x256xf32>
    %289 = arith.truncf %288 : vector<8x256xf32> to vector<8x256xbf16>
    %cst_49 = arith.constant dense<0.000000e+00> : vector<8x768xf32>
    %290 = tpu.matmul %289, %6, %cst_49 {dimension_numbers = #tpu.dot_dimension_numbers<[1], [0], [0], [1], [0, 0, 1, 1], [], []>} : vector<8x256xbf16>, vector<256x768xbf16>, vector<8x768xf32> -> vector<8x768xf32>
    %291 = vector.extract_strided_slice %290 {offsets = [0, 0], sizes = [8, 384], strides = [1, 1]} : vector<8x768xf32> to vector<8x384xf32>
    %292 = arith.addf %291, %13 : vector<8x384xf32>
    %293 = vector.extract_strided_slice %290 {offsets = [0, 384], sizes = [8, 384], strides = [1, 1]} : vector<8x768xf32> to vector<8x384xf32>
    %294 = arith.addf %293, %16 : vector<8x384xf32>
    %295 = vector.extract_strided_slice %292 {offsets = [0, 0], sizes = [8, 128], strides = [1, 1]} : vector<8x384xf32> to vector<8x128xf32>
    %296 = vector.extract_strided_slice %294 {offsets = [0, 0], sizes = [8, 128], strides = [1, 1]} : vector<8x384xf32> to vector<8x128xf32>
    %297 = arith.addf %295, %296 : vector<8x128xf32>
    %298 = arith.negf %297 : vector<8x128xf32>
    %299 = math.exp %298 : vector<8x128xf32>
    %cst_50 = arith.constant 1.000000e+00 : f32
    %300 = vector.broadcast %cst_50 : f32 to vector<8x128xf32>
    %301 = arith.addf %300, %299 : vector<8x128xf32>
    %302 = arith.divf %300, %301 : vector<8x128xf32>
    %303 = vector.extract_strided_slice %292 {offsets = [0, 128], sizes = [8, 128], strides = [1, 1]} : vector<8x384xf32> to vector<8x128xf32>
    %304 = vector.extract_strided_slice %294 {offsets = [0, 128], sizes = [8, 128], strides = [1, 1]} : vector<8x384xf32> to vector<8x128xf32>
    %305 = arith.addf %303, %304 : vector<8x128xf32>
    %306 = arith.negf %305 : vector<8x128xf32>
    %307 = math.exp %306 : vector<8x128xf32>
    %cst_51 = arith.constant 1.000000e+00 : f32
    %308 = vector.broadcast %cst_51 : f32 to vector<8x128xf32>
    %309 = arith.addf %308, %307 : vector<8x128xf32>
    %310 = arith.divf %308, %309 : vector<8x128xf32>
    %311 = vector.extract_strided_slice %292 {offsets = [0, 256], sizes = [8, 128], strides = [1, 1]} : vector<8x384xf32> to vector<8x128xf32>
    %312 = vector.extract_strided_slice %294 {offsets = [0, 256], sizes = [8, 128], strides = [1, 1]} : vector<8x384xf32> to vector<8x128xf32>
    %313 = arith.mulf %302, %312 : vector<8x128xf32>
    %314 = arith.addf %311, %313 : vector<8x128xf32>
    %315 = math.tanh %314 : vector<8x128xf32>
    %cst_52 = arith.constant 1.000000e+00 : f32
    %316 = vector.broadcast %cst_52 : f32 to vector<8x128xf32>
    %317 = arith.subf %316, %310 : vector<8x128xf32>
    %318 = arith.mulf %317, %315 : vector<8x128xf32>
    %319 = arith.mulf %310, %252 : vector<8x128xf32>
    %320 = arith.addf %318, %319 : vector<8x128xf32>
    %c3_i32 = arith.constant 3 : i32
    %321 = vector.broadcast %c3_i32 : i32 to vector<8x1xi32>
    %322 = arith.cmpi eq, %4, %321 : vector<8x1xi32>
    %323 = vector.shape_cast %322 : vector<8x1xi1> to vector<8x1xi1>
    %324 = vector.broadcast %323 : vector<8x1xi1> to vector<8x128xi1>
    %325 = arith.select %324, %320, %257 : vector<8x128xi1>, vector<8x128xf32>
    %326 = vector.extract_strided_slice %22 {offsets = [40, 0], sizes = [8, 384], strides = [1, 1]} : vector<64x384xf32> to vector<8x384xf32>
    %327 = arith.truncf %287 : vector<8x128xf32> to vector<8x128xbf16>
    %cst_53 = arith.constant dense<0.000000e+00> : vector<8x384xf32>
    %328 = tpu.matmul %327, %5, %cst_53 {dimension_numbers = #tpu.dot_dimension_numbers<[1], [0], [0], [1], [0, 0, 1, 1], [], []>} : vector<8x128xbf16>, vector<128x384xbf16>, vector<8x384xf32> -> vector<8x384xf32>
    %329 = arith.addf %328, %10 : vector<8x384xf32>
    %330 = vector.extract_strided_slice %326 {offsets = [0, 0], sizes = [8, 128], strides = [1, 1]} : vector<8x384xf32> to vector<8x128xf32>
    %331 = vector.extract_strided_slice %329 {offsets = [0, 0], sizes = [8, 128], strides = [1, 1]} : vector<8x384xf32> to vector<8x128xf32>
    %332 = arith.addf %330, %331 : vector<8x128xf32>
    %333 = arith.negf %332 : vector<8x128xf32>
    %334 = math.exp %333 : vector<8x128xf32>
    %cst_54 = arith.constant 1.000000e+00 : f32
    %335 = vector.broadcast %cst_54 : f32 to vector<8x128xf32>
    %336 = arith.addf %335, %334 : vector<8x128xf32>
    %337 = arith.divf %335, %336 : vector<8x128xf32>
    %338 = vector.extract_strided_slice %326 {offsets = [0, 128], sizes = [8, 128], strides = [1, 1]} : vector<8x384xf32> to vector<8x128xf32>
    %339 = vector.extract_strided_slice %329 {offsets = [0, 128], sizes = [8, 128], strides = [1, 1]} : vector<8x384xf32> to vector<8x128xf32>
    %340 = arith.addf %338, %339 : vector<8x128xf32>
    %341 = arith.negf %340 : vector<8x128xf32>
    %342 = math.exp %341 : vector<8x128xf32>
    %cst_55 = arith.constant 1.000000e+00 : f32
    %343 = vector.broadcast %cst_55 : f32 to vector<8x128xf32>
    %344 = arith.addf %343, %342 : vector<8x128xf32>
    %345 = arith.divf %343, %344 : vector<8x128xf32>
    %346 = vector.extract_strided_slice %326 {offsets = [0, 256], sizes = [8, 128], strides = [1, 1]} : vector<8x384xf32> to vector<8x128xf32>
    %347 = vector.extract_strided_slice %329 {offsets = [0, 256], sizes = [8, 128], strides = [1, 1]} : vector<8x384xf32> to vector<8x128xf32>
    %348 = arith.mulf %337, %347 : vector<8x128xf32>
    %349 = arith.addf %346, %348 : vector<8x128xf32>
    %350 = math.tanh %349 : vector<8x128xf32>
    %cst_56 = arith.constant 1.000000e+00 : f32
    %351 = vector.broadcast %cst_56 : f32 to vector<8x128xf32>
    %352 = arith.subf %351, %345 : vector<8x128xf32>
    %353 = arith.mulf %352, %350 : vector<8x128xf32>
    %354 = arith.mulf %345, %287 : vector<8x128xf32>
    %355 = arith.addf %353, %354 : vector<8x128xf32>
    %356 = tpu.concatenate %287, %320 in 1 : vector<8x128xf32>, vector<8x128xf32> -> vector<8x256xf32>
    %357 = arith.truncf %356 : vector<8x256xf32> to vector<8x256xbf16>
    %cst_57 = arith.constant dense<0.000000e+00> : vector<8x768xf32>
    %358 = tpu.matmul %357, %6, %cst_57 {dimension_numbers = #tpu.dot_dimension_numbers<[1], [0], [0], [1], [0, 0, 1, 1], [], []>} : vector<8x256xbf16>, vector<256x768xbf16>, vector<8x768xf32> -> vector<8x768xf32>
    %359 = vector.extract_strided_slice %358 {offsets = [0, 0], sizes = [8, 384], strides = [1, 1]} : vector<8x768xf32> to vector<8x384xf32>
    %360 = arith.addf %359, %13 : vector<8x384xf32>
    %361 = vector.extract_strided_slice %358 {offsets = [0, 384], sizes = [8, 384], strides = [1, 1]} : vector<8x768xf32> to vector<8x384xf32>
    %362 = arith.addf %361, %16 : vector<8x384xf32>
    %363 = vector.extract_strided_slice %360 {offsets = [0, 0], sizes = [8, 128], strides = [1, 1]} : vector<8x384xf32> to vector<8x128xf32>
    %364 = vector.extract_strided_slice %362 {offsets = [0, 0], sizes = [8, 128], strides = [1, 1]} : vector<8x384xf32> to vector<8x128xf32>
    %365 = arith.addf %363, %364 : vector<8x128xf32>
    %366 = arith.negf %365 : vector<8x128xf32>
    %367 = math.exp %366 : vector<8x128xf32>
    %cst_58 = arith.constant 1.000000e+00 : f32
    %368 = vector.broadcast %cst_58 : f32 to vector<8x128xf32>
    %369 = arith.addf %368, %367 : vector<8x128xf32>
    %370 = arith.divf %368, %369 : vector<8x128xf32>
    %371 = vector.extract_strided_slice %360 {offsets = [0, 128], sizes = [8, 128], strides = [1, 1]} : vector<8x384xf32> to vector<8x128xf32>
    %372 = vector.extract_strided_slice %362 {offsets = [0, 128], sizes = [8, 128], strides = [1, 1]} : vector<8x384xf32> to vector<8x128xf32>
    %373 = arith.addf %371, %372 : vector<8x128xf32>
    %374 = arith.negf %373 : vector<8x128xf32>
    %375 = math.exp %374 : vector<8x128xf32>
    %cst_59 = arith.constant 1.000000e+00 : f32
    %376 = vector.broadcast %cst_59 : f32 to vector<8x128xf32>
    %377 = arith.addf %376, %375 : vector<8x128xf32>
    %378 = arith.divf %376, %377 : vector<8x128xf32>
    %379 = vector.extract_strided_slice %360 {offsets = [0, 256], sizes = [8, 128], strides = [1, 1]} : vector<8x384xf32> to vector<8x128xf32>
    %380 = vector.extract_strided_slice %362 {offsets = [0, 256], sizes = [8, 128], strides = [1, 1]} : vector<8x384xf32> to vector<8x128xf32>
    %381 = arith.mulf %370, %380 : vector<8x128xf32>
    %382 = arith.addf %379, %381 : vector<8x128xf32>
    %383 = math.tanh %382 : vector<8x128xf32>
    %cst_60 = arith.constant 1.000000e+00 : f32
    %384 = vector.broadcast %cst_60 : f32 to vector<8x128xf32>
    %385 = arith.subf %384, %378 : vector<8x128xf32>
    %386 = arith.mulf %385, %383 : vector<8x128xf32>
    %387 = arith.mulf %378, %320 : vector<8x128xf32>
    %388 = arith.addf %386, %387 : vector<8x128xf32>
    %c4_i32 = arith.constant 4 : i32
    %389 = vector.broadcast %c4_i32 : i32 to vector<8x1xi32>
    %390 = arith.cmpi eq, %4, %389 : vector<8x1xi32>
    %391 = vector.shape_cast %390 : vector<8x1xi1> to vector<8x1xi1>
    %392 = vector.broadcast %391 : vector<8x1xi1> to vector<8x128xi1>
    %393 = arith.select %392, %388, %325 : vector<8x128xi1>, vector<8x128xf32>
    %394 = vector.extract_strided_slice %22 {offsets = [48, 0], sizes = [8, 384], strides = [1, 1]} : vector<64x384xf32> to vector<8x384xf32>
    %395 = arith.truncf %355 : vector<8x128xf32> to vector<8x128xbf16>
    %cst_61 = arith.constant dense<0.000000e+00> : vector<8x384xf32>
    %396 = tpu.matmul %395, %5, %cst_61 {dimension_numbers = #tpu.dot_dimension_numbers<[1], [0], [0], [1], [0, 0, 1, 1], [], []>} : vector<8x128xbf16>, vector<128x384xbf16>, vector<8x384xf32> -> vector<8x384xf32>
    %397 = arith.addf %396, %10 : vector<8x384xf32>
    %398 = vector.extract_strided_slice %394 {offsets = [0, 0], sizes = [8, 128], strides = [1, 1]} : vector<8x384xf32> to vector<8x128xf32>
    %399 = vector.extract_strided_slice %397 {offsets = [0, 0], sizes = [8, 128], strides = [1, 1]} : vector<8x384xf32> to vector<8x128xf32>
    %400 = arith.addf %398, %399 : vector<8x128xf32>
    %401 = arith.negf %400 : vector<8x128xf32>
    %402 = math.exp %401 : vector<8x128xf32>
    %cst_62 = arith.constant 1.000000e+00 : f32
    %403 = vector.broadcast %cst_62 : f32 to vector<8x128xf32>
    %404 = arith.addf %403, %402 : vector<8x128xf32>
    %405 = arith.divf %403, %404 : vector<8x128xf32>
    %406 = vector.extract_strided_slice %394 {offsets = [0, 128], sizes = [8, 128], strides = [1, 1]} : vector<8x384xf32> to vector<8x128xf32>
    %407 = vector.extract_strided_slice %397 {offsets = [0, 128], sizes = [8, 128], strides = [1, 1]} : vector<8x384xf32> to vector<8x128xf32>
    %408 = arith.addf %406, %407 : vector<8x128xf32>
    %409 = arith.negf %408 : vector<8x128xf32>
    %410 = math.exp %409 : vector<8x128xf32>
    %cst_63 = arith.constant 1.000000e+00 : f32
    %411 = vector.broadcast %cst_63 : f32 to vector<8x128xf32>
    %412 = arith.addf %411, %410 : vector<8x128xf32>
    %413 = arith.divf %411, %412 : vector<8x128xf32>
    %414 = vector.extract_strided_slice %394 {offsets = [0, 256], sizes = [8, 128], strides = [1, 1]} : vector<8x384xf32> to vector<8x128xf32>
    %415 = vector.extract_strided_slice %397 {offsets = [0, 256], sizes = [8, 128], strides = [1, 1]} : vector<8x384xf32> to vector<8x128xf32>
    %416 = arith.mulf %405, %415 : vector<8x128xf32>
    %417 = arith.addf %414, %416 : vector<8x128xf32>
    %418 = math.tanh %417 : vector<8x128xf32>
    %cst_64 = arith.constant 1.000000e+00 : f32
    %419 = vector.broadcast %cst_64 : f32 to vector<8x128xf32>
    %420 = arith.subf %419, %413 : vector<8x128xf32>
    %421 = arith.mulf %420, %418 : vector<8x128xf32>
    %422 = arith.mulf %413, %355 : vector<8x128xf32>
    %423 = arith.addf %421, %422 : vector<8x128xf32>
    %424 = tpu.concatenate %355, %388 in 1 : vector<8x128xf32>, vector<8x128xf32> -> vector<8x256xf32>
    %425 = arith.truncf %424 : vector<8x256xf32> to vector<8x256xbf16>
    %cst_65 = arith.constant dense<0.000000e+00> : vector<8x768xf32>
    %426 = tpu.matmul %425, %6, %cst_65 {dimension_numbers = #tpu.dot_dimension_numbers<[1], [0], [0], [1], [0, 0, 1, 1], [], []>} : vector<8x256xbf16>, vector<256x768xbf16>, vector<8x768xf32> -> vector<8x768xf32>
    %427 = vector.extract_strided_slice %426 {offsets = [0, 0], sizes = [8, 384], strides = [1, 1]} : vector<8x768xf32> to vector<8x384xf32>
    %428 = arith.addf %427, %13 : vector<8x384xf32>
    %429 = vector.extract_strided_slice %426 {offsets = [0, 384], sizes = [8, 384], strides = [1, 1]} : vector<8x768xf32> to vector<8x384xf32>
    %430 = arith.addf %429, %16 : vector<8x384xf32>
    %431 = vector.extract_strided_slice %428 {offsets = [0, 0], sizes = [8, 128], strides = [1, 1]} : vector<8x384xf32> to vector<8x128xf32>
    %432 = vector.extract_strided_slice %430 {offsets = [0, 0], sizes = [8, 128], strides = [1, 1]} : vector<8x384xf32> to vector<8x128xf32>
    %433 = arith.addf %431, %432 : vector<8x128xf32>
    %434 = arith.negf %433 : vector<8x128xf32>
    %435 = math.exp %434 : vector<8x128xf32>
    %cst_66 = arith.constant 1.000000e+00 : f32
    %436 = vector.broadcast %cst_66 : f32 to vector<8x128xf32>
    %437 = arith.addf %436, %435 : vector<8x128xf32>
    %438 = arith.divf %436, %437 : vector<8x128xf32>
    %439 = vector.extract_strided_slice %428 {offsets = [0, 128], sizes = [8, 128], strides = [1, 1]} : vector<8x384xf32> to vector<8x128xf32>
    %440 = vector.extract_strided_slice %430 {offsets = [0, 128], sizes = [8, 128], strides = [1, 1]} : vector<8x384xf32> to vector<8x128xf32>
    %441 = arith.addf %439, %440 : vector<8x128xf32>
    %442 = arith.negf %441 : vector<8x128xf32>
    %443 = math.exp %442 : vector<8x128xf32>
    %cst_67 = arith.constant 1.000000e+00 : f32
    %444 = vector.broadcast %cst_67 : f32 to vector<8x128xf32>
    %445 = arith.addf %444, %443 : vector<8x128xf32>
    %446 = arith.divf %444, %445 : vector<8x128xf32>
    %447 = vector.extract_strided_slice %428 {offsets = [0, 256], sizes = [8, 128], strides = [1, 1]} : vector<8x384xf32> to vector<8x128xf32>
    %448 = vector.extract_strided_slice %430 {offsets = [0, 256], sizes = [8, 128], strides = [1, 1]} : vector<8x384xf32> to vector<8x128xf32>
    %449 = arith.mulf %438, %448 : vector<8x128xf32>
    %450 = arith.addf %447, %449 : vector<8x128xf32>
    %451 = math.tanh %450 : vector<8x128xf32>
    %cst_68 = arith.constant 1.000000e+00 : f32
    %452 = vector.broadcast %cst_68 : f32 to vector<8x128xf32>
    %453 = arith.subf %452, %446 : vector<8x128xf32>
    %454 = arith.mulf %453, %451 : vector<8x128xf32>
    %455 = arith.mulf %446, %388 : vector<8x128xf32>
    %456 = arith.addf %454, %455 : vector<8x128xf32>
    %c5_i32 = arith.constant 5 : i32
    %457 = vector.broadcast %c5_i32 : i32 to vector<8x1xi32>
    %458 = arith.cmpi eq, %4, %457 : vector<8x1xi32>
    %459 = vector.shape_cast %458 : vector<8x1xi1> to vector<8x1xi1>
    %460 = vector.broadcast %459 : vector<8x1xi1> to vector<8x128xi1>
    %461 = arith.select %460, %456, %393 : vector<8x128xi1>, vector<8x128xf32>
    %462 = vector.extract_strided_slice %22 {offsets = [56, 0], sizes = [8, 384], strides = [1, 1]} : vector<64x384xf32> to vector<8x384xf32>
    %463 = arith.truncf %423 : vector<8x128xf32> to vector<8x128xbf16>
    %cst_69 = arith.constant dense<0.000000e+00> : vector<8x384xf32>
    %464 = tpu.matmul %463, %5, %cst_69 {dimension_numbers = #tpu.dot_dimension_numbers<[1], [0], [0], [1], [0, 0, 1, 1], [], []>} : vector<8x128xbf16>, vector<128x384xbf16>, vector<8x384xf32> -> vector<8x384xf32>
    %465 = arith.addf %464, %10 : vector<8x384xf32>
    %466 = vector.extract_strided_slice %462 {offsets = [0, 0], sizes = [8, 128], strides = [1, 1]} : vector<8x384xf32> to vector<8x128xf32>
    %467 = vector.extract_strided_slice %465 {offsets = [0, 0], sizes = [8, 128], strides = [1, 1]} : vector<8x384xf32> to vector<8x128xf32>
    %468 = arith.addf %466, %467 : vector<8x128xf32>
    %469 = arith.negf %468 : vector<8x128xf32>
    %470 = math.exp %469 : vector<8x128xf32>
    %cst_70 = arith.constant 1.000000e+00 : f32
    %471 = vector.broadcast %cst_70 : f32 to vector<8x128xf32>
    %472 = arith.addf %471, %470 : vector<8x128xf32>
    %473 = arith.divf %471, %472 : vector<8x128xf32>
    %474 = vector.extract_strided_slice %462 {offsets = [0, 128], sizes = [8, 128], strides = [1, 1]} : vector<8x384xf32> to vector<8x128xf32>
    %475 = vector.extract_strided_slice %465 {offsets = [0, 128], sizes = [8, 128], strides = [1, 1]} : vector<8x384xf32> to vector<8x128xf32>
    %476 = arith.addf %474, %475 : vector<8x128xf32>
    %477 = arith.negf %476 : vector<8x128xf32>
    %478 = math.exp %477 : vector<8x128xf32>
    %cst_71 = arith.constant 1.000000e+00 : f32
    %479 = vector.broadcast %cst_71 : f32 to vector<8x128xf32>
    %480 = arith.addf %479, %478 : vector<8x128xf32>
    %481 = arith.divf %479, %480 : vector<8x128xf32>
    %482 = vector.extract_strided_slice %462 {offsets = [0, 256], sizes = [8, 128], strides = [1, 1]} : vector<8x384xf32> to vector<8x128xf32>
    %483 = vector.extract_strided_slice %465 {offsets = [0, 256], sizes = [8, 128], strides = [1, 1]} : vector<8x384xf32> to vector<8x128xf32>
    %484 = arith.mulf %473, %483 : vector<8x128xf32>
    %485 = arith.addf %482, %484 : vector<8x128xf32>
    %486 = math.tanh %485 : vector<8x128xf32>
    %cst_72 = arith.constant 1.000000e+00 : f32
    %487 = vector.broadcast %cst_72 : f32 to vector<8x128xf32>
    %488 = arith.subf %487, %481 : vector<8x128xf32>
    %489 = arith.mulf %488, %486 : vector<8x128xf32>
    %490 = arith.mulf %481, %423 : vector<8x128xf32>
    %491 = arith.addf %489, %490 : vector<8x128xf32>
    %492 = tpu.concatenate %423, %456 in 1 : vector<8x128xf32>, vector<8x128xf32> -> vector<8x256xf32>
    %493 = arith.truncf %492 : vector<8x256xf32> to vector<8x256xbf16>
    %cst_73 = arith.constant dense<0.000000e+00> : vector<8x768xf32>
    %494 = tpu.matmul %493, %6, %cst_73 {dimension_numbers = #tpu.dot_dimension_numbers<[1], [0], [0], [1], [0, 0, 1, 1], [], []>} : vector<8x256xbf16>, vector<256x768xbf16>, vector<8x768xf32> -> vector<8x768xf32>
    %495 = vector.extract_strided_slice %494 {offsets = [0, 0], sizes = [8, 384], strides = [1, 1]} : vector<8x768xf32> to vector<8x384xf32>
    %496 = arith.addf %495, %13 : vector<8x384xf32>
    %497 = vector.extract_strided_slice %494 {offsets = [0, 384], sizes = [8, 384], strides = [1, 1]} : vector<8x768xf32> to vector<8x384xf32>
    %498 = arith.addf %497, %16 : vector<8x384xf32>
    %499 = vector.extract_strided_slice %496 {offsets = [0, 0], sizes = [8, 128], strides = [1, 1]} : vector<8x384xf32> to vector<8x128xf32>
    %500 = vector.extract_strided_slice %498 {offsets = [0, 0], sizes = [8, 128], strides = [1, 1]} : vector<8x384xf32> to vector<8x128xf32>
    %501 = arith.addf %499, %500 : vector<8x128xf32>
    %502 = arith.negf %501 : vector<8x128xf32>
    %503 = math.exp %502 : vector<8x128xf32>
    %cst_74 = arith.constant 1.000000e+00 : f32
    %504 = vector.broadcast %cst_74 : f32 to vector<8x128xf32>
    %505 = arith.addf %504, %503 : vector<8x128xf32>
    %506 = arith.divf %504, %505 : vector<8x128xf32>
    %507 = vector.extract_strided_slice %496 {offsets = [0, 128], sizes = [8, 128], strides = [1, 1]} : vector<8x384xf32> to vector<8x128xf32>
    %508 = vector.extract_strided_slice %498 {offsets = [0, 128], sizes = [8, 128], strides = [1, 1]} : vector<8x384xf32> to vector<8x128xf32>
    %509 = arith.addf %507, %508 : vector<8x128xf32>
    %510 = arith.negf %509 : vector<8x128xf32>
    %511 = math.exp %510 : vector<8x128xf32>
    %cst_75 = arith.constant 1.000000e+00 : f32
    %512 = vector.broadcast %cst_75 : f32 to vector<8x128xf32>
    %513 = arith.addf %512, %511 : vector<8x128xf32>
    %514 = arith.divf %512, %513 : vector<8x128xf32>
    %515 = vector.extract_strided_slice %496 {offsets = [0, 256], sizes = [8, 128], strides = [1, 1]} : vector<8x384xf32> to vector<8x128xf32>
    %516 = vector.extract_strided_slice %498 {offsets = [0, 256], sizes = [8, 128], strides = [1, 1]} : vector<8x384xf32> to vector<8x128xf32>
    %517 = arith.mulf %506, %516 : vector<8x128xf32>
    %518 = arith.addf %515, %517 : vector<8x128xf32>
    %519 = math.tanh %518 : vector<8x128xf32>
    %cst_76 = arith.constant 1.000000e+00 : f32
    %520 = vector.broadcast %cst_76 : f32 to vector<8x128xf32>
    %521 = arith.subf %520, %514 : vector<8x128xf32>
    %522 = arith.mulf %521, %519 : vector<8x128xf32>
    %523 = arith.mulf %514, %456 : vector<8x128xf32>
    %524 = arith.addf %522, %523 : vector<8x128xf32>
    %c6_i32 = arith.constant 6 : i32
    %525 = vector.broadcast %c6_i32 : i32 to vector<8x1xi32>
    %526 = arith.cmpi eq, %4, %525 : vector<8x1xi32>
    %527 = vector.shape_cast %526 : vector<8x1xi1> to vector<8x1xi1>
    %528 = vector.broadcast %527 : vector<8x1xi1> to vector<8x128xi1>
    %529 = arith.select %528, %524, %461 : vector<8x128xi1>, vector<8x128xf32>
    %530 = tpu.concatenate %491, %524 in 1 : vector<8x128xf32>, vector<8x128xf32> -> vector<8x256xf32>
    %531 = arith.truncf %530 : vector<8x256xf32> to vector<8x256xbf16>
    %cst_77 = arith.constant dense<0.000000e+00> : vector<8x768xf32>
    %532 = tpu.matmul %531, %6, %cst_77 {dimension_numbers = #tpu.dot_dimension_numbers<[1], [0], [0], [1], [0, 0, 1, 1], [], []>} : vector<8x256xbf16>, vector<256x768xbf16>, vector<8x768xf32> -> vector<8x768xf32>
    %533 = vector.extract_strided_slice %532 {offsets = [0, 0], sizes = [8, 384], strides = [1, 1]} : vector<8x768xf32> to vector<8x384xf32>
    %534 = arith.addf %533, %13 : vector<8x384xf32>
    %535 = vector.extract_strided_slice %532 {offsets = [0, 384], sizes = [8, 384], strides = [1, 1]} : vector<8x768xf32> to vector<8x384xf32>
    %536 = arith.addf %535, %16 : vector<8x384xf32>
    %537 = vector.extract_strided_slice %534 {offsets = [0, 0], sizes = [8, 128], strides = [1, 1]} : vector<8x384xf32> to vector<8x128xf32>
    %538 = vector.extract_strided_slice %536 {offsets = [0, 0], sizes = [8, 128], strides = [1, 1]} : vector<8x384xf32> to vector<8x128xf32>
    %539 = arith.addf %537, %538 : vector<8x128xf32>
    %540 = arith.negf %539 : vector<8x128xf32>
    %541 = math.exp %540 : vector<8x128xf32>
    %cst_78 = arith.constant 1.000000e+00 : f32
    %542 = vector.broadcast %cst_78 : f32 to vector<8x128xf32>
    %543 = arith.addf %542, %541 : vector<8x128xf32>
    %544 = arith.divf %542, %543 : vector<8x128xf32>
    %545 = vector.extract_strided_slice %534 {offsets = [0, 128], sizes = [8, 128], strides = [1, 1]} : vector<8x384xf32> to vector<8x128xf32>
    %546 = vector.extract_strided_slice %536 {offsets = [0, 128], sizes = [8, 128], strides = [1, 1]} : vector<8x384xf32> to vector<8x128xf32>
    %547 = arith.addf %545, %546 : vector<8x128xf32>
    %548 = arith.negf %547 : vector<8x128xf32>
    %549 = math.exp %548 : vector<8x128xf32>
    %cst_79 = arith.constant 1.000000e+00 : f32
    %550 = vector.broadcast %cst_79 : f32 to vector<8x128xf32>
    %551 = arith.addf %550, %549 : vector<8x128xf32>
    %552 = arith.divf %550, %551 : vector<8x128xf32>
    %553 = vector.extract_strided_slice %534 {offsets = [0, 256], sizes = [8, 128], strides = [1, 1]} : vector<8x384xf32> to vector<8x128xf32>
    %554 = vector.extract_strided_slice %536 {offsets = [0, 256], sizes = [8, 128], strides = [1, 1]} : vector<8x384xf32> to vector<8x128xf32>
    %555 = arith.mulf %544, %554 : vector<8x128xf32>
    %556 = arith.addf %553, %555 : vector<8x128xf32>
    %557 = math.tanh %556 : vector<8x128xf32>
    %cst_80 = arith.constant 1.000000e+00 : f32
    %558 = vector.broadcast %cst_80 : f32 to vector<8x128xf32>
    %559 = arith.subf %558, %552 : vector<8x128xf32>
    %560 = arith.mulf %559, %557 : vector<8x128xf32>
    %561 = arith.mulf %552, %524 : vector<8x128xf32>
    %562 = arith.addf %560, %561 : vector<8x128xf32>
    %c7_i32_81 = arith.constant 7 : i32
    %563 = vector.broadcast %c7_i32_81 : i32 to vector<8x1xi32>
    %564 = arith.cmpi eq, %4, %563 : vector<8x1xi32>
    %565 = vector.shape_cast %564 : vector<8x1xi1> to vector<8x1xi1>
    %566 = vector.broadcast %565 : vector<8x1xi1> to vector<8x128xi1>
    %567 = arith.select %566, %562, %529 : vector<8x128xi1>, vector<8x128xf32>
    %568 = arith.truncf %567 : vector<8x128xf32> to vector<8x128xbf16>
    %c0_82 = arith.constant 0 : index
    %c0_83 = arith.constant 0 : index
    %569 = vector.load %arg7[%c0_82, %c0_83] : memref<128x16xbf16, #tpu.memory_space<vmem>>, vector<128x16xbf16>
    %cst_84 = arith.constant dense<0.000000e+00> : vector<8x16xf32>
    %570 = tpu.matmul %568, %569, %cst_84 {dimension_numbers = #tpu.dot_dimension_numbers<[1], [0], [0], [1], [0, 0, 1, 1], [], []>} : vector<8x128xbf16>, vector<128x16xbf16>, vector<8x16xf32> -> vector<8x16xf32>
    %c0_85 = arith.constant 0 : index
    %c0_86 = arith.constant 0 : index
    %571 = vector.load %arg8[%c0_85, %c0_86] : memref<1x16xf32, #tpu.memory_space<vmem>>, vector<1x16xf32>
    %572 = vector.broadcast %571 : vector<1x16xf32> to vector<8x16xf32>
    %573 = arith.addf %570, %572 : vector<8x16xf32>
    %cst_87 = arith.constant 0.000000e+00 : f32
    %574 = vector.broadcast %cst_87 : f32 to vector<8x16xf32>
    %575 = arith.maximumf %573, %574 : vector<8x16xf32>
    %576 = arith.truncf %575 : vector<8x16xf32> to vector<8x16xbf16>
    %c0_88 = arith.constant 0 : index
    %c0_89 = arith.constant 0 : index
    %577 = vector.load %arg9[%c0_88, %c0_89] : memref<16x8xbf16, #tpu.memory_space<vmem>>, vector<16x8xbf16>
    %cst_90 = arith.constant dense<0.000000e+00> : vector<8x8xf32>
    %578 = tpu.matmul %576, %577, %cst_90 {dimension_numbers = #tpu.dot_dimension_numbers<[1], [0], [0], [1], [0, 0, 1, 1], [], []>} : vector<8x16xbf16>, vector<16x8xbf16>, vector<8x8xf32> -> vector<8x8xf32>
    %c0_91 = arith.constant 0 : index
    %c0_92 = arith.constant 0 : index
    %579 = vector.load %arg10[%c0_91, %c0_92] : memref<1x8xf32, #tpu.memory_space<vmem>>, vector<1x8xf32>
    %580 = vector.broadcast %579 : vector<1x8xf32> to vector<8x8xf32>
    %581 = arith.addf %578, %580 : vector<8x8xf32>
    %cst_93 = arith.constant 0.000000e+00 : f32
    %582 = vector.broadcast %cst_93 : f32 to vector<8x8xf32>
    %583 = arith.maximumf %581, %582 : vector<8x8xf32>
    %584 = arith.truncf %583 : vector<8x8xf32> to vector<8x8xbf16>
    %c0_94 = arith.constant 0 : index
    %c0_95 = arith.constant 0 : index
    %585 = vector.load %arg11[%c0_94, %c0_95] : memref<8x1xbf16, #tpu.memory_space<vmem>>, vector<8x1xbf16>
    %cst_96 = arith.constant dense<0.000000e+00> : vector<8x1xf32>
    %586 = tpu.matmul %584, %585, %cst_96 {dimension_numbers = #tpu.dot_dimension_numbers<[1], [0], [0], [1], [0, 0, 1, 1], [], []>} : vector<8x8xbf16>, vector<8x1xbf16>, vector<8x1xf32> -> vector<8x1xf32>
    %c0_97 = arith.constant 0 : index
    %c0_98 = arith.constant 0 : index
    %587 = vector.load %arg12[%c0_97, %c0_98] : memref<1x1xf32, #tpu.memory_space<vmem>>, vector<1x1xf32>
    %588 = vector.broadcast %587 : vector<1x1xf32> to vector<8x1xf32>
    %589 = arith.addf %586, %588 : vector<8x1xf32>
    %c0_99 = arith.constant 0 : index
    %c0_100 = arith.constant 0 : index
    %590 = vector.load %arg13[%c0_99, %c0_100] : memref<8x1xf32, #tpu.memory_space<vmem>>, vector<8x1xf32>
    tpu.vector_store %arg13[%c0_99, %c0_100], %589 {strides = array<i32>} : memref<8x1xf32, #tpu.memory_space<vmem>>, vector<8x1xf32>,
    return
  }
  func.func @transform_0(%arg0: i32) -> (i32, i32) {
    %c0_i32 = arith.constant 0 : i32
    %c0_i32_0 = arith.constant 0 : i32
    return %arg0, %c0_i32 : i32, i32
  }
  func.func @transform_1(%arg0: i32) -> (i32, i32, i32) {
    %c0_i32 = arith.constant 0 : i32
    %c0_i32_0 = arith.constant 0 : i32
    %c0_i32_1 = arith.constant 0 : i32
    return %c0_i32, %arg0, %c0_i32_0 : i32, i32, i32
  }
  func.func @transform_2(%arg0: i32) -> (i32, i32) {
    %c0_i32 = arith.constant 0 : i32
    %c0_i32_0 = arith.constant 0 : i32
    %c0_i32_1 = arith.constant 0 : i32
    return %c0_i32, %c0_i32_0 : i32, i32
  }
  func.func @transform_3(%arg0: i32) -> (i32, i32) {
    %c0_i32 = arith.constant 0 : i32
    %c0_i32_0 = arith.constant 0 : i32
    %c0_i32_1 = arith.constant 0 : i32
    return %c0_i32, %c0_i32_0 : i32, i32
  }
  func.func @transform_4(%arg0: i32) -> (i32, i32) {
    %c0_i32 = arith.constant 0 : i32
    %c0_i32_0 = arith.constant 0 : i32
    %c0_i32_1 = arith.constant 0 : i32
    return %c0_i32, %c0_i32_0 : i32, i32
  }
  func.func @transform_5(%arg0: i32) -> (i32, i32) {
    %c0_i32 = arith.constant 0 : i32
    %c0_i32_0 = arith.constant 0 : i32
    %c0_i32_1 = arith.constant 0 : i32
    return %c0_i32, %c0_i32_0 : i32, i32
  }
  func.func @transform_6(%arg0: i32) -> (i32, i32) {
    %c0_i32 = arith.constant 0 : i32
    %c0_i32_0 = arith.constant 0 : i32
    %c0_i32_1 = arith.constant 0 : i32
    return %c0_i32, %c0_i32_0 : i32, i32
  }
  func.func @transform_7(%arg0: i32) -> (i32, i32) {
    %c0_i32 = arith.constant 0 : i32
    %c0_i32_0 = arith.constant 0 : i32
    %c0_i32_1 = arith.constant 0 : i32
    return %c0_i32, %c0_i32_0 : i32, i32
  }
  func.func @transform_8(%arg0: i32) -> (i32, i32) {
    %c0_i32 = arith.constant 0 : i32
    %c0_i32_0 = arith.constant 0 : i32
    %c0_i32_1 = arith.constant 0 : i32
    return %c0_i32, %c0_i32_0 : i32, i32
  }
  func.func @transform_9(%arg0: i32) -> (i32, i32) {
    %c0_i32 = arith.constant 0 : i32
    %c0_i32_0 = arith.constant 0 : i32
    %c0_i32_1 = arith.constant 0 : i32
    return %c0_i32, %c0_i32_0 : i32, i32
  }
  func.func @transform_10(%arg0: i32) -> (i32, i32) {
    %c0_i32 = arith.constant 0 : i32
    %c0_i32_0 = arith.constant 0 : i32
    %c0_i32_1 = arith.constant 0 : i32
    return %c0_i32, %c0_i32_0 : i32, i32
  }
  func.func @transform_11(%arg0: i32) -> (i32, i32) {
    %c0_i32 = arith.constant 0 : i32
    %c0_i32_0 = arith.constant 0 : i32
    %c0_i32_1 = arith.constant 0 : i32
    return %c0_i32, %c0_i32_0 : i32, i32
  }
  func.func @transform_12(%arg0: i32) -> (i32, i32) {
    %c0_i32 = arith.constant 0 : i32
    %c0_i32_0 = arith.constant 0 : i32
    return %arg0, %c0_i32 : i32, i32
  }
}

</mosaic_0001>

<llo_original>
// kernel: tpu_custom_call.1
$region0: #{tpu_custom_call.1}
  #allocation0 [shape = 'u32[]', space=smem, size = 0x4, offset = 0x4, fixed_abs, tag = 'smem constant byte address 0x4 - core index']
  #allocation1 [shape = 'u32[144,128]{1,0:T(1,128)}', space=vmem, size = 0x12000, scoped, tag = 'internal scratch']
  #allocation2 [shape = 'f32[1,1]{1,0:T(1,128)S(1)}', space=vmem, size = 0x200, scoped, tag = 'scoped memory for tpu_custom_call.1']
  %s0 = inlined_call_operand.vmem [shape: s32[8,1], index: 0, kind: input, shape index: {}]
  %s1 = inlined_call_operand.vmem [shape: bf16[8,8,32], index: 1, kind: input, shape index: {}]
  %s2 = inlined_call_operand.vmem [shape: bf16[32,384], index: 2, kind: input, shape index: {}]
  %s3 = inlined_call_operand.hbm [shape: bf16[128,384], index: 3, kind: input, shape index: {}]
  %s4 = inlined_call_operand.hbm [shape: bf16[256,768], index: 4, kind: input, shape index: {}]
  %s5 = inlined_call_operand.vmem [shape: f32[4,384], index: 5, kind: input, shape index: {}]
  %s6 = inlined_call_operand.vmem [shape: bf16[128,16], index: 6, kind: input, shape index: {}]
  %s7 = inlined_call_operand.vmem [shape: f32[1,16], index: 7, kind: input, shape index: {}]
  %s8 = inlined_call_operand.vmem [shape: bf16[16,8], index: 8, kind: input, shape index: {}]
  %s9 = inlined_call_operand.vmem [shape: f32[1,8], index: 9, kind: input, shape index: {}]
  %s10 = inlined_call_operand.vmem [shape: bf16[8,1], index: 10, kind: input, shape index: {}]
  %s11 = inlined_call_operand.<no memory space> [shape: f32[1,1], index: 11, kind: input, shape index: {}]
  %s12 = inlined_call_operand.vmem [shape: f32[8,1], index: 12, kind: output, shape index: {}]
  %s13 = sld [smem:[#allocation0]]
  $region66: #{tpu_custom_call.1} parent=0
    _
  %s15 = ssub.s32 1, %s13
  %s16 = scalar_select 0, %s15, %s13
  %v17 = vstv %s11
  %18 = vst [vmem:[#allocation2] sm:$0x1] %v17
  $region1: #{tpu_custom_call.1} parent=0
    #allocation3 [shape = 'u8[98304]{0}', space=vmem, size = 0x18000, scoped, tag = 'input window, operand 3, single buffered']
    #allocation4 [shape = 's32[1]{0}', space=sflag, size = 0x4, scoped, tag = 'scoped memory for tpu_custom_call.1']
    #allocation5 [shape = 'u8[393216]{0}', space=vmem, size = 0x60000, scoped, tag = 'input window, operand 4, single buffered']
    #allocation6 [shape = 's32[1]{0}', space=sflag, size = 0x4, scoped, tag = 'scoped memory for tpu_custom_call.1']
    %19 = vsyncpa [#allocation4], 0
    %20 = vsyncpa [#allocation6], 0
    // Predicated region
    $region2: #{tpu_custom_call.1} parent=1 // pred_check
      _
    $region3: #{tpu_custom_call.1} parent=1 // pred_check_branch
      %22 = sbr.rel (0) target = $region5
    $region4: #{tpu_custom_call.1} parent=1 // pred_region
      _
    $region5: #{tpu_custom_call.1} parent=1 // pred_fallthru
      _
    // Predicated region
    $region6: #{tpu_custom_call.1} parent=1 // pred_check
      _
    $region7: #{tpu_custom_call.1} parent=1 // pred_check_branch
      %24 = sbr.rel (0) target = $region9
    $region8: #{tpu_custom_call.1} parent=1 // pred_region
      _
    $region9: #{tpu_custom_call.1} parent=1 // pred_fallthru
      _
    // Predicated region
    $region10: #{tpu_custom_call.1} parent=1 // pred_check
      _
    $region11: #{tpu_custom_call.1} parent=1 // pred_check_branch
      %26 = sbr.rel (0) target = $region13
    $region12: #{tpu_custom_call.1} parent=1 // pred_region
      _
    $region13: #{tpu_custom_call.1} parent=1 // pred_fallthru
      _
    // Predicated region
    $region14: #{tpu_custom_call.1} parent=1 // pred_check
      _
    $region15: #{tpu_custom_call.1} parent=1 // pred_check_branch
      %28 = sbr.rel (0) target = $region17
    $region16: #{tpu_custom_call.1} parent=1 // pred_region
      %s30 = ssub.s32 3072, 3072
      %31 = vsyncadd [#allocation4], %s30
      %s32 = sshll.u32 [#allocation3], 4
      %s33 = int_to_ptr.vmem [resolvable:$true] %s32
      %38 = dma.hbm_to_vmem [thread:$0]  %s3, 3072, %s33, [#allocation4], 192, 192, 12
    $region17: #{tpu_custom_call.1} parent=1 // pred_fallthru
      _
    // Predicated region
    $region18: #{tpu_custom_call.1} parent=1 // pred_check
      _
    $region19: #{tpu_custom_call.1} parent=1 // pred_check_branch
      %40 = sbr.rel (0) target = $region21
    $region20: #{tpu_custom_call.1} parent=1 // pred_region
      %s42 = ssub.s32 12288, 12288
      %43 = vsyncadd [#allocation6], %s42
      %s44 = sshll.u32 [#allocation5], 4
      %s45 = int_to_ptr.vmem [resolvable:$true] %s44
      %50 = dma.hbm_to_vmem [thread:$0]  %s4, 12288, %s45, [#allocation6], 384, 384, 24
    $region21: #{tpu_custom_call.1} parent=1 // pred_fallthru
      _
    // Predicated region
    $region22: #{tpu_custom_call.1} parent=1 // pred_check
      _
    $region23: #{tpu_custom_call.1} parent=1 // pred_check_branch
      %52 = sbr.rel (0) target = $region25
    $region24: #{tpu_custom_call.1} parent=1 // pred_region
      _
    $region25: #{tpu_custom_call.1} parent=1 // pred_fallthru
      _
    // Predicated region
    $region26: #{tpu_custom_call.1} parent=1 // pred_check
      _
    $region27: #{tpu_custom_call.1} parent=1 // pred_check_branch
      %54 = sbr.rel (0) target = $region29
    $region28: #{tpu_custom_call.1} parent=1 // pred_region
      _
    $region29: #{tpu_custom_call.1} parent=1 // pred_fallthru
      _
    // Predicated region
    $region30: #{tpu_custom_call.1} parent=1 // pred_check
      _
    $region31: #{tpu_custom_call.1} parent=1 // pred_check_branch
      %56 = sbr.rel (0) target = $region33
    $region32: #{tpu_custom_call.1} parent=1 // pred_region
      _
    $region33: #{tpu_custom_call.1} parent=1 // pred_fallthru
      _
    // Predicated region
    $region34: #{tpu_custom_call.1} parent=1 // pred_check
      _
    $region35: #{tpu_custom_call.1} parent=1 // pred_check_branch
      %58 = sbr.rel (0) target = $region37
    $region36: #{tpu_custom_call.1} parent=1 // pred_region
      _
    $region37: #{tpu_custom_call.1} parent=1 // pred_fallthru
      _
    // Predicated region
    $region38: #{tpu_custom_call.1} parent=1 // pred_check
      _
    $region39: #{tpu_custom_call.1} parent=1 // pred_check_branch
      %60 = sbr.rel (0) target = $region41
    $region40: #{tpu_custom_call.1} parent=1 // pred_region
      _
    $region41: #{tpu_custom_call.1} parent=1 // pred_fallthru
      _
    // Predicated region
    $region42: #{tpu_custom_call.1} parent=1 // pred_check
      _
    $region43: #{tpu_custom_call.1} parent=1 // pred_check_branch
      %62 = sbr.rel (0) target = $region45
    $region44: #{tpu_custom_call.1} parent=1 // pred_region
      _
    $region45: #{tpu_custom_call.1} parent=1 // pred_fallthru
      _
    // Predicated region
    $region46: #{tpu_custom_call.1} parent=1 // pred_check
      _
    $region47: #{tpu_custom_call.1} parent=1 // pred_check_branch
      %64 = sbr.rel (0) target = $region49
    $region48: #{tpu_custom_call.1} parent=1 // pred_region
      _
    $region49: #{tpu_custom_call.1} parent=1 // pred_fallthru
      _
    // Predicated region
    $region50: #{tpu_custom_call.1} parent=1 // pred_check
      _
    $region51: #{tpu_custom_call.1} parent=1 // pred_check_branch
      %66 = sbr.rel (0) target = $region53
    $region52: #{tpu_custom_call.1} parent=1 // pred_region
      %67 = dma.done [#allocation4], 3072
    $region53: #{tpu_custom_call.1} parent=1 // pred_fallthru
      _
    // Predicated region
    $region54: #{tpu_custom_call.1} parent=1 // pred_check
      _
    $region55: #{tpu_custom_call.1} parent=1 // pred_check_branch
      %69 = sbr.rel (0) target = $region57
    $region56: #{tpu_custom_call.1} parent=1 // pred_region
      %70 = dma.done [#allocation6], 12288
    $region57: #{tpu_custom_call.1} parent=1 // pred_fallthru
      _
    %v72 = vld [vmem:[%s0] sm:$0xff]
    %v73 = vsub.s32 %v72, 1
    %vm74 = vcmp.lt.s32.totalorder %v73, 7
    %v75 = vsel %vm74, %v73, 7
    %v76 = vld [vmem:[#allocation3] sm:$0xff]
    %v77 = vld [vmem:[#allocation3 + $0x8] sm:$0xf]
    %v78 = vld [vmem:[#allocation3 + $0xc] sm:$0xff]
    %v79 = vld [vmem:[#allocation3 + $0x14] sm:$0xf]
    %v80 = vld [vmem:[#allocation3 + $0x18] sm:$0xff]
    %v81 = vld [vmem:[#allocation3 + $0x20] sm:$0xf]
    %v82 = vld [vmem:[#allocation3 + $0x24] sm:$0xff]
    %v83 = vld [vmem:[#allocation3 + $0x2c] sm:$0xf]
    %v84 = vld [vmem:[#allocation3 + $0x30] sm:$0xff]
    %v85 = vld [vmem:[#allocation3 + $0x38] sm:$0xf]
    %v86 = vld [vmem:[#allocation3 + $0x3c] sm:$0xff]
    %v87 = vld [vmem:[#allocation3 + $0x44] sm:$0xf]
    %v88 = vld [vmem:[#allocation3 + $0x48] sm:$0xff]
    %v89 = vld [vmem:[#allocation3 + $0x50] sm:$0xf]
    %v90 = vld [vmem:[#allocation3 + $0x54] sm:$0xff]
    %v91 = vld [vmem:[#allocation3 + $0x5c] sm:$0xf]
    %v92 = vld [vmem:[#allocation3 + $0x60] sm:$0xff]
    %v93 = vld [vmem:[#allocation3 + $0x68] sm:$0xf]
    %v94 = vld [vmem:[#allocation3 + $0x6c] sm:$0xff]
    %v95 = vld [vmem:[#allocation3 + $0x74] sm:$0xf]
    %v96 = vld [vmem:[#allocation3 + $0x78] sm:$0xff]
    %v97 = vld [vmem:[#allocation3 + $0x80] sm:$0xf]
    %v98 = vld [vmem:[#allocation3 + $0x84] sm:$0xff]
    %v99 = vld [vmem:[#allocation3 + $0x8c] sm:$0xf]
    %v100 = vld [vmem:[#allocation3 + $0x90] sm:$0xff]
    %v101 = vld [vmem:[#allocation3 + $0x98] sm:$0xf]
    %v102 = vld [vmem:[#allocation3 + $0x9c] sm:$0xff]
    %v103 = vld [vmem:[#allocation3 + $0xa4] sm:$0xf]
    %v104 = vld [vmem:[#allocation3 + $0xa8] sm:$0xff]
    %v105 = vld [vmem:[#allocation3 + $0xb0] sm:$0xf]
    %v106 = vld [vmem:[#allocation3 + $0xb4] sm:$0xff]
    %v107 = vld [vmem:[#allocation3 + $0xbc] sm:$0xf]
    %v108 = vld [vmem:[#allocation5] sm:$0xff]
    %v109 = vld [vmem:[#allocation5 + $0x8] sm:$0xff]
    %v110 = vld [vmem:[#allocation5 + $0x10] sm:$0xff]
    %v111 = vld [vmem:[#allocation5 + $0x18] sm:$0xff]
    %v112 = vld [vmem:[#allocation5 + $0x20] sm:$0xff]
    %v113 = vld [vmem:[#allocation5 + $0x28] sm:$0xff]
    %v114 = vld [vmem:[#allocation5 + $0x30] sm:$0xff]
    %v115 = vld [vmem:[#allocation5 + $0x38] sm:$0xff]
    %v116 = vld [vmem:[#allocation5 + $0x40] sm:$0xff]
    %v117 = vld [vmem:[#allocation5 + $0x48] sm:$0xff]
    %v118 = vld [vmem:[#allocation5 + $0x50] sm:$0xff]
    %v119 = vld [vmem:[#allocation5 + $0x58] sm:$0xff]
    %v120 = vld [vmem:[#allocation5 + $0x60] sm:$0xff]
    %v121 = vld [vmem:[#allocation5 + $0x68] sm:$0xff]
    %v122 = vld [vmem:[#allocation5 + $0x70] sm:$0xff]
    %v123 = vld [vmem:[#allocation5 + $0x78] sm:$0xff]
    %v124 = vld [vmem:[#allocation5 + $0x80] sm:$0xff]
    %v125 = vld [vmem:[#allocation5 + $0x88] sm:$0xff]
    %v126 = vld [vmem:[#allocation5 + $0x90] sm:$0xff]
    %v127 = vld [vmem:[#allocation5 + $0x98] sm:$0xff]
    %v128 = vld [vmem:[#allocation5 + $0xa0] sm:$0xff]
    %v129 = vld [vmem:[#allocation5 + $0xa8] sm:$0xff]
    %v130 = vld [vmem:[#allocation5 + $0xb0] sm:$0xff]
    %v131 = vld [vmem:[#allocation5 + $0xb8] sm:$0xff]
    %v132 = vld [vmem:[#allocation5 + $0xc0] sm:$0xff]
    %v133 = vld [vmem:[#allocation5 + $0xc8] sm:$0xff]
    %v134 = vld [vmem:[#allocation5 + $0xd0] sm:$0xff]
    %v135 = vld [vmem:[#allocation5 + $0xd8] sm:$0xff]
    %v136 = vld [vmem:[#allocation5 + $0xe0] sm:$0xff]
    %v137 = vld [vmem:[#allocation5 + $0xe8] sm:$0xff]
    %v138 = vld [vmem:[#allocation5 + $0xf0] sm:$0xff]
    %v139 = vld [vmem:[#allocation5 + $0xf8] sm:$0xff]
    %v140 = vld [vmem:[#allocation5 + $0x100] sm:$0xff]
    %v141 = vld [vmem:[#allocation5 + $0x108] sm:$0xff]
    %v142 = vld [vmem:[#allocation5 + $0x110] sm:$0xff]
    %v143 = vld [vmem:[#allocation5 + $0x118] sm:$0xff]
    %v144 = vld [vmem:[#allocation5 + $0x120] sm:$0xff]
    %v145 = vld [vmem:[#allocation5 + $0x128] sm:$0xff]
    %v146 = vld [vmem:[#allocation5 + $0x130] sm:$0xff]
    %v147 = vld [vmem:[#allocation5 + $0x138] sm:$0xff]
    %v148 = vld [vmem:[#allocation5 + $0x140] sm:$0xff]
    %v149 = vld [vmem:[#allocation5 + $0x148] sm:$0xff]
    %v150 = vld [vmem:[#allocation5 + $0x150] sm:$0xff]
    %v151 = vld [vmem:[#allocation5 + $0x158] sm:$0xff]
    %v152 = vld [vmem:[#allocation5 + $0x160] sm:$0xff]
    %v153 = vld [vmem:[#allocation5 + $0x168] sm:$0xff]
    %v154 = vld [vmem:[#allocation5 + $0x170] sm:$0xff]
    %v155 = vld [vmem:[#allocation5 + $0x178] sm:$0xff]
    %v156 = vld [vmem:[#allocation5 + $0x180] sm:$0xff]
    %v157 = vld [vmem:[#allocation5 + $0x188] sm:$0xff]
    %v158 = vld [vmem:[#allocation5 + $0x190] sm:$0xff]
    %v159 = vld [vmem:[#allocation5 + $0x198] sm:$0xff]
    %v160 = vld [vmem:[#allocation5 + $0x1a0] sm:$0xff]
    %v161 = vld [vmem:[#allocation5 + $0x1a8] sm:$0xff]
    %v162 = vld [vmem:[#allocation5 + $0x1b0] sm:$0xff]
    %v163 = vld [vmem:[#allocation5 + $0x1b8] sm:$0xff]
    %v164 = vld [vmem:[#allocation5 + $0x1c0] sm:$0xff]
    %v165 = vld [vmem:[#allocation5 + $0x1c8] sm:$0xff]
    %v166 = vld [vmem:[#allocation5 + $0x1d0] sm:$0xff]
    %v167 = vld [vmem:[#allocation5 + $0x1d8] sm:$0xff]
    %v168 = vld [vmem:[#allocation5 + $0x1e0] sm:$0xff]
    %v169 = vld [vmem:[#allocation5 + $0x1e8] sm:$0xff]
    %v170 = vld [vmem:[#allocation5 + $0x1f0] sm:$0xff]
    %v171 = vld [vmem:[#allocation5 + $0x1f8] sm:$0xff]
    %v172 = vld [vmem:[#allocation5 + $0x200] sm:$0xff]
    %v173 = vld [vmem:[#allocation5 + $0x208] sm:$0xff]
    %v174 = vld [vmem:[#allocation5 + $0x210] sm:$0xff]
    %v175 = vld [vmem:[#allocation5 + $0x218] sm:$0xff]
    %v176 = vld [vmem:[#allocation5 + $0x220] sm:$0xff]
    %v177 = vld [vmem:[#allocation5 + $0x228] sm:$0xff]
    %v178 = vld [vmem:[#allocation5 + $0x230] sm:$0xff]
    %v179 = vld [vmem:[#allocation5 + $0x238] sm:$0xff]
    %v180 = vld [vmem:[#allocation5 + $0x240] sm:$0xff]
    %v181 = vld [vmem:[#allocation5 + $0x248] sm:$0xff]
    %v182 = vld [vmem:[#allocation5 + $0x250] sm:$0xff]
    %v183 = vld [vmem:[#allocation5 + $0x258] sm:$0xff]
    %v184 = vld [vmem:[#allocation5 + $0x260] sm:$0xff]
    %v185 = vld [vmem:[#allocation5 + $0x268] sm:$0xff]
    %v186 = vld [vmem:[#allocation5 + $0x270] sm:$0xff]
    %v187 = vld [vmem:[#allocation5 + $0x278] sm:$0xff]
    %v188 = vld [vmem:[#allocation5 + $0x280] sm:$0xff]
    %v189 = vld [vmem:[#allocation5 + $0x288] sm:$0xff]
    %v190 = vld [vmem:[#allocation5 + $0x290] sm:$0xff]
    %v191 = vld [vmem:[#allocation5 + $0x298] sm:$0xff]
    %v192 = vld [vmem:[#allocation5 + $0x2a0] sm:$0xff]
    %v193 = vld [vmem:[#allocation5 + $0x2a8] sm:$0xff]
    %v194 = vld [vmem:[#allocation5 + $0x2b0] sm:$0xff]
    %v195 = vld [vmem:[#allocation5 + $0x2b8] sm:$0xff]
    %v196 = vld [vmem:[#allocation5 + $0x2c0] sm:$0xff]
    %v197 = vld [vmem:[#allocation5 + $0x2c8] sm:$0xff]
    %v198 = vld [vmem:[#allocation5 + $0x2d0] sm:$0xff]
    %v199 = vld [vmem:[#allocation5 + $0x2d8] sm:$0xff]
    %v200 = vld [vmem:[#allocation5 + $0x2e0] sm:$0xff]
    %v201 = vld [vmem:[#allocation5 + $0x2e8] sm:$0xff]
    %v202 = vld [vmem:[#allocation5 + $0x2f0] sm:$0xff]
    %v203 = vld [vmem:[#allocation5 + $0x2f8] sm:$0xff]
    %v204 = vld [vmem:[%s5] ss:$4 sm:$0x7]
    %s205 = scalar_lea.vmem %s5, 1
    %v206 = vld [vmem:[%s205] ss:$4 sm:$0x7]
    %v208 = vlaneseq
    %v209 = vshrl.u32 %v208, 7
    %v210 = vsub.s32 0, %v209
    %v211 = vrot.slane %v206, %v210
    %v212 = vlaneseq
    %v213 = vshrl.u32 %v212, 7
    %v214 = vsub.s32 1, %v213
    %v215 = vrot.slane %v206, %v214
    %v216 = vlaneseq
    %v217 = vshrl.u32 %v216, 7
    %v218 = vsub.s32 2, %v217
    %v219 = vrot.slane %v206, %v218
    %s223 = scalar_lea.vmem %s5, 2
    %v224 = vld [vmem:[%s223] ss:$4 sm:$0x7]
    %v226 = vlaneseq
    %v227 = vshrl.u32 %v226, 7
    %v228 = vsub.s32 0, %v227
    %v229 = vrot.slane %v224, %v228
    %v230 = vlaneseq
    %v231 = vshrl.u32 %v230, 7
    %v232 = vsub.s32 1, %v231
    %v233 = vrot.slane %v224, %v232
    %v234 = vlaneseq
    %v235 = vshrl.u32 %v234, 7
    %v236 = vsub.s32 2, %v235
    %v237 = vrot.slane %v224, %v236
    %s241 = scalar_lea.vmem %s5, 3
    %v242 = vld [vmem:[%s241] ss:$4 sm:$0x7]
    %v244 = vlaneseq
    %v245 = vshrl.u32 %v244, 7
    %v246 = vsub.s32 0, %v245
    %v247 = vrot.slane %v242, %v246
    %v248 = vlaneseq
    %v249 = vshrl.u32 %v248, 7
    %v250 = vsub.s32 1, %v249
    %v251 = vrot.slane %v242, %v250
    %v252 = vlaneseq
    %v253 = vshrl.u32 %v252, 7
    %v254 = vsub.s32 2, %v253
    %v255 = vrot.slane %v242, %v254
    %v259 = vld [vmem:[%s1] sm:$0xf]
    %v260 = vld [vmem:[%s1 + $0x4] sm:$0xf]
    %v261 = vld [vmem:[%s1 + $0x8] sm:$0xf]
    %v262 = vld [vmem:[%s1 + $0xc] sm:$0xf]
    %v263 = vld [vmem:[%s1 + $0x10] sm:$0xf]
    %v264 = vld [vmem:[%s1 + $0x14] sm:$0xf]
    %v265 = vld [vmem:[%s1 + $0x18] sm:$0xf]
    %v266 = vld [vmem:[%s1 + $0x1c] sm:$0xf]
    %v267 = vld [vmem:[%s2] sm:$0xff]
    %v268 = vld [vmem:[%s2 + $0x8] sm:$0xf]
    %v269 = vld [vmem:[%s2 + $0xc] sm:$0xff]
    %v270 = vld [vmem:[%s2 + $0x14] sm:$0xf]
    %v271 = vld [vmem:[%s2 + $0x18] sm:$0xff]
    %v272 = vld [vmem:[%s2 + $0x20] sm:$0xf]
    %v273 = vld [vmem:[%s2 + $0x24] sm:$0xff]
    %v274 = vld [vmem:[%s2 + $0x2c] sm:$0xf]
    %v276 = vlaneseq
    %v277 = vshrl.u32 %v276, 7
    %v278 = vsub.s32 0, %v277
    %v279 = vrot.slane %v204, %v278
    %v280 = vlaneseq
    %v281 = vshrl.u32 %v280, 7
    %v282 = vsub.s32 1, %v281
    %v283 = vrot.slane %v204, %v282
    %v284 = vlaneseq
    %v285 = vshrl.u32 %v284, 7
    %v286 = vsub.s32 2, %v285
    %v287 = vrot.slane %v204, %v286
    %v299 = vunpack.c.l.b16 %v259
    %v300 = vunpack.c.l.b16 %v260
    %v301 = vunpack.c.l.b16 %v261
    %v302 = vunpack.c.l.b16 %v262
    %v303 = vunpack.c.l.b16 %v263
    %v304 = vunpack.c.l.b16 %v264
    %v305 = vunpack.c.l.b16 %v265
    %v306 = vunpack.c.l.b16 %v266
    %v307 = vpack.c.b16 %v300, %v299
    %v308 = vpack.c.b16 %v302, %v301
    %v309 = vpack.c.b16 %v304, %v303
    %v310 = vpack.c.b16 %v306, %v305
    %v319 = vunpack.c.l.b16 %v267
    %v320 = vunpack.c.h.b16 %v267
    %v321 = vunpack.c.l.b16 %v268
    %v322 = vunpack.c.l.b16 %v269
    %v323 = vunpack.c.h.b16 %v269
    %v324 = vunpack.c.l.b16 %v270
    %v325 = vunpack.c.l.b16 %v271
    %v326 = vunpack.c.h.b16 %v271
    %v327 = vunpack.c.l.b16 %v272
    %v328 = vunpack.c.l.b16 %v273
    %v329 = vunpack.c.h.b16 %v273
    %v330 = vunpack.c.l.b16 %v274
    %v331 = vpack.c.b16 %v322, %v319
    %v332 = vpack.c.b16 %v323, %v320
    %v333 = vpack.c.b16 %v324, %v321
    %v334 = vpack.c.b16 %v328, %v325
    %v335 = vpack.c.b16 %v329, %v326
    %v336 = vpack.c.b16 %v330, %v327
    %vm343 = vcmask 261120
    %v345 = vsel %vm343, %v307, 0
    %v348 = vsel %vm343, %v308, 0
    %v351 = vsel %vm343, %v309, 0
    %v354 = vsel %vm343, %v310, 0
    %356 = vmatprep.subr.bf16.mxu0 %v332
    %357 = vmatpush1.bf16.msra.mxu0 %v331
    %358 = vmatprep.subr.bf16.mxu0 %v335
    %359 = vmatpush1.bf16.msra.mxu0 %v334
    %360 = vmatprep.subr.bf16.mxu0 0
    %361 = vmatpush1.bf16.msra.mxu0 0
    %362 = vmatprep.subr.bf16.mxu0 0
    %363 = vmatpush1.bf16.msra.mxu0 0
    %364 = vmatprep.subr.bf16.mxu0 0
    %365 = vmatpush1.bf16.msra.mxu0 0
    %366 = vmatprep.subr.bf16.mxu0 0
    %367 = vmatpush1.bf16.msra.mxu0 0
    %368 = vmatprep.subr.bf16.mxu0 0
    %369 = vmatpush1.bf16.msra.mxu0 0
    %370 = vmatprep.subr.bf16.mxu0 0
    %371 = vmatpush1.bf16.msra.mxu0 0
    %372 = vmatprep.subr.bf16.mxu0 0
    %373 = vmatpush1.bf16.msra.mxu0 0
    %374 = vmatprep.subr.bf16.mxu0 0
    %375 = vmatpush1.bf16.msra.mxu0 0
    %376 = vmatprep.subr.bf16.mxu0 0
    %377 = vmatpush1.bf16.msra.mxu0 0
    %378 = vmatprep.subr.bf16.mxu0 0
    %379 = vmatpush1.bf16.msra.mxu0 0
    %380 = vmatprep.subr.bf16.mxu0 0
    %381 = vmatpush1.bf16.msra.mxu0 0
    %382 = vmatprep.subr.bf16.mxu0 0
    %383 = vmatpush1.bf16.msra.mxu0 0
    %384 = vmatprep.subr.bf16.mxu0 0
    %385 = vmatpush1.bf16.msra.mxu0 0
    %386 = vmatprep.subr.bf16.mxu0 0
    %387 = vmatpush1.bf16.msra.mxu0 0
    %388 = vmatprep.mubr.bf16.mxu0 0
    %389 = vmatmul.mubr.bf16.gmra.mrb[0].mxu0 %v345
    %v390 = vpop.f32.mrb[0].mxu0
    %v391 = vadd.f32 %v279, %v390
    %v392 = vpop.f32.mrb[0].mxu0
    %v393 = vadd.f32 %v283, %v392
    %v394 = vpop.f32.mrb[0].mxu0
    %v395 = vadd.f32 %v279, %v394
    %v396 = vpop.f32.mrb[0].mxu0
    %v397 = vadd.f32 %v283, %v396
    %398 = vmatprep.mubr.bf16.mxu0 0
    %399 = vmatmul.mubr.bf16.gmra.mrb[0].mxu0 %v348
    %v400 = vpop.f32.mrb[0].mxu0
    %v401 = vadd.f32 %v279, %v400
    %v402 = vpop.f32.mrb[0].mxu0
    %v403 = vadd.f32 %v283, %v402
    %v404 = vpop.f32.mrb[0].mxu0
    %v405 = vadd.f32 %v279, %v404
    %v406 = vpop.f32.mrb[0].mxu0
    %v407 = vadd.f32 %v283, %v406
    %408 = vmatprep.mubr.bf16.mxu0 0
    %409 = vmatmul.mubr.bf16.gmra.mrb[0].mxu0 %v351
    %v410 = vpop.f32.mrb[0].mxu0
    %v411 = vadd.f32 %v279, %v410
    %v412 = vpop.f32.mrb[0].mxu0
    %v413 = vadd.f32 %v283, %v412
    %v414 = vpop.f32.mrb[0].mxu0
    %v415 = vadd.f32 %v279, %v414
    %v416 = vpop.f32.mrb[0].mxu0
    %v417 = vadd.f32 %v283, %v416
    %418 = vmatprep.mubr.bf16.mxu0 0
    %419 = vmatmul.mubr.bf16.gmra.mrb[0].mxu0 %v354
    %v420 = vpop.f32.mrb[0].mxu0
    %v421 = vadd.f32 %v279, %v420
    %v422 = vpop.f32.mrb[0].mxu0
    %v423 = vadd.f32 %v283, %v422
    %v424 = vpop.f32.mrb[0].mxu0
    %v425 = vadd.f32 %v279, %v424
    %v426 = vpop.f32.mrb[0].mxu0
    %v427 = vadd.f32 %v283, %v426
    %428 = vdwg.mxu0
    %429 = vmatprep.subr.bf16.mxu0 0
    %430 = vmatpush1.bf16.msra.mxu0 %v333
    %431 = vmatprep.subr.bf16.mxu0 0
    %432 = vmatpush1.bf16.msra.mxu0 %v336
    %433 = vmatprep.subr.bf16.mxu0 0
    %434 = vmatpush1.bf16.msra.mxu0 0
    %435 = vmatprep.subr.bf16.mxu0 0
    %436 = vmatpush1.bf16.msra.mxu0 0
    %437 = vmatprep.subr.bf16.mxu0 0
    %438 = vmatpush1.bf16.msra.mxu0 0
    %439 = vmatprep.subr.bf16.mxu0 0
    %440 = vmatpush1.bf16.msra.mxu0 0
    %441 = vmatprep.subr.bf16.mxu0 0
    %442 = vmatpush1.bf16.msra.mxu0 0
    %443 = vmatprep.subr.bf16.mxu0 0
    %444 = vmatpush1.bf16.msra.mxu0 0
    %445 = vmatprep.subr.bf16.mxu0 0
    %446 = vmatpush1.bf16.msra.mxu0 0
    %447 = vmatprep.subr.bf16.mxu0 0
    %448 = vmatpush1.bf16.msra.mxu0 0
    %449 = vmatprep.subr.bf16.mxu0 0
    %450 = vmatpush1.bf16.msra.mxu0 0
    %451 = vmatprep.subr.bf16.mxu0 0
    %452 = vmatpush1.bf16.msra.mxu0 0
    %453 = vmatprep.subr.bf16.mxu0 0
    %454 = vmatpush1.bf16.msra.mxu0 0
    %455 = vmatprep.subr.bf16.mxu0 0
    %456 = vmatpush1.bf16.msra.mxu0 0
    %457 = vmatprep.subr.bf16.mxu0 0
    %458 = vmatpush1.bf16.msra.mxu0 0
    %459 = vmatprep.subr.bf16.mxu0 0
    %460 = vmatpush1.bf16.msra.mxu0 0
    %461 = vmatprep.mubr.bf16.mxu0 0
    %462 = vmatmul.mubr.bf16.gmra.mrb[0].mxu0 %v345
    %v463 = vpop.f32.mrb[0].mxu0
    %v464 = vadd.f32 %v287, %v463
    %v465 = vpop.f32.mrb[0].mxu0
    %v466 = vpop.f32.mrb[0].mxu0
    %v467 = vadd.f32 %v287, %v466
    %v468 = vpop.f32.mrb[0].mxu0
    %469 = vmatprep.mubr.bf16.mxu0 0
    %470 = vmatmul.mubr.bf16.gmra.mrb[0].mxu0 %v348
    %v471 = vpop.f32.mrb[0].mxu0
    %v472 = vadd.f32 %v287, %v471
    %v473 = vpop.f32.mrb[0].mxu0
    %v474 = vpop.f32.mrb[0].mxu0
    %v475 = vadd.f32 %v287, %v474
    %v476 = vpop.f32.mrb[0].mxu0
    %477 = vmatprep.mubr.bf16.mxu0 0
    %478 = vmatmul.mubr.bf16.gmra.mrb[0].mxu0 %v351
    %v479 = vpop.f32.mrb[0].mxu0
    %v480 = vadd.f32 %v287, %v479
    %v481 = vpop.f32.mrb[0].mxu0
    %v482 = vpop.f32.mrb[0].mxu0
    %v483 = vadd.f32 %v287, %v482
    %v484 = vpop.f32.mrb[0].mxu0
    %485 = vmatprep.mubr.bf16.mxu0 0
    %486 = vmatmul.mubr.bf16.gmra.mrb[0].mxu0 %v354
    %v487 = vpop.f32.mrb[0].mxu0
    %v488 = vadd.f32 %v287, %v487
    %v489 = vpop.f32.mrb[0].mxu0
    %v490 = vpop.f32.mrb[0].mxu0
    %v491 = vadd.f32 %v287, %v490
    %v492 = vpop.f32.mrb[0].mxu0
    %493 = vdwg.mxu0
    %v526 = vunpack.c.l.b16 %v76
    %v527 = vunpack.c.h.b16 %v76
    %v528 = vunpack.c.l.b16 %v77
    %v529 = vunpack.c.l.b16 %v78
    %v530 = vunpack.c.h.b16 %v78
    %v531 = vunpack.c.l.b16 %v79
    %v532 = vunpack.c.l.b16 %v80
    %v533 = vunpack.c.h.b16 %v80
    %v534 = vunpack.c.l.b16 %v81
    %v535 = vunpack.c.l.b16 %v82
    %v536 = vunpack.c.h.b16 %v82
    %v537 = vunpack.c.l.b16 %v83
    %v538 = vunpack.c.l.b16 %v84
    %v539 = vunpack.c.h.b16 %v84
    %v540 = vunpack.c.l.b16 %v85
    %v541 = vunpack.c.l.b16 %v86
    %v542 = vunpack.c.h.b16 %v86
    %v543 = vunpack.c.l.b16 %v87
    %v544 = vunpack.c.l.b16 %v88
    %v545 = vunpack.c.h.b16 %v88
    %v546 = vunpack.c.l.b16 %v89
    %v547 = vunpack.c.l.b16 %v90
    %v548 = vunpack.c.h.b16 %v90
    %v549 = vunpack.c.l.b16 %v91
    %v550 = vunpack.c.l.b16 %v92
    %v551 = vunpack.c.h.b16 %v92
    %v552 = vunpack.c.l.b16 %v93
    %v553 = vunpack.c.l.b16 %v94
    %v554 = vunpack.c.h.b16 %v94
    %v555 = vunpack.c.l.b16 %v95
    %v556 = vunpack.c.l.b16 %v96
    %v557 = vunpack.c.h.b16 %v96
    %v558 = vunpack.c.l.b16 %v97
    %v559 = vunpack.c.l.b16 %v98
    %v560 = vunpack.c.h.b16 %v98
    %v561 = vunpack.c.l.b16 %v99
    %v562 = vunpack.c.l.b16 %v100
    %v563 = vunpack.c.h.b16 %v100
    %v564 = vunpack.c.l.b16 %v101
    %v565 = vunpack.c.l.b16 %v102
    %v566 = vunpack.c.h.b16 %v102
    %v567 = vunpack.c.l.b16 %v103
    %v568 = vunpack.c.l.b16 %v104
    %v569 = vunpack.c.h.b16 %v104
    %v570 = vunpack.c.l.b16 %v105
    %v571 = vunpack.c.l.b16 %v106
    %v572 = vunpack.c.h.b16 %v106
    %v573 = vunpack.c.l.b16 %v107
    %v574 = vpack.c.b16 %v529, %v526
    %v575 = vpack.c.b16 %v530, %v527
    %v576 = vpack.c.b16 %v531, %v528
    %v577 = vpack.c.b16 %v535, %v532
    %v578 = vpack.c.b16 %v536, %v533
    %v579 = vpack.c.b16 %v537, %v534
    %v580 = vpack.c.b16 %v541, %v538
    %v581 = vpack.c.b16 %v542, %v539
    %v582 = vpack.c.b16 %v543, %v540
    %v583 = vpack.c.b16 %v547, %v544
    %v584 = vpack.c.b16 %v548, %v545
    %v585 = vpack.c.b16 %v549, %v546
    %v586 = vpack.c.b16 %v553, %v550
    %v587 = vpack.c.b16 %v554, %v551
    %v588 = vpack.c.b16 %v555, %v552
    %v589 = vpack.c.b16 %v559, %v556
    %v590 = vpack.c.b16 %v560, %v557
    %v591 = vpack.c.b16 %v561, %v558
    %v592 = vpack.c.b16 %v565, %v562
    %v593 = vpack.c.b16 %v566, %v563
    %v594 = vpack.c.b16 %v567, %v564
    %v595 = vpack.c.b16 %v571, %v568
    %v596 = vpack.c.b16 %v572, %v569
    %v597 = vpack.c.b16 %v573, %v570
    %622 = vmatprep.subr.bf16.mxu0 %v575
    %623 = vmatpush1.bf16.msra.mxu0 %v574
    %624 = vmatprep.subr.bf16.mxu0 %v578
    %625 = vmatpush1.bf16.msra.mxu0 %v577
    %626 = vmatprep.subr.bf16.mxu0 %v581
    %627 = vmatpush1.bf16.msra.mxu0 %v580
    %628 = vmatprep.subr.bf16.mxu0 %v584
    %629 = vmatpush1.bf16.msra.mxu0 %v583
    %630 = vmatprep.subr.bf16.mxu0 %v587
    %631 = vmatpush1.bf16.msra.mxu0 %v586
    %632 = vmatprep.subr.bf16.mxu0 %v590
    %633 = vmatpush1.bf16.msra.mxu0 %v589
    %634 = vmatprep.subr.bf16.mxu0 %v593
    %635 = vmatpush1.bf16.msra.mxu0 %v592
    %636 = vmatprep.subr.bf16.mxu0 %v596
    %637 = vmatpush1.bf16.msra.mxu0 %v595
    %638 = vmatprep.subr.bf16.mxu0 0
    %639 = vmatpush1.bf16.msra.mxu0 0
    %640 = vmatprep.subr.bf16.mxu0 0
    %641 = vmatpush1.bf16.msra.mxu0 0
    %642 = vmatprep.subr.bf16.mxu0 0
    %643 = vmatpush1.bf16.msra.mxu0 0
    %644 = vmatprep.subr.bf16.mxu0 0
    %645 = vmatpush1.bf16.msra.mxu0 0
    %646 = vmatprep.subr.bf16.mxu0 0
    %647 = vmatpush1.bf16.msra.mxu0 0
    %648 = vmatprep.subr.bf16.mxu0 0
    %649 = vmatpush1.bf16.msra.mxu0 0
    %650 = vmatprep.subr.bf16.mxu0 0
    %651 = vmatpush1.bf16.msra.mxu0 0
    %652 = vmatprep.subr.bf16.mxu0 0
    %653 = vmatpush1.bf16.msra.mxu0 0
    %654 = vmatprep.mubr.bf16.mxu0 0
    %655 = vmatmul.mubr.bf16.gmra.mrb[0].mxu0 0
    %v656 = vpop.f32.mrb[0].mxu0
    %v657 = vadd.f32 %v211, %v656
    %v658 = vpop.f32.mrb[0].mxu0
    %v659 = vadd.f32 %v215, %v658
    %v660 = vpop.f32.mrb[0].mxu0
    %v661 = vpop.f32.mrb[0].mxu0
    %662 = vdwg.mxu0
    %663 = vmatprep.subr.bf16.mxu0 0
    %664 = vmatpush1.bf16.msra.mxu0 %v576
    %665 = vmatprep.subr.bf16.mxu0 0
    %666 = vmatpush1.bf16.msra.mxu0 %v579
    %667 = vmatprep.subr.bf16.mxu0 0
    %668 = vmatpush1.bf16.msra.mxu0 %v582
    %669 = vmatprep.subr.bf16.mxu0 0
    %670 = vmatpush1.bf16.msra.mxu0 %v585
    %671 = vmatprep.subr.bf16.mxu0 0
    %672 = vmatpush1.bf16.msra.mxu0 %v588
    %673 = vmatprep.subr.bf16.mxu0 0
    %674 = vmatpush1.bf16.msra.mxu0 %v591
    %675 = vmatprep.subr.bf16.mxu0 0
    %676 = vmatpush1.bf16.msra.mxu0 %v594
    %677 = vmatprep.subr.bf16.mxu0 0
    %678 = vmatpush1.bf16.msra.mxu0 %v597
    %679 = vmatprep.subr.bf16.mxu0 0
    %680 = vmatpush1.bf16.msra.mxu0 0
    %681 = vmatprep.subr.bf16.mxu0 0
    %682 = vmatpush1.bf16.msra.mxu0 0
    %683 = vmatprep.subr.bf16.mxu0 0
    %684 = vmatpush1.bf16.msra.mxu0 0
    %685 = vmatprep.subr.bf16.mxu0 0
    %686 = vmatpush1.bf16.msra.mxu0 0
    %687 = vmatprep.subr.bf16.mxu0 0
    %688 = vmatpush1.bf16.msra.mxu0 0
    %689 = vmatprep.subr.bf16.mxu0 0
    %690 = vmatpush1.bf16.msra.mxu0 0
    %691 = vmatprep.subr.bf16.mxu0 0
    %692 = vmatpush1.bf16.msra.mxu0 0
    %693 = vmatprep.subr.bf16.mxu0 0
    %694 = vmatpush1.bf16.msra.mxu0 0
    %695 = vmatprep.mubr.bf16.mxu0 0
    %696 = vmatmul.mubr.bf16.gmra.mrb[0].mxu0 0
    %v697 = vpop.f32.mrb[0].mxu0
    %v698 = vadd.f32 %v219, %v697
    %v699 = vpop.f32.mrb[0].mxu0
    %v700 = vpop.f32.mrb[0].mxu0
    %v701 = vpop.f32.mrb[0].mxu0
    %702 = vdwg.mxu0
    %v703 = vadd.f32 %v391, %v657
    %v704 = vxor.u32 %v703, 2147483648
    %v705 = vmul.f32 %v704, 1.442695
    %v706 = vpow.pop %v705
    %v707 = vadd.f32 %v706, 1.0
    %v708 = vrcp.pop %v707
    %v709 = vmul.f32 1.0, %v708
    %v710 = vadd.f32 %v393, %v659
    %v711 = vxor.u32 %v710, 2147483648
    %v712 = vmul.f32 %v711, 1.442695
    %v713 = vpow.pop %v712
    %v714 = vadd.f32 %v713, 1.0
    %v715 = vrcp.pop %v714
    %v716 = vmul.f32 1.0, %v715
    %v717 = vmul.f32 %v709, %v698
    %v718 = vadd.f32 %v464, %v717
    %v719 = vtanh.pop %v718
    %v720 = vsub.f32 1.0, %v716
    %v721 = vmul.f32 %v720, %v719
    %v722 = vmul.f32 %v716, 0.0
    %v723 = vadd.f32 %v721, %v722
    %v724 = vpack.c.bf16 %v723, %v723
    %725 = vmatprep.subr.bf16.mxu0 %v575
    %726 = vmatpush1.bf16.msra.mxu0 %v574
    %727 = vmatprep.subr.bf16.mxu0 %v578
    %728 = vmatpush1.bf16.msra.mxu0 %v577
    %729 = vmatprep.subr.bf16.mxu0 %v581
    %730 = vmatpush1.bf16.msra.mxu0 %v580
    %731 = vmatprep.subr.bf16.mxu0 %v584
    %732 = vmatpush1.bf16.msra.mxu0 %v583
    %733 = vmatprep.subr.bf16.mxu0 %v587
    %734 = vmatpush1.bf16.msra.mxu0 %v586
    %735 = vmatprep.subr.bf16.mxu0 %v590
    %736 = vmatpush1.bf16.msra.mxu0 %v589
    %737 = vmatprep.subr.bf16.mxu0 %v593
    %738 = vmatpush1.bf16.msra.mxu0 %v592
    %739 = vmatprep.subr.bf16.mxu0 %v596
    %740 = vmatpush1.bf16.msra.mxu0 %v595
    %741 = vmatprep.subr.bf16.mxu0 0
    %742 = vmatpush1.bf16.msra.mxu0 0
    %743 = vmatprep.subr.bf16.mxu0 0
    %744 = vmatpush1.bf16.msra.mxu0 0
    %745 = vmatprep.subr.bf16.mxu0 0
    %746 = vmatpush1.bf16.msra.mxu0 0
    %747 = vmatprep.subr.bf16.mxu0 0
    %748 = vmatpush1.bf16.msra.mxu0 0
    %749 = vmatprep.subr.bf16.mxu0 0
    %750 = vmatpush1.bf16.msra.mxu0 0
    %751 = vmatprep.subr.bf16.mxu0 0
    %752 = vmatpush1.bf16.msra.mxu0 0
    %753 = vmatprep.subr.bf16.mxu0 0
    %754 = vmatpush1.bf16.msra.mxu0 0
    %755 = vmatprep.subr.bf16.mxu0 0
    %756 = vmatpush1.bf16.msra.mxu0 0
    %757 = vmatprep.mubr.bf16.mxu0 0
    %758 = vmatmul.mubr.bf16.gmra.mrb[0].mxu0 %v724
    %v759 = vpop.f32.mrb[0].mxu0
    %v760 = vadd.f32 %v211, %v759
    %v761 = vpop.f32.mrb[0].mxu0
    %v762 = vadd.f32 %v215, %v761
    %v763 = vpop.f32.mrb[0].mxu0
    %v764 = vpop.f32.mrb[0].mxu0
    %765 = vdwg.mxu0
    %766 = vmatprep.subr.bf16.mxu0 0
    %767 = vmatpush1.bf16.msra.mxu0 %v576
    %768 = vmatprep.subr.bf16.mxu0 0
    %769 = vmatpush1.bf16.msra.mxu0 %v579
    %770 = vmatprep.subr.bf16.mxu0 0
    %771 = vmatpush1.bf16.msra.mxu0 %v582
    %772 = vmatprep.subr.bf16.mxu0 0
    %773 = vmatpush1.bf16.msra.mxu0 %v585
    %774 = vmatprep.subr.bf16.mxu0 0
    %775 = vmatpush1.bf16.msra.mxu0 %v588
    %776 = vmatprep.subr.bf16.mxu0 0
    %777 = vmatpush1.bf16.msra.mxu0 %v591
    %778 = vmatprep.subr.bf16.mxu0 0
    %779 = vmatpush1.bf16.msra.mxu0 %v594
    %780 = vmatprep.subr.bf16.mxu0 0
    %781 = vmatpush1.bf16.msra.mxu0 %v597
    %782 = vmatprep.subr.bf16.mxu0 0
    %783 = vmatpush1.bf16.msra.mxu0 0
    %784 = vmatprep.subr.bf16.mxu0 0
    %785 = vmatpush1.bf16.msra.mxu0 0
    %786 = vmatprep.subr.bf16.mxu0 0
    %787 = vmatpush1.bf16.msra.mxu0 0
    %788 = vmatprep.subr.bf16.mxu0 0
    %789 = vmatpush1.bf16.msra.mxu0 0
    %790 = vmatprep.subr.bf16.mxu0 0
    %791 = vmatpush1.bf16.msra.mxu0 0
    %792 = vmatprep.subr.bf16.mxu0 0
    %793 = vmatpush1.bf16.msra.mxu0 0
    %794 = vmatprep.subr.bf16.mxu0 0
    %795 = vmatpush1.bf16.msra.mxu0 0
    %796 = vmatprep.subr.bf16.mxu0 0
    %797 = vmatpush1.bf16.msra.mxu0 0
    %798 = vmatprep.mubr.bf16.mxu0 0
    %799 = vmatmul.mubr.bf16.gmra.mrb[0].mxu0 %v724
    %v800 = vpop.f32.mrb[0].mxu0
    %v801 = vadd.f32 %v219, %v800
    %v802 = vpop.f32.mrb[0].mxu0
    %v803 = vpop.f32.mrb[0].mxu0
    %v804 = vpop.f32.mrb[0].mxu0
    %805 = vdwg.mxu0
    %v806 = vadd.f32 %v395, %v760
    %v807 = vxor.u32 %v806, 2147483648
    %v808 = vmul.f32 %v807, 1.442695
    %v809 = vpow.pop %v808
    %v810 = vadd.f32 %v809, 1.0
    %v811 = vrcp.pop %v810
    %v812 = vmul.f32 1.0, %v811
    %v813 = vadd.f32 %v397, %v762
    %v814 = vxor.u32 %v813, 2147483648
    %v815 = vmul.f32 %v814, 1.442695
    %v816 = vpow.pop %v815
    %v817 = vadd.f32 %v816, 1.0
    %v818 = vrcp.pop %v817
    %v819 = vmul.f32 1.0, %v818
    %v820 = vmul.f32 %v812, %v801
    %v821 = vadd.f32 %v467, %v820
    %v822 = vtanh.pop %v821
    %v823 = vsub.f32 1.0, %v819
    %v824 = vmul.f32 %v823, %v822
    %v825 = vmul.f32 %v819, %v723
    %v826 = vadd.f32 %v824, %v825
    %v827 = vpack.c.bf16 0.0, 0.0
    %v924 = vunpack.c.l.b16 %v108
    %v925 = vunpack.c.h.b16 %v108
    %v926 = vunpack.c.l.b16 %v109
    %v927 = vunpack.c.h.b16 %v109
    %v928 = vunpack.c.l.b16 %v110
    %v929 = vunpack.c.h.b16 %v110
    %v930 = vunpack.c.l.b16 %v111
    %v931 = vunpack.c.h.b16 %v111
    %v932 = vunpack.c.l.b16 %v112
    %v933 = vunpack.c.h.b16 %v112
    %v934 = vunpack.c.l.b16 %v113
    %v935 = vunpack.c.h.b16 %v113
    %v936 = vunpack.c.l.b16 %v114
    %v937 = vunpack.c.h.b16 %v114
    %v938 = vunpack.c.l.b16 %v115
    %v939 = vunpack.c.h.b16 %v115
    %v940 = vunpack.c.l.b16 %v116
    %v941 = vunpack.c.h.b16 %v116
    %v942 = vunpack.c.l.b16 %v117
    %v943 = vunpack.c.h.b16 %v117
    %v944 = vunpack.c.l.b16 %v118
    %v945 = vunpack.c.h.b16 %v118
    %v946 = vunpack.c.l.b16 %v119
    %v947 = vunpack.c.h.b16 %v119
    %v948 = vunpack.c.l.b16 %v120
    %v949 = vunpack.c.h.b16 %v120
    %v950 = vunpack.c.l.b16 %v121
    %v951 = vunpack.c.h.b16 %v121
    %v952 = vunpack.c.l.b16 %v122
    %v953 = vunpack.c.h.b16 %v122
    %v954 = vunpack.c.l.b16 %v123
    %v955 = vunpack.c.h.b16 %v123
    %v956 = vunpack.c.l.b16 %v124
    %v957 = vunpack.c.h.b16 %v124
    %v958 = vunpack.c.l.b16 %v125
    %v959 = vunpack.c.h.b16 %v125
    %v960 = vunpack.c.l.b16 %v126
    %v961 = vunpack.c.h.b16 %v126
    %v962 = vunpack.c.l.b16 %v127
    %v963 = vunpack.c.h.b16 %v127
    %v964 = vunpack.c.l.b16 %v128
    %v965 = vunpack.c.h.b16 %v128
    %v966 = vunpack.c.l.b16 %v129
    %v967 = vunpack.c.h.b16 %v129
    %v968 = vunpack.c.l.b16 %v130
    %v969 = vunpack.c.h.b16 %v130
    %v970 = vunpack.c.l.b16 %v131
    %v971 = vunpack.c.h.b16 %v131
    %v972 = vunpack.c.l.b16 %v132
    %v973 = vunpack.c.h.b16 %v132
    %v974 = vunpack.c.l.b16 %v133
    %v975 = vunpack.c.h.b16 %v133
    %v976 = vunpack.c.l.b16 %v134
    %v977 = vunpack.c.h.b16 %v134
    %v978 = vunpack.c.l.b16 %v135
    %v979 = vunpack.c.h.b16 %v135
    %v980 = vunpack.c.l.b16 %v136
    %v981 = vunpack.c.h.b16 %v136
    %v982 = vunpack.c.l.b16 %v137
    %v983 = vunpack.c.h.b16 %v137
    %v984 = vunpack.c.l.b16 %v138
    %v985 = vunpack.c.h.b16 %v138
    %v986 = vunpack.c.l.b16 %v139
    %v987 = vunpack.c.h.b16 %v139
    %v988 = vunpack.c.l.b16 %v140
    %v989 = vunpack.c.h.b16 %v140
    %v990 = vunpack.c.l.b16 %v141
    %v991 = vunpack.c.h.b16 %v141
    %v992 = vunpack.c.l.b16 %v142
    %v993 = vunpack.c.h.b16 %v142
    %v994 = vunpack.c.l.b16 %v143
    %v995 = vunpack.c.h.b16 %v143
    %v996 = vunpack.c.l.b16 %v144
    %v997 = vunpack.c.h.b16 %v144
    %v998 = vunpack.c.l.b16 %v145
    %v999 = vunpack.c.h.b16 %v145
    %v1000 = vunpack.c.l.b16 %v146
    %v1001 = vunpack.c.h.b16 %v146
    %v1002 = vunpack.c.l.b16 %v147
    %v1003 = vunpack.c.h.b16 %v147
    %v1004 = vunpack.c.l.b16 %v148
    %v1005 = vunpack.c.h.b16 %v148
    %v1006 = vunpack.c.l.b16 %v149
    %v1007 = vunpack.c.h.b16 %v149
    %v1008 = vunpack.c.l.b16 %v150
    %v1009 = vunpack.c.h.b16 %v150
    %v1010 = vunpack.c.l.b16 %v151
    %v1011 = vunpack.c.h.b16 %v151
    %v1012 = vunpack.c.l.b16 %v152
    %v1013 = vunpack.c.h.b16 %v152
    %v1014 = vunpack.c.l.b16 %v153
    %v1015 = vunpack.c.h.b16 %v153
    %v1016 = vunpack.c.l.b16 %v154
    %v1017 = vunpack.c.h.b16 %v154
    %v1018 = vunpack.c.l.b16 %v155
    %v1019 = vunpack.c.h.b16 %v155
    %v1020 = vunpack.c.l.b16 %v156
    %v1021 = vunpack.c.h.b16 %v156
    %v1022 = vunpack.c.l.b16 %v157
    %v1023 = vunpack.c.h.b16 %v157
    %v1024 = vunpack.c.l.b16 %v158
    %v1025 = vunpack.c.h.b16 %v158
    %v1026 = vunpack.c.l.b16 %v159
    %v1027 = vunpack.c.h.b16 %v159
    %v1028 = vunpack.c.l.b16 %v160
    %v1029 = vunpack.c.h.b16 %v160
    %v1030 = vunpack.c.l.b16 %v161
    %v1031 = vunpack.c.h.b16 %v161
    %v1032 = vunpack.c.l.b16 %v162
    %v1033 = vunpack.c.h.b16 %v162
    %v1034 = vunpack.c.l.b16 %v163
    %v1035 = vunpack.c.h.b16 %v163
    %v1036 = vunpack.c.l.b16 %v164
    %v1037 = vunpack.c.h.b16 %v164
    %v1038 = vunpack.c.l.b16 %v165
    %v1039 = vunpack.c.h.b16 %v165
    %v1040 = vunpack.c.l.b16 %v166
    %v1041 = vunpack.c.h.b16 %v166
    %v1042 = vunpack.c.l.b16 %v167
    %v1043 = vunpack.c.h.b16 %v167
    %v1044 = vunpack.c.l.b16 %v168
    %v1045 = vunpack.c.h.b16 %v168
    %v1046 = vunpack.c.l.b16 %v169
    %v1047 = vunpack.c.h.b16 %v169
    %v1048 = vunpack.c.l.b16 %v170
    %v1049 = vunpack.c.h.b16 %v170
    %v1050 = vunpack.c.l.b16 %v171
    %v1051 = vunpack.c.h.b16 %v171
    %v1052 = vunpack.c.l.b16 %v172
    %v1053 = vunpack.c.h.b16 %v172
    %v1054 = vunpack.c.l.b16 %v173
    %v1055 = vunpack.c.h.b16 %v173
    %v1056 = vunpack.c.l.b16 %v174
    %v1057 = vunpack.c.h.b16 %v174
    %v1058 = vunpack.c.l.b16 %v175
    %v1059 = vunpack.c.h.b16 %v175
    %v1060 = vunpack.c.l.b16 %v176
    %v1061 = vunpack.c.h.b16 %v176
    %v1062 = vunpack.c.l.b16 %v177
    %v1063 = vunpack.c.h.b16 %v177
    %v1064 = vunpack.c.l.b16 %v178
    %v1065 = vunpack.c.h.b16 %v178
    %v1066 = vunpack.c.l.b16 %v179
    %v1067 = vunpack.c.h.b16 %v179
    %v1068 = vunpack.c.l.b16 %v180
    %v1069 = vunpack.c.h.b16 %v180
    %v1070 = vunpack.c.l.b16 %v181
    %v1071 = vunpack.c.h.b16 %v181
    %v1072 = vunpack.c.l.b16 %v182
    %v1073 = vunpack.c.h.b16 %v182
    %v1074 = vunpack.c.l.b16 %v183
    %v1075 = vunpack.c.h.b16 %v183
    %v1076 = vunpack.c.l.b16 %v184
    %v1077 = vunpack.c.h.b16 %v184
    %v1078 = vunpack.c.l.b16 %v185
    %v1079 = vunpack.c.h.b16 %v185
    %v1080 = vunpack.c.l.b16 %v186
    %v1081 = vunpack.c.h.b16 %v186
    %v1082 = vunpack.c.l.b16 %v187
    %v1083 = vunpack.c.h.b16 %v187
    %v1084 = vunpack.c.l.b16 %v188
    %v1085 = vunpack.c.h.b16 %v188
    %v1086 = vunpack.c.l.b16 %v189
    %v1087 = vunpack.c.h.b16 %v189
    %v1088 = vunpack.c.l.b16 %v190
    %v1089 = vunpack.c.h.b16 %v190
    %v1090 = vunpack.c.l.b16 %v191
    %v1091 = vunpack.c.h.b16 %v191
    %v1092 = vunpack.c.l.b16 %v192
    %v1093 = vunpack.c.h.b16 %v192
    %v1094 = vunpack.c.l.b16 %v193
    %v1095 = vunpack.c.h.b16 %v193
    %v1096 = vunpack.c.l.b16 %v194
    %v1097 = vunpack.c.h.b16 %v194
    %v1098 = vunpack.c.l.b16 %v195
    %v1099 = vunpack.c.h.b16 %v195
    %v1100 = vunpack.c.l.b16 %v196
    %v1101 = vunpack.c.h.b16 %v196
    %v1102 = vunpack.c.l.b16 %v197
    %v1103 = vunpack.c.h.b16 %v197
    %v1104 = vunpack.c.l.b16 %v198
    %v1105 = vunpack.c.h.b16 %v198
    %v1106 = vunpack.c.l.b16 %v199
    %v1107 = vunpack.c.h.b16 %v199
    %v1108 = vunpack.c.l.b16 %v200
    %v1109 = vunpack.c.h.b16 %v200
    %v1110 = vunpack.c.l.b16 %v201
    %v1111 = vunpack.c.h.b16 %v201
    %v1112 = vunpack.c.l.b16 %v202
    %v1113 = vunpack.c.h.b16 %v202
    %v1114 = vunpack.c.l.b16 %v203
    %v1115 = vunpack.c.h.b16 %v203
    %v1116 = vpack.c.b16 %v930, %v924
    %v1117 = vpack.c.b16 %v931, %v925
    %v1118 = vpack.c.b16 %v932, %v926
    %v1119 = vpack.c.b16 %v933, %v927
    %v1120 = vpack.c.b16 %v934, %v928
    %v1121 = vpack.c.b16 %v935, %v929
    %v1122 = vpack.c.b16 %v942, %v936
    %v1123 = vpack.c.b16 %v943, %v937
    %v1124 = vpack.c.b16 %v944, %v938
    %v1125 = vpack.c.b16 %v945, %v939
    %v1126 = vpack.c.b16 %v946, %v940
    %v1127 = vpack.c.b16 %v947, %v941
    %v1128 = vpack.c.b16 %v954, %v948
    %v1129 = vpack.c.b16 %v955, %v949
    %v1130 = vpack.c.b16 %v956, %v950
    %v1131 = vpack.c.b16 %v957, %v951
    %v1132 = vpack.c.b16 %v958, %v952
    %v1133 = vpack.c.b16 %v959, %v953
    %v1134 = vpack.c.b16 %v966, %v960
    %v1135 = vpack.c.b16 %v967, %v961
    %v1136 = vpack.c.b16 %v968, %v962
    %v1137 = vpack.c.b16 %v969, %v963
    %v1138 = vpack.c.b16 %v970, %v964
    %v1139 = vpack.c.b16 %v971, %v965
    %v1140 = vpack.c.b16 %v978, %v972
    %v1141 = vpack.c.b16 %v979, %v973
    %v1142 = vpack.c.b16 %v980, %v974
    %v1143 = vpack.c.b16 %v981, %v975
    %v1144 = vpack.c.b16 %v982, %v976
    %v1145 = vpack.c.b16 %v983, %v977
    %v1146 = vpack.c.b16 %v990, %v984
    %v1147 = vpack.c.b16 %v991, %v985
    %v1148 = vpack.c.b16 %v992, %v986
    %v1149 = vpack.c.b16 %v993, %v987
    %v1150 = vpack.c.b16 %v994, %v988
    %v1151 = vpack.c.b16 %v995, %v989
    %v1152 = vpack.c.b16 %v1002, %v996
    %v1153 = vpack.c.b16 %v1003, %v997
    %v1154 = vpack.c.b16 %v1004, %v998
    %v1155 = vpack.c.b16 %v1005, %v999
    %v1156 = vpack.c.b16 %v1006, %v1000
    %v1157 = vpack.c.b16 %v1007, %v1001
    %v1158 = vpack.c.b16 %v1014, %v1008
    %v1159 = vpack.c.b16 %v1015, %v1009
    %v1160 = vpack.c.b16 %v1016, %v1010
    %v1161 = vpack.c.b16 %v1017, %v1011
    %v1162 = vpack.c.b16 %v1018, %v1012
    %v1163 = vpack.c.b16 %v1019, %v1013
    %v1164 = vpack.c.b16 %v1026, %v1020
    %v1165 = vpack.c.b16 %v1027, %v1021
    %v1166 = vpack.c.b16 %v1028, %v1022
    %v1167 = vpack.c.b16 %v1029, %v1023
    %v1168 = vpack.c.b16 %v1030, %v1024
    %v1169 = vpack.c.b16 %v1031, %v1025
    %v1170 = vpack.c.b16 %v1038, %v1032
    %v1171 = vpack.c.b16 %v1039, %v1033
    %v1172 = vpack.c.b16 %v1040, %v1034
    %v1173 = vpack.c.b16 %v1041, %v1035
    %v1174 = vpack.c.b16 %v1042, %v1036
    %v1175 = vpack.c.b16 %v1043, %v1037
    %v1176 = vpack.c.b16 %v1050, %v1044
    %v1177 = vpack.c.b16 %v1051, %v1045
    %v1178 = vpack.c.b16 %v1052, %v1046
    %v1179 = vpack.c.b16 %v1053, %v1047
    %v1180 = vpack.c.b16 %v1054, %v1048
    %v1181 = vpack.c.b16 %v1055, %v1049
    %v1182 = vpack.c.b16 %v1062, %v1056
    %v1183 = vpack.c.b16 %v1063, %v1057
    %v1184 = vpack.c.b16 %v1064, %v1058
    %v1185 = vpack.c.b16 %v1065, %v1059
    %v1186 = vpack.c.b16 %v1066, %v1060
    %v1187 = vpack.c.b16 %v1067, %v1061
    %v1188 = vpack.c.b16 %v1074, %v1068
    %v1189 = vpack.c.b16 %v1075, %v1069
    %v1190 = vpack.c.b16 %v1076, %v1070
    %v1191 = vpack.c.b16 %v1077, %v1071
    %v1192 = vpack.c.b16 %v1078, %v1072
    %v1193 = vpack.c.b16 %v1079, %v1073
    %v1194 = vpack.c.b16 %v1086, %v1080
    %v1195 = vpack.c.b16 %v1087, %v1081
    %v1196 = vpack.c.b16 %v1088, %v1082
    %v1197 = vpack.c.b16 %v1089, %v1083
    %v1198 = vpack.c.b16 %v1090, %v1084
    %v1199 = vpack.c.b16 %v1091, %v1085
    %v1200 = vpack.c.b16 %v1098, %v1092
    %v1201 = vpack.c.b16 %v1099, %v1093
    %v1202 = vpack.c.b16 %v1100, %v1094
    %v1203 = vpack.c.b16 %v1101, %v1095
    %v1204 = vpack.c.b16 %v1102, %v1096
    %v1205 = vpack.c.b16 %v1103, %v1097
    %v1206 = vpack.c.b16 %v1110, %v1104
    %v1207 = vpack.c.b16 %v1111, %v1105
    %v1208 = vpack.c.b16 %v1112, %v1106
    %v1209 = vpack.c.b16 %v1113, %v1107
    %v1210 = vpack.c.b16 %v1114, %v1108
    %v1211 = vpack.c.b16 %v1115, %v1109
    %1308 = vmatprep.subr.bf16.mxu0 %v1117
    %1309 = vmatpush1.bf16.msra.mxu0 %v1116
    %1310 = vmatprep.subr.bf16.mxu0 %v1123
    %1311 = vmatpush1.bf16.msra.mxu0 %v1122
    %1312 = vmatprep.subr.bf16.mxu0 %v1129
    %1313 = vmatpush1.bf16.msra.mxu0 %v1128
    %1314 = vmatprep.subr.bf16.mxu0 %v1135
    %1315 = vmatpush1.bf16.msra.mxu0 %v1134
    %1316 = vmatprep.subr.bf16.mxu0 %v1141
    %1317 = vmatpush1.bf16.msra.mxu0 %v1140
    %1318 = vmatprep.subr.bf16.mxu0 %v1147
    %1319 = vmatpush1.bf16.msra.mxu0 %v1146
    %1320 = vmatprep.subr.bf16.mxu0 %v1153
    %1321 = vmatpush1.bf16.msra.mxu0 %v1152
    %1322 = vmatprep.subr.bf16.mxu0 %v1159
    %1323 = vmatpush1.bf16.msra.mxu0 %v1158
    %1324 = vmatprep.subr.bf16.mxu0 %v1165
    %1325 = vmatpush1.bf16.msra.mxu0 %v1164
    %1326 = vmatprep.subr.bf16.mxu0 %v1171
    %1327 = vmatpush1.bf16.msra.mxu0 %v1170
    %1328 = vmatprep.subr.bf16.mxu0 %v1177
    %1329 = vmatpush1.bf16.msra.mxu0 %v1176
    %1330 = vmatprep.subr.bf16.mxu0 %v1183
    %1331 = vmatpush1.bf16.msra.mxu0 %v1182
    %1332 = vmatprep.subr.bf16.mxu0 %v1189
    %1333 = vmatpush1.bf16.msra.mxu0 %v1188
    %1334 = vmatprep.subr.bf16.mxu0 %v1195
    %1335 = vmatpush1.bf16.msra.mxu0 %v1194
    %1336 = vmatprep.subr.bf16.mxu0 %v1201
    %1337 = vmatpush1.bf16.msra.mxu0 %v1200
    %1338 = vmatprep.subr.bf16.mxu0 %v1207
    %1339 = vmatpush1.bf16.msra.mxu0 %v1206
    %1340 = vmatprep.mubr.bf16.mxu0 %v827
    %1341 = vmatmul.mubr.bf16.gmra.mrb[0].mxu0 %v724
    %v1342 = vpop.f32.mrb[0].mxu0
    %v1343 = vadd.f32 0.0, %v1342
    %v1344 = vpop.f32.mrb[0].mxu0
    %v1345 = vadd.f32 0.0, %v1344
    %v1346 = vpop.f32.mrb[0].mxu0
    %v1347 = vpop.f32.mrb[0].mxu0
    %1348 = vdwg.mxu0
    %1349 = vmatprep.subr.bf16.mxu0 %v1119
    %1350 = vmatpush1.bf16.msra.mxu0 %v1118
    %1351 = vmatprep.subr.bf16.mxu0 %v1125
    %1352 = vmatpush1.bf16.msra.mxu0 %v1124
    %1353 = vmatprep.subr.bf16.mxu0 %v1131
    %1354 = vmatpush1.bf16.msra.mxu0 %v1130
    %1355 = vmatprep.subr.bf16.mxu0 %v1137
    %1356 = vmatpush1.bf16.msra.mxu0 %v1136
    %1357 = vmatprep.subr.bf16.mxu0 %v1143
    %1358 = vmatpush1.bf16.msra.mxu0 %v1142
    %1359 = vmatprep.subr.bf16.mxu0 %v1149
    %1360 = vmatpush1.bf16.msra.mxu0 %v1148
    %1361 = vmatprep.subr.bf16.mxu0 %v1155
    %1362 = vmatpush1.bf16.msra.mxu0 %v1154
    %1363 = vmatprep.subr.bf16.mxu0 %v1161
    %1364 = vmatpush1.bf16.msra.mxu0 %v1160
    %1365 = vmatprep.subr.bf16.mxu0 %v1167
    %1366 = vmatpush1.bf16.msra.mxu0 %v1166
    %1367 = vmatprep.subr.bf16.mxu0 %v1173
    %1368 = vmatpush1.bf16.msra.mxu0 %v1172
    %1369 = vmatprep.subr.bf16.mxu0 %v1179
    %1370 = vmatpush1.bf16.msra.mxu0 %v1178
    %1371 = vmatprep.subr.bf16.mxu0 %v1185
    %1372 = vmatpush1.bf16.msra.mxu0 %v1184
    %1373 = vmatprep.subr.bf16.mxu0 %v1191
    %1374 = vmatpush1.bf16.msra.mxu0 %v1190
    %1375 = vmatprep.subr.bf16.mxu0 %v1197
    %1376 = vmatpush1.bf16.msra.mxu0 %v1196
    %1377 = vmatprep.subr.bf16.mxu0 %v1203
    %1378 = vmatpush1.bf16.msra.mxu0 %v1202
    %1379 = vmatprep.subr.bf16.mxu0 %v1209
    %1380 = vmatpush1.bf16.msra.mxu0 %v1208
    %1381 = vmatprep.mubr.bf16.mxu0 %v827
    %1382 = vmatmul.mubr.bf16.gmra.mrb[0].mxu0 %v724
    %v1383 = vpop.f32.mrb[0].mxu0
    %v1384 = vadd.f32 0.0, %v1383
    %v1385 = vpop.f32.mrb[0].mxu0
    %v1386 = vadd.f32 0.0, %v1385
    %v1387 = vpop.f32.mrb[0].mxu0
    %v1388 = vpop.f32.mrb[0].mxu0
    %1389 = vdwg.mxu0
    %1390 = vmatprep.subr.bf16.mxu0 %v1121
    %1391 = vmatpush1.bf16.msra.mxu0 %v1120
    %1392 = vmatprep.subr.bf16.mxu0 %v1127
    %1393 = vmatpush1.bf16.msra.mxu0 %v1126
    %1394 = vmatprep.subr.bf16.mxu0 %v1133
    %1395 = vmatpush1.bf16.msra.mxu0 %v1132
    %1396 = vmatprep.subr.bf16.mxu0 %v1139
    %1397 = vmatpush1.bf16.msra.mxu0 %v1138
    %1398 = vmatprep.subr.bf16.mxu0 %v1145
    %1399 = vmatpush1.bf16.msra.mxu0 %v1144
    %1400 = vmatprep.subr.bf16.mxu0 %v1151
    %1401 = vmatpush1.bf16.msra.mxu0 %v1150
    %1402 = vmatprep.subr.bf16.mxu0 %v1157
    %1403 = vmatpush1.bf16.msra.mxu0 %v1156
    %1404 = vmatprep.subr.bf16.mxu0 %v1163
    %1405 = vmatpush1.bf16.msra.mxu0 %v1162
    %1406 = vmatprep.subr.bf16.mxu0 %v1169
    %1407 = vmatpush1.bf16.msra.mxu0 %v1168
    %1408 = vmatprep.subr.bf16.mxu0 %v1175
    %1409 = vmatpush1.bf16.msra.mxu0 %v1174
    %1410 = vmatprep.subr.bf16.mxu0 %v1181
    %1411 = vmatpush1.bf16.msra.mxu0 %v1180
    %1412 = vmatprep.subr.bf16.mxu0 %v1187
    %1413 = vmatpush1.bf16.msra.mxu0 %v1186
    %1414 = vmatprep.subr.bf16.mxu0 %v1193
    %1415 = vmatpush1.bf16.msra.mxu0 %v1192
    %1416 = vmatprep.subr.bf16.mxu0 %v1199
    %1417 = vmatpush1.bf16.msra.mxu0 %v1198
    %1418 = vmatprep.subr.bf16.mxu0 %v1205
    %1419 = vmatpush1.bf16.msra.mxu0 %v1204
    %1420 = vmatprep.subr.bf16.mxu0 %v1211
    %1421 = vmatpush1.bf16.msra.mxu0 %v1210
    %1422 = vmatprep.mubr.bf16.mxu0 %v827
    %1423 = vmatmul.mubr.bf16.gmra.mrb[0].mxu0 %v724
    %v1424 = vpop.f32.mrb[0].mxu0
    %v1425 = vadd.f32 0.0, %v1424
    %v1426 = vpop.f32.mrb[0].mxu0
    %v1427 = vadd.f32 0.0, %v1426
    %v1428 = vpop.f32.mrb[0].mxu0
    %v1429 = vpop.f32.mrb[0].mxu0
    %1430 = vdwg.mxu0
    %v1431 = vadd.f32 %v1343, %v229
    %v1432 = vadd.f32 %v1345, %v233
    %v1433 = vadd.f32 %v1384, %v237
    %v1434 = vadd.f32 %v1386, %v247
    %v1435 = vadd.f32 %v1425, %v251
    %v1436 = vadd.f32 %v1427, %v255
    %v1437 = vadd.f32 %v1431, %v1434
    %v1438 = vxor.u32 %v1437, 2147483648
    %v1439 = vmul.f32 %v1438, 1.442695
    %v1440 = vpow.pop %v1439
    %v1441 = vadd.f32 %v1440, 1.0
    %v1442 = vrcp.pop %v1441
    %v1443 = vmul.f32 1.0, %v1442
    %v1444 = vadd.f32 %v1432, %v1435
    %v1445 = vxor.u32 %v1444, 2147483648
    %v1446 = vmul.f32 %v1445, 1.442695
    %v1447 = vpow.pop %v1446
    %v1448 = vadd.f32 %v1447, 1.0
    %v1449 = vrcp.pop %v1448
    %v1450 = vmul.f32 1.0, %v1449
    %v1451 = vmul.f32 %v1443, %v1436
    %v1452 = vadd.f32 %v1433, %v1451
    %v1453 = vtanh.pop %v1452
    %v1454 = vsub.f32 1.0, %v1450
    %v1455 = vmul.f32 %v1454, %v1453
    %v1456 = vmul.f32 %v1450, 0.0
    %v1457 = vadd.f32 %v1455, %v1456
    %vm1458 = vcmp.eq.s32.totalorder %v75, 0
    %v1459 = vsel %vm1458, 1, 0
    %1460 = vset.pattern.permute.xlu0 0
    %1461 = vperm.xlu0 %1460, %v1459
    %v1462 = vpop.permute.xlu0 %1461
    %vm1463 = vcmp.eq.s32.totalorder %v1462, 1
    %v1464 = vsel %vm1463, %v1457, 0.0
    %v1465 = vpack.c.bf16 %v826, %v826
    %1466 = vmatprep.subr.bf16.mxu0 %v575
    %1467 = vmatpush1.bf16.msra.mxu0 %v574
    %1468 = vmatprep.subr.bf16.mxu0 %v578
    %1469 = vmatpush1.bf16.msra.mxu0 %v577
    %1470 = vmatprep.subr.bf16.mxu0 %v581
    %1471 = vmatpush1.bf16.msra.mxu0 %v580
    %1472 = vmatprep.subr.bf16.mxu0 %v584
    %1473 = vmatpush1.bf16.msra.mxu0 %v583
    %1474 = vmatprep.subr.bf16.mxu0 %v587
    %1475 = vmatpush1.bf16.msra.mxu0 %v586
    %1476 = vmatprep.subr.bf16.mxu0 %v590
    %1477 = vmatpush1.bf16.msra.mxu0 %v589
    %1478 = vmatprep.subr.bf16.mxu0 %v593
    %1479 = vmatpush1.bf16.msra.mxu0 %v592
    %1480 = vmatprep.subr.bf16.mxu0 %v596
    %1481 = vmatpush1.bf16.msra.mxu0 %v595
    %1482 = vmatprep.subr.bf16.mxu0 0
    %1483 = vmatpush1.bf16.msra.mxu0 0
    %1484 = vmatprep.subr.bf16.mxu0 0
    %1485 = vmatpush1.bf16.msra.mxu0 0
    %1486 = vmatprep.subr.bf16.mxu0 0
    %1487 = vmatpush1.bf16.msra.mxu0 0
    %1488 = vmatprep.subr.bf16.mxu0 0
    %1489 = vmatpush1.bf16.msra.mxu0 0
    %1490 = vmatprep.subr.bf16.mxu0 0
    %1491 = vmatpush1.bf16.msra.mxu0 0
    %1492 = vmatprep.subr.bf16.mxu0 0
    %1493 = vmatpush1.bf16.msra.mxu0 0
    %1494 = vmatprep.subr.bf16.mxu0 0
    %1495 = vmatpush1.bf16.msra.mxu0 0
    %1496 = vmatprep.subr.bf16.mxu0 0
    %1497 = vmatpush1.bf16.msra.mxu0 0
    %1498 = vmatprep.mubr.bf16.mxu0 0
    %1499 = vmatmul.mubr.bf16.gmra.mrb[0].mxu0 %v1465
    %v1500 = vpop.f32.mrb[0].mxu0
    %v1501 = vadd.f32 %v211, %v1500
    %v1502 = vpop.f32.mrb[0].mxu0
    %v1503 = vadd.f32 %v215, %v1502
    %v1504 = vpop.f32.mrb[0].mxu0
    %v1505 = vpop.f32.mrb[0].mxu0
    %1506 = vdwg.mxu0
    %1507 = vmatprep.subr.bf16.mxu0 0
    %1508 = vmatpush1.bf16.msra.mxu0 %v576
    %1509 = vmatprep.subr.bf16.mxu0 0
    %1510 = vmatpush1.bf16.msra.mxu0 %v579
    %1511 = vmatprep.subr.bf16.mxu0 0
    %1512 = vmatpush1.bf16.msra.mxu0 %v582
    %1513 = vmatprep.subr.bf16.mxu0 0
    %1514 = vmatpush1.bf16.msra.mxu0 %v585
    %1515 = vmatprep.subr.bf16.mxu0 0
    %1516 = vmatpush1.bf16.msra.mxu0 %v588
    %1517 = vmatprep.subr.bf16.mxu0 0
    %1518 = vmatpush1.bf16.msra.mxu0 %v591
    %1519 = vmatprep.subr.bf16.mxu0 0
    %1520 = vmatpush1.bf16.msra.mxu0 %v594
    %1521 = vmatprep.subr.bf16.mxu0 0
    %1522 = vmatpush1.bf16.msra.mxu0 %v597
    %1523 = vmatprep.subr.bf16.mxu0 0
    %1524 = vmatpush1.bf16.msra.mxu0 0
    %1525 = vmatprep.subr.bf16.mxu0 0
    %1526 = vmatpush1.bf16.msra.mxu0 0
    %1527 = vmatprep.subr.bf16.mxu0 0
    %1528 = vmatpush1.bf16.msra.mxu0 0
    %1529 = vmatprep.subr.bf16.mxu0 0
    %1530 = vmatpush1.bf16.msra.mxu0 0
    %1531 = vmatprep.subr.bf16.mxu0 0
    %1532 = vmatpush1.bf16.msra.mxu0 0
    %1533 = vmatprep.subr.bf16.mxu0 0
    %1534 = vmatpush1.bf16.msra.mxu0 0
    %1535 = vmatprep.subr.bf16.mxu0 0
    %1536 = vmatpush1.bf16.msra.mxu0 0
    %1537 = vmatprep.subr.bf16.mxu0 0
    %1538 = vmatpush1.bf16.msra.mxu0 0
    %1539 = vmatprep.mubr.bf16.mxu0 0
    %1540 = vmatmul.mubr.bf16.gmra.mrb[0].mxu0 %v1465
    %v1541 = vpop.f32.mrb[0].mxu0
    %v1542 = vadd.f32 %v219, %v1541
    %v1543 = vpop.f32.mrb[0].mxu0
    %v1544 = vpop.f32.mrb[0].mxu0
    %v1545 = vpop.f32.mrb[0].mxu0
    %1546 = vdwg.mxu0
    %v1547 = vadd.f32 %v401, %v1501
    %v1548 = vxor.u32 %v1547, 2147483648
    %v1549 = vmul.f32 %v1548, 1.442695
    %v1550 = vpow.pop %v1549
    %v1551 = vadd.f32 %v1550, 1.0
    %v1552 = vrcp.pop %v1551
    %v1553 = vmul.f32 1.0, %v1552
    %v1554 = vadd.f32 %v403, %v1503
    %v1555 = vxor.u32 %v1554, 2147483648
    %v1556 = vmul.f32 %v1555, 1.442695
    %v1557 = vpow.pop %v1556
    %v1558 = vadd.f32 %v1557, 1.0
    %v1559 = vrcp.pop %v1558
    %v1560 = vmul.f32 1.0, %v1559
    %v1561 = vmul.f32 %v1553, %v1542
    %v1562 = vadd.f32 %v472, %v1561
    %v1563 = vtanh.pop %v1562
    %v1564 = vsub.f32 1.0, %v1560
    %v1565 = vmul.f32 %v1564, %v1563
    %v1566 = vmul.f32 %v1560, %v826
    %v1567 = vadd.f32 %v1565, %v1566
    %v1568 = vpack.c.bf16 %v1457, %v1457
    %1569 = vmatprep.subr.bf16.mxu0 %v1117
    %1570 = vmatpush1.bf16.msra.mxu0 %v1116
    %1571 = vmatprep.subr.bf16.mxu0 %v1123
    %1572 = vmatpush1.bf16.msra.mxu0 %v1122
    %1573 = vmatprep.subr.bf16.mxu0 %v1129
    %1574 = vmatpush1.bf16.msra.mxu0 %v1128
    %1575 = vmatprep.subr.bf16.mxu0 %v1135
    %1576 = vmatpush1.bf16.msra.mxu0 %v1134
    %1577 = vmatprep.subr.bf16.mxu0 %v1141
    %1578 = vmatpush1.bf16.msra.mxu0 %v1140
    %1579 = vmatprep.subr.bf16.mxu0 %v1147
    %1580 = vmatpush1.bf16.msra.mxu0 %v1146
    %1581 = vmatprep.subr.bf16.mxu0 %v1153
    %1582 = vmatpush1.bf16.msra.mxu0 %v1152
    %1583 = vmatprep.subr.bf16.mxu0 %v1159
    %1584 = vmatpush1.bf16.msra.mxu0 %v1158
    %1585 = vmatprep.subr.bf16.mxu0 %v1165
    %1586 = vmatpush1.bf16.msra.mxu0 %v1164
    %1587 = vmatprep.subr.bf16.mxu0 %v1171
    %1588 = vmatpush1.bf16.msra.mxu0 %v1170
    %1589 = vmatprep.subr.bf16.mxu0 %v1177
    %1590 = vmatpush1.bf16.msra.mxu0 %v1176
    %1591 = vmatprep.subr.bf16.mxu0 %v1183
    %1592 = vmatpush1.bf16.msra.mxu0 %v1182
    %1593 = vmatprep.subr.bf16.mxu0 %v1189
    %1594 = vmatpush1.bf16.msra.mxu0 %v1188
    %1595 = vmatprep.subr.bf16.mxu0 %v1195
    %1596 = vmatpush1.bf16.msra.mxu0 %v1194
    %1597 = vmatprep.subr.bf16.mxu0 %v1201
    %1598 = vmatpush1.bf16.msra.mxu0 %v1200
    %1599 = vmatprep.subr.bf16.mxu0 %v1207
    %1600 = vmatpush1.bf16.msra.mxu0 %v1206
    %1601 = vmatprep.mubr.bf16.mxu0 %v1568
    %1602 = vmatmul.mubr.bf16.gmra.mrb[0].mxu0 %v1465
    %v1603 = vpop.f32.mrb[0].mxu0
    %v1604 = vadd.f32 0.0, %v1603
    %v1605 = vpop.f32.mrb[0].mxu0
    %v1606 = vadd.f32 0.0, %v1605
    %v1607 = vpop.f32.mrb[0].mxu0
    %v1608 = vpop.f32.mrb[0].mxu0
    %1609 = vdwg.mxu0
    %1610 = vmatprep.subr.bf16.mxu0 %v1119
    %1611 = vmatpush1.bf16.msra.mxu0 %v1118
    %1612 = vmatprep.subr.bf16.mxu0 %v1125
    %1613 = vmatpush1.bf16.msra.mxu0 %v1124
    %1614 = vmatprep.subr.bf16.mxu0 %v1131
    %1615 = vmatpush1.bf16.msra.mxu0 %v1130
    %1616 = vmatprep.subr.bf16.mxu0 %v1137
    %1617 = vmatpush1.bf16.msra.mxu0 %v1136
    %1618 = vmatprep.subr.bf16.mxu0 %v1143
    %1619 = vmatpush1.bf16.msra.mxu0 %v1142
    %1620 = vmatprep.subr.bf16.mxu0 %v1149
    %1621 = vmatpush1.bf16.msra.mxu0 %v1148
    %1622 = vmatprep.subr.bf16.mxu0 %v1155
    %1623 = vmatpush1.bf16.msra.mxu0 %v1154
    %1624 = vmatprep.subr.bf16.mxu0 %v1161
    %1625 = vmatpush1.bf16.msra.mxu0 %v1160
    %1626 = vmatprep.subr.bf16.mxu0 %v1167
    %1627 = vmatpush1.bf16.msra.mxu0 %v1166
    %1628 = vmatprep.subr.bf16.mxu0 %v1173
    %1629 = vmatpush1.bf16.msra.mxu0 %v1172
    %1630 = vmatprep.subr.bf16.mxu0 %v1179
    %1631 = vmatpush1.bf16.msra.mxu0 %v1178
    %1632 = vmatprep.subr.bf16.mxu0 %v1185
    %1633 = vmatpush1.bf16.msra.mxu0 %v1184
    %1634 = vmatprep.subr.bf16.mxu0 %v1191
    %1635 = vmatpush1.bf16.msra.mxu0 %v1190
    %1636 = vmatprep.subr.bf16.mxu0 %v1197
    %1637 = vmatpush1.bf16.msra.mxu0 %v1196
    %1638 = vmatprep.subr.bf16.mxu0 %v1203
    %1639 = vmatpush1.bf16.msra.mxu0 %v1202
    %1640 = vmatprep.subr.bf16.mxu0 %v1209
    %1641 = vmatpush1.bf16.msra.mxu0 %v1208
    %1642 = vmatprep.mubr.bf16.mxu0 %v1568
    %1643 = vmatmul.mubr.bf16.gmra.mrb[0].mxu0 %v1465
    %v1644 = vpop.f32.mrb[0].mxu0
    %v1645 = vadd.f32 0.0, %v1644
    %v1646 = vpop.f32.mrb[0].mxu0
    %v1647 = vadd.f32 0.0, %v1646
    %v1648 = vpop.f32.mrb[0].mxu0
    %v1649 = vpop.f32.mrb[0].mxu0
    %1650 = vdwg.mxu0
    %1651 = vmatprep.subr.bf16.mxu0 %v1121
    %1652 = vmatpush1.bf16.msra.mxu0 %v1120
    %1653 = vmatprep.subr.bf16.mxu0 %v1127
    %1654 = vmatpush1.bf16.msra.mxu0 %v1126
    %1655 = vmatprep.subr.bf16.mxu0 %v1133
    %1656 = vmatpush1.bf16.msra.mxu0 %v1132
    %1657 = vmatprep.subr.bf16.mxu0 %v1139
    %1658 = vmatpush1.bf16.msra.mxu0 %v1138
    %1659 = vmatprep.subr.bf16.mxu0 %v1145
    %1660 = vmatpush1.bf16.msra.mxu0 %v1144
    %1661 = vmatprep.subr.bf16.mxu0 %v1151
    %1662 = vmatpush1.bf16.msra.mxu0 %v1150
    %1663 = vmatprep.subr.bf16.mxu0 %v1157
    %1664 = vmatpush1.bf16.msra.mxu0 %v1156
    %1665 = vmatprep.subr.bf16.mxu0 %v1163
    %1666 = vmatpush1.bf16.msra.mxu0 %v1162
    %1667 = vmatprep.subr.bf16.mxu0 %v1169
    %1668 = vmatpush1.bf16.msra.mxu0 %v1168
    %1669 = vmatprep.subr.bf16.mxu0 %v1175
    %1670 = vmatpush1.bf16.msra.mxu0 %v1174
    %1671 = vmatprep.subr.bf16.mxu0 %v1181
    %1672 = vmatpush1.bf16.msra.mxu0 %v1180
    %1673 = vmatprep.subr.bf16.mxu0 %v1187
    %1674 = vmatpush1.bf16.msra.mxu0 %v1186
    %1675 = vmatprep.subr.bf16.mxu0 %v1193
    %1676 = vmatpush1.bf16.msra.mxu0 %v1192
    %1677 = vmatprep.subr.bf16.mxu0 %v1199
    %1678 = vmatpush1.bf16.msra.mxu0 %v1198
    %1679 = vmatprep.subr.bf16.mxu0 %v1205
    %1680 = vmatpush1.bf16.msra.mxu0 %v1204
    %1681 = vmatprep.subr.bf16.mxu0 %v1211
    %1682 = vmatpush1.bf16.msra.mxu0 %v1210
    %1683 = vmatprep.mubr.bf16.mxu0 %v1568
    %1684 = vmatmul.mubr.bf16.gmra.mrb[0].mxu0 %v1465
    %v1685 = vpop.f32.mrb[0].mxu0
    %v1686 = vadd.f32 0.0, %v1685
    %v1687 = vpop.f32.mrb[0].mxu0
    %v1688 = vadd.f32 0.0, %v1687
    %v1689 = vpop.f32.mrb[0].mxu0
    %v1690 = vpop.f32.mrb[0].mxu0
    %1691 = vdwg.mxu0
    %v1692 = vadd.f32 %v1604, %v229
    %v1693 = vadd.f32 %v1606, %v233
    %v1694 = vadd.f32 %v1645, %v237
    %v1695 = vadd.f32 %v1647, %v247
    %v1696 = vadd.f32 %v1686, %v251
    %v1697 = vadd.f32 %v1688, %v255
    %v1698 = vadd.f32 %v1692, %v1695
    %v1699 = vxor.u32 %v1698, 2147483648
    %v1700 = vmul.f32 %v1699, 1.442695
    %v1701 = vpow.pop %v1700
    %v1702 = vadd.f32 %v1701, 1.0
    %v1703 = vrcp.pop %v1702
    %v1704 = vmul.f32 1.0, %v1703
    %v1705 = vadd.f32 %v1693, %v1696
    %v1706 = vxor.u32 %v1705, 2147483648
    %v1707 = vmul.f32 %v1706, 1.442695
    %v1708 = vpow.pop %v1707
    %v1709 = vadd.f32 %v1708, 1.0
    %v1710 = vrcp.pop %v1709
    %v1711 = vmul.f32 1.0, %v1710
    %v1712 = vmul.f32 %v1704, %v1697
    %v1713 = vadd.f32 %v1694, %v1712
    %v1714 = vtanh.pop %v1713
    %v1715 = vsub.f32 1.0, %v1711
    %v1716 = vmul.f32 %v1715, %v1714
    %v1717 = vmul.f32 %v1711, %v1457
    %v1718 = vadd.f32 %v1716, %v1717
    %vm1719 = vcmp.eq.s32.totalorder %v75, 1
    %v1720 = vsel %vm1719, 1, 0
    %1721 = vset.pattern.permute.xlu0 0
    %1722 = vperm.xlu0 %1721, %v1720
    %v1723 = vpop.permute.xlu0 %1722
    %vm1724 = vcmp.eq.s32.totalorder %v1723, 1
    %v1725 = vsel %vm1724, %v1718, %v1464
    %v1726 = vpack.c.bf16 %v1567, %v1567
    %1727 = vmatprep.subr.bf16.mxu0 %v575
    %1728 = vmatpush1.bf16.msra.mxu0 %v574
    %1729 = vmatprep.subr.bf16.mxu0 %v578
    %1730 = vmatpush1.bf16.msra.mxu0 %v577
    %1731 = vmatprep.subr.bf16.mxu0 %v581
    %1732 = vmatpush1.bf16.msra.mxu0 %v580
    %1733 = vmatprep.subr.bf16.mxu0 %v584
    %1734 = vmatpush1.bf16.msra.mxu0 %v583
    %1735 = vmatprep.subr.bf16.mxu0 %v587
    %1736 = vmatpush1.bf16.msra.mxu0 %v586
    %1737 = vmatprep.subr.bf16.mxu0 %v590
    %1738 = vmatpush1.bf16.msra.mxu0 %v589
    %1739 = vmatprep.subr.bf16.mxu0 %v593
    %1740 = vmatpush1.bf16.msra.mxu0 %v592
    %1741 = vmatprep.subr.bf16.mxu0 %v596
    %1742 = vmatpush1.bf16.msra.mxu0 %v595
    %1743 = vmatprep.subr.bf16.mxu0 0
    %1744 = vmatpush1.bf16.msra.mxu0 0
    %1745 = vmatprep.subr.bf16.mxu0 0
    %1746 = vmatpush1.bf16.msra.mxu0 0
    %1747 = vmatprep.subr.bf16.mxu0 0
    %1748 = vmatpush1.bf16.msra.mxu0 0
    %1749 = vmatprep.subr.bf16.mxu0 0
    %1750 = vmatpush1.bf16.msra.mxu0 0
    %1751 = vmatprep.subr.bf16.mxu0 0
    %1752 = vmatpush1.bf16.msra.mxu0 0
    %1753 = vmatprep.subr.bf16.mxu0 0
    %1754 = vmatpush1.bf16.msra.mxu0 0
    %1755 = vmatprep.subr.bf16.mxu0 0
    %1756 = vmatpush1.bf16.msra.mxu0 0
    %1757 = vmatprep.subr.bf16.mxu0 0
    %1758 = vmatpush1.bf16.msra.mxu0 0
    %1759 = vmatprep.mubr.bf16.mxu0 0
    %1760 = vmatmul.mubr.bf16.gmra.mrb[0].mxu0 %v1726
    %v1761 = vpop.f32.mrb[0].mxu0
    %v1762 = vadd.f32 %v211, %v1761
    %v1763 = vpop.f32.mrb[0].mxu0
    %v1764 = vadd.f32 %v215, %v1763
    %v1765 = vpop.f32.mrb[0].mxu0
    %v1766 = vpop.f32.mrb[0].mxu0
    %1767 = vdwg.mxu0
    %1768 = vmatprep.subr.bf16.mxu0 0
    %1769 = vmatpush1.bf16.msra.mxu0 %v576
    %1770 = vmatprep.subr.bf16.mxu0 0
    %1771 = vmatpush1.bf16.msra.mxu0 %v579
    %1772 = vmatprep.subr.bf16.mxu0 0
    %1773 = vmatpush1.bf16.msra.mxu0 %v582
    %1774 = vmatprep.subr.bf16.mxu0 0
    %1775 = vmatpush1.bf16.msra.mxu0 %v585
    %1776 = vmatprep.subr.bf16.mxu0 0
    %1777 = vmatpush1.bf16.msra.mxu0 %v588
    %1778 = vmatprep.subr.bf16.mxu0 0
    %1779 = vmatpush1.bf16.msra.mxu0 %v591
    %1780 = vmatprep.subr.bf16.mxu0 0
    %1781 = vmatpush1.bf16.msra.mxu0 %v594
    %1782 = vmatprep.subr.bf16.mxu0 0
    %1783 = vmatpush1.bf16.msra.mxu0 %v597
    %1784 = vmatprep.subr.bf16.mxu0 0
    %1785 = vmatpush1.bf16.msra.mxu0 0
    %1786 = vmatprep.subr.bf16.mxu0 0
    %1787 = vmatpush1.bf16.msra.mxu0 0
    %1788 = vmatprep.subr.bf16.mxu0 0
    %1789 = vmatpush1.bf16.msra.mxu0 0
    %1790 = vmatprep.subr.bf16.mxu0 0
    %1791 = vmatpush1.bf16.msra.mxu0 0
    %1792 = vmatprep.subr.bf16.mxu0 0
    %1793 = vmatpush1.bf16.msra.mxu0 0
    %1794 = vmatprep.subr.bf16.mxu0 0
    %1795 = vmatpush1.bf16.msra.mxu0 0
    %1796 = vmatprep.subr.bf16.mxu0 0
    %1797 = vmatpush1.bf16.msra.mxu0 0
    %1798 = vmatprep.subr.bf16.mxu0 0
    %1799 = vmatpush1.bf16.msra.mxu0 0
    %1800 = vmatprep.mubr.bf16.mxu0 0
    %1801 = vmatmul.mubr.bf16.gmra.mrb[0].mxu0 %v1726
    %v1802 = vpop.f32.mrb[0].mxu0
    %v1803 = vadd.f32 %v219, %v1802
    %v1804 = vpop.f32.mrb[0].mxu0
    %v1805 = vpop.f32.mrb[0].mxu0
    %v1806 = vpop.f32.mrb[0].mxu0
    %1807 = vdwg.mxu0
    %v1808 = vadd.f32 %v405, %v1762
    %v1809 = vxor.u32 %v1808, 2147483648
    %v1810 = vmul.f32 %v1809, 1.442695
    %v1811 = vpow.pop %v1810
    %v1812 = vadd.f32 %v1811, 1.0
    %v1813 = vrcp.pop %v1812
    %v1814 = vmul.f32 1.0, %v1813
    %v1815 = vadd.f32 %v407, %v1764
    %v1816 = vxor.u32 %v1815, 2147483648
    %v1817 = vmul.f32 %v1816, 1.442695
    %v1818 = vpow.pop %v1817
    %v1819 = vadd.f32 %v1818, 1.0
    %v1820 = vrcp.pop %v1819
    %v1821 = vmul.f32 1.0, %v1820
    %v1822 = vmul.f32 %v1814, %v1803
    %v1823 = vadd.f32 %v475, %v1822
    %v1824 = vtanh.pop %v1823
    %v1825 = vsub.f32 1.0, %v1821
    %v1826 = vmul.f32 %v1825, %v1824
    %v1827 = vmul.f32 %v1821, %v1567
    %v1828 = vadd.f32 %v1826, %v1827
    %v1829 = vpack.c.bf16 %v1718, %v1718
    %1830 = vmatprep.subr.bf16.mxu0 %v1117
    %1831 = vmatpush1.bf16.msra.mxu0 %v1116
    %1832 = vmatprep.subr.bf16.mxu0 %v1123
    %1833 = vmatpush1.bf16.msra.mxu0 %v1122
    %1834 = vmatprep.subr.bf16.mxu0 %v1129
    %1835 = vmatpush1.bf16.msra.mxu0 %v1128
    %1836 = vmatprep.subr.bf16.mxu0 %v1135
    %1837 = vmatpush1.bf16.msra.mxu0 %v1134
    %1838 = vmatprep.subr.bf16.mxu0 %v1141
    %1839 = vmatpush1.bf16.msra.mxu0 %v1140
    %1840 = vmatprep.subr.bf16.mxu0 %v1147
    %1841 = vmatpush1.bf16.msra.mxu0 %v1146
    %1842 = vmatprep.subr.bf16.mxu0 %v1153
    %1843 = vmatpush1.bf16.msra.mxu0 %v1152
    %1844 = vmatprep.subr.bf16.mxu0 %v1159
    %1845 = vmatpush1.bf16.msra.mxu0 %v1158
    %1846 = vmatprep.subr.bf16.mxu0 %v1165
    %1847 = vmatpush1.bf16.msra.mxu0 %v1164
    %1848 = vmatprep.subr.bf16.mxu0 %v1171
    %1849 = vmatpush1.bf16.msra.mxu0 %v1170
    %1850 = vmatprep.subr.bf16.mxu0 %v1177
    %1851 = vmatpush1.bf16.msra.mxu0 %v1176
    %1852 = vmatprep.subr.bf16.mxu0 %v1183
    %1853 = vmatpush1.bf16.msra.mxu0 %v1182
    %1854 = vmatprep.subr.bf16.mxu0 %v1189
    %1855 = vmatpush1.bf16.msra.mxu0 %v1188
    %1856 = vmatprep.subr.bf16.mxu0 %v1195
    %1857 = vmatpush1.bf16.msra.mxu0 %v1194
    %1858 = vmatprep.subr.bf16.mxu0 %v1201
    %1859 = vmatpush1.bf16.msra.mxu0 %v1200
    %1860 = vmatprep.subr.bf16.mxu0 %v1207
    %1861 = vmatpush1.bf16.msra.mxu0 %v1206
    %1862 = vmatprep.mubr.bf16.mxu0 %v1829
    %1863 = vmatmul.mubr.bf16.gmra.mrb[0].mxu0 %v1726
    %v1864 = vpop.f32.mrb[0].mxu0
    %v1865 = vadd.f32 0.0, %v1864
    %v1866 = vpop.f32.mrb[0].mxu0
    %v1867 = vadd.f32 0.0, %v1866
    %v1868 = vpop.f32.mrb[0].mxu0
    %v1869 = vpop.f32.mrb[0].mxu0
    %1870 = vdwg.mxu0
    %1871 = vmatprep.subr.bf16.mxu0 %v1119
    %1872 = vmatpush1.bf16.msra.mxu0 %v1118
    %1873 = vmatprep.subr.bf16.mxu0 %v1125
    %1874 = vmatpush1.bf16.msra.mxu0 %v1124
    %1875 = vmatprep.subr.bf16.mxu0 %v1131
    %1876 = vmatpush1.bf16.msra.mxu0 %v1130
    %1877 = vmatprep.subr.bf16.mxu0 %v1137
    %1878 = vmatpush1.bf16.msra.mxu0 %v1136
    %1879 = vmatprep.subr.bf16.mxu0 %v1143
    %1880 = vmatpush1.bf16.msra.mxu0 %v1142
    %1881 = vmatprep.subr.bf16.mxu0 %v1149
    %1882 = vmatpush1.bf16.msra.mxu0 %v1148
    %1883 = vmatprep.subr.bf16.mxu0 %v1155
    %1884 = vmatpush1.bf16.msra.mxu0 %v1154
    %1885 = vmatprep.subr.bf16.mxu0 %v1161
    %1886 = vmatpush1.bf16.msra.mxu0 %v1160
    %1887 = vmatprep.subr.bf16.mxu0 %v1167
    %1888 = vmatpush1.bf16.msra.mxu0 %v1166
    %1889 = vmatprep.subr.bf16.mxu0 %v1173
    %1890 = vmatpush1.bf16.msra.mxu0 %v1172
    %1891 = vmatprep.subr.bf16.mxu0 %v1179
    %1892 = vmatpush1.bf16.msra.mxu0 %v1178
    %1893 = vmatprep.subr.bf16.mxu0 %v1185
    %1894 = vmatpush1.bf16.msra.mxu0 %v1184
    %1895 = vmatprep.subr.bf16.mxu0 %v1191
    %1896 = vmatpush1.bf16.msra.mxu0 %v1190
    %1897 = vmatprep.subr.bf16.mxu0 %v1197
    %1898 = vmatpush1.bf16.msra.mxu0 %v1196
    %1899 = vmatprep.subr.bf16.mxu0 %v1203
    %1900 = vmatpush1.bf16.msra.mxu0 %v1202
    %1901 = vmatprep.subr.bf16.mxu0 %v1209
    %1902 = vmatpush1.bf16.msra.mxu0 %v1208
    %1903 = vmatprep.mubr.bf16.mxu0 %v1829
    %1904 = vmatmul.mubr.bf16.gmra.mrb[0].mxu0 %v1726
    %v1905 = vpop.f32.mrb[0].mxu0
    %v1906 = vadd.f32 0.0, %v1905
    %v1907 = vpop.f32.mrb[0].mxu0
    %v1908 = vadd.f32 0.0, %v1907
    %v1909 = vpop.f32.mrb[0].mxu0
    %v1910 = vpop.f32.mrb[0].mxu0
    %1911 = vdwg.mxu0
    %1912 = vmatprep.subr.bf16.mxu0 %v1121
    %1913 = vmatpush1.bf16.msra.mxu0 %v1120
    %1914 = vmatprep.subr.bf16.mxu0 %v1127
    %1915 = vmatpush1.bf16.msra.mxu0 %v1126
    %1916 = vmatprep.subr.bf16.mxu0 %v1133
    %1917 = vmatpush1.bf16.msra.mxu0 %v1132
    %1918 = vmatprep.subr.bf16.mxu0 %v1139
    %1919 = vmatpush1.bf16.msra.mxu0 %v1138
    %1920 = vmatprep.subr.bf16.mxu0 %v1145
    %1921 = vmatpush1.bf16.msra.mxu0 %v1144
    %1922 = vmatprep.subr.bf16.mxu0 %v1151
    %1923 = vmatpush1.bf16.msra.mxu0 %v1150
    %1924 = vmatprep.subr.bf16.mxu0 %v1157
    %1925 = vmatpush1.bf16.msra.mxu0 %v1156
    %1926 = vmatprep.subr.bf16.mxu0 %v1163
    %1927 = vmatpush1.bf16.msra.mxu0 %v1162
    %1928 = vmatprep.subr.bf16.mxu0 %v1169
    %1929 = vmatpush1.bf16.msra.mxu0 %v1168
    %1930 = vmatprep.subr.bf16.mxu0 %v1175
    %1931 = vmatpush1.bf16.msra.mxu0 %v1174
    %1932 = vmatprep.subr.bf16.mxu0 %v1181
    %1933 = vmatpush1.bf16.msra.mxu0 %v1180
    %1934 = vmatprep.subr.bf16.mxu0 %v1187
    %1935 = vmatpush1.bf16.msra.mxu0 %v1186
    %1936 = vmatprep.subr.bf16.mxu0 %v1193
    %1937 = vmatpush1.bf16.msra.mxu0 %v1192
    %1938 = vmatprep.subr.bf16.mxu0 %v1199
    %1939 = vmatpush1.bf16.msra.mxu0 %v1198
    %1940 = vmatprep.subr.bf16.mxu0 %v1205
    %1941 = vmatpush1.bf16.msra.mxu0 %v1204
    %1942 = vmatprep.subr.bf16.mxu0 %v1211
    %1943 = vmatpush1.bf16.msra.mxu0 %v1210
    %1944 = vmatprep.mubr.bf16.mxu0 %v1829
    %1945 = vmatmul.mubr.bf16.gmra.mrb[0].mxu0 %v1726
    %v1946 = vpop.f32.mrb[0].mxu0
    %v1947 = vadd.f32 0.0, %v1946
    %v1948 = vpop.f32.mrb[0].mxu0
    %v1949 = vadd.f32 0.0, %v1948
    %v1950 = vpop.f32.mrb[0].mxu0
    %v1951 = vpop.f32.mrb[0].mxu0
    %1952 = vdwg.mxu0
    %v1953 = vadd.f32 %v1865, %v229
    %v1954 = vadd.f32 %v1867, %v233
    %v1955 = vadd.f32 %v1906, %v237
    %v1956 = vadd.f32 %v1908, %v247
    %v1957 = vadd.f32 %v1947, %v251
    %v1958 = vadd.f32 %v1949, %v255
    %v1959 = vadd.f32 %v1953, %v1956
    %v1960 = vxor.u32 %v1959, 2147483648
    %v1961 = vmul.f32 %v1960, 1.442695
    %v1962 = vpow.pop %v1961
    %v1963 = vadd.f32 %v1962, 1.0
    %v1964 = vrcp.pop %v1963
    %v1965 = vmul.f32 1.0, %v1964
    %v1966 = vadd.f32 %v1954, %v1957
    %v1967 = vxor.u32 %v1966, 2147483648
    %v1968 = vmul.f32 %v1967, 1.442695
    %v1969 = vpow.pop %v1968
    %v1970 = vadd.f32 %v1969, 1.0
    %v1971 = vrcp.pop %v1970
    %v1972 = vmul.f32 1.0, %v1971
    %v1973 = vmul.f32 %v1965, %v1958
    %v1974 = vadd.f32 %v1955, %v1973
    %v1975 = vtanh.pop %v1974
    %v1976 = vsub.f32 1.0, %v1972
    %v1977 = vmul.f32 %v1976, %v1975
    %v1978 = vmul.f32 %v1972, %v1718
    %v1979 = vadd.f32 %v1977, %v1978
    %vm1980 = vcmp.eq.s32.totalorder %v75, 2
    %v1981 = vsel %vm1980, 1, 0
    %1982 = vset.pattern.permute.xlu0 0
    %1983 = vperm.xlu0 %1982, %v1981
    %v1984 = vpop.permute.xlu0 %1983
    %vm1985 = vcmp.eq.s32.totalorder %v1984, 1
    %v1986 = vsel %vm1985, %v1979, %v1725
    %v1987 = vpack.c.bf16 %v1828, %v1828
    %1988 = vmatprep.subr.bf16.mxu0 %v575
    %1989 = vmatpush1.bf16.msra.mxu0 %v574
    %1990 = vmatprep.subr.bf16.mxu0 %v578
    %1991 = vmatpush1.bf16.msra.mxu0 %v577
    %1992 = vmatprep.subr.bf16.mxu0 %v581
    %1993 = vmatpush1.bf16.msra.mxu0 %v580
    %1994 = vmatprep.subr.bf16.mxu0 %v584
    %1995 = vmatpush1.bf16.msra.mxu0 %v583
    %1996 = vmatprep.subr.bf16.mxu0 %v587
    %1997 = vmatpush1.bf16.msra.mxu0 %v586
    %1998 = vmatprep.subr.bf16.mxu0 %v590
    %1999 = vmatpush1.bf16.msra.mxu0 %v589
    %2000 = vmatprep.subr.bf16.mxu0 %v593
    %2001 = vmatpush1.bf16.msra.mxu0 %v592
    %2002 = vmatprep.subr.bf16.mxu0 %v596
    %2003 = vmatpush1.bf16.msra.mxu0 %v595
    %2004 = vmatprep.subr.bf16.mxu0 0
    %2005 = vmatpush1.bf16.msra.mxu0 0
    %2006 = vmatprep.subr.bf16.mxu0 0
    %2007 = vmatpush1.bf16.msra.mxu0 0
    %2008 = vmatprep.subr.bf16.mxu0 0
    %2009 = vmatpush1.bf16.msra.mxu0 0
    %2010 = vmatprep.subr.bf16.mxu0 0
    %2011 = vmatpush1.bf16.msra.mxu0 0
    %2012 = vmatprep.subr.bf16.mxu0 0
    %2013 = vmatpush1.bf16.msra.mxu0 0
    %2014 = vmatprep.subr.bf16.mxu0 0
    %2015 = vmatpush1.bf16.msra.mxu0 0
    %2016 = vmatprep.subr.bf16.mxu0 0
    %2017 = vmatpush1.bf16.msra.mxu0 0
    %2018 = vmatprep.subr.bf16.mxu0 0
    %2019 = vmatpush1.bf16.msra.mxu0 0
    %2020 = vmatprep.mubr.bf16.mxu0 0
    %2021 = vmatmul.mubr.bf16.gmra.mrb[0].mxu0 %v1987
    %v2022 = vpop.f32.mrb[0].mxu0
    %v2023 = vadd.f32 %v211, %v2022
    %v2024 = vpop.f32.mrb[0].mxu0
    %v2025 = vadd.f32 %v215, %v2024
    %v2026 = vpop.f32.mrb[0].mxu0
    %v2027 = vpop.f32.mrb[0].mxu0
    %2028 = vdwg.mxu0
    %2029 = vmatprep.subr.bf16.mxu0 0
    %2030 = vmatpush1.bf16.msra.mxu0 %v576
    %2031 = vmatprep.subr.bf16.mxu0 0
    %2032 = vmatpush1.bf16.msra.mxu0 %v579
    %2033 = vmatprep.subr.bf16.mxu0 0
    %2034 = vmatpush1.bf16.msra.mxu0 %v582
    %2035 = vmatprep.subr.bf16.mxu0 0
    %2036 = vmatpush1.bf16.msra.mxu0 %v585
    %2037 = vmatprep.subr.bf16.mxu0 0
    %2038 = vmatpush1.bf16.msra.mxu0 %v588
    %2039 = vmatprep.subr.bf16.mxu0 0
    %2040 = vmatpush1.bf16.msra.mxu0 %v591
    %2041 = vmatprep.subr.bf16.mxu0 0
    %2042 = vmatpush1.bf16.msra.mxu0 %v594
    %2043 = vmatprep.subr.bf16.mxu0 0
    %2044 = vmatpush1.bf16.msra.mxu0 %v597
    %2045 = vmatprep.subr.bf16.mxu0 0
    %2046 = vmatpush1.bf16.msra.mxu0 0
    %2047 = vmatprep.subr.bf16.mxu0 0
    %2048 = vmatpush1.bf16.msra.mxu0 0
    %2049 = vmatprep.subr.bf16.mxu0 0
    %2050 = vmatpush1.bf16.msra.mxu0 0
    %2051 = vmatprep.subr.bf16.mxu0 0
    %2052 = vmatpush1.bf16.msra.mxu0 0
    %2053 = vmatprep.subr.bf16.mxu0 0
    %2054 = vmatpush1.bf16.msra.mxu0 0
    %2055 = vmatprep.subr.bf16.mxu0 0
    %2056 = vmatpush1.bf16.msra.mxu0 0
    %2057 = vmatprep.subr.bf16.mxu0 0
    %2058 = vmatpush1.bf16.msra.mxu0 0
    %2059 = vmatprep.subr.bf16.mxu0 0
    %2060 = vmatpush1.bf16.msra.mxu0 0
    %2061 = vmatprep.mubr.bf16.mxu0 0
    %2062 = vmatmul.mubr.bf16.gmra.mrb[0].mxu0 %v1987
    %v2063 = vpop.f32.mrb[0].mxu0
    %v2064 = vadd.f32 %v219, %v2063
    %v2065 = vpop.f32.mrb[0].mxu0
    %v2066 = vpop.f32.mrb[0].mxu0
    %v2067 = vpop.f32.mrb[0].mxu0
    %2068 = vdwg.mxu0
    %v2069 = vadd.f32 %v411, %v2023
    %v2070 = vxor.u32 %v2069, 2147483648
    %v2071 = vmul.f32 %v2070, 1.442695
    %v2072 = vpow.pop %v2071
    %v2073 = vadd.f32 %v2072, 1.0
    %v2074 = vrcp.pop %v2073
    %v2075 = vmul.f32 1.0, %v2074
    %v2076 = vadd.f32 %v413, %v2025
    %v2077 = vxor.u32 %v2076, 2147483648
    %v2078 = vmul.f32 %v2077, 1.442695
    %v2079 = vpow.pop %v2078
    %v2080 = vadd.f32 %v2079, 1.0
    %v2081 = vrcp.pop %v2080
    %v2082 = vmul.f32 1.0, %v2081
    %v2083 = vmul.f32 %v2075, %v2064
    %v2084 = vadd.f32 %v480, %v2083
    %v2085 = vtanh.pop %v2084
    %v2086 = vsub.f32 1.0, %v2082
    %v2087 = vmul.f32 %v2086, %v2085
    %v2088 = vmul.f32 %v2082, %v1828
    %v2089 = vadd.f32 %v2087, %v2088
    %v2090 = vpack.c.bf16 %v1979, %v1979
    %2091 = vmatprep.subr.bf16.mxu0 %v1117
    %2092 = vmatpush1.bf16.msra.mxu0 %v1116
    %2093 = vmatprep.subr.bf16.mxu0 %v1123
    %2094 = vmatpush1.bf16.msra.mxu0 %v1122
    %2095 = vmatprep.subr.bf16.mxu0 %v1129
    %2096 = vmatpush1.bf16.msra.mxu0 %v1128
    %2097 = vmatprep.subr.bf16.mxu0 %v1135
    %2098 = vmatpush1.bf16.msra.mxu0 %v1134
    %2099 = vmatprep.subr.bf16.mxu0 %v1141
    %2100 = vmatpush1.bf16.msra.mxu0 %v1140
    %2101 = vmatprep.subr.bf16.mxu0 %v1147
    %2102 = vmatpush1.bf16.msra.mxu0 %v1146
    %2103 = vmatprep.subr.bf16.mxu0 %v1153
    %2104 = vmatpush1.bf16.msra.mxu0 %v1152
    %2105 = vmatprep.subr.bf16.mxu0 %v1159
    %2106 = vmatpush1.bf16.msra.mxu0 %v1158
    %2107 = vmatprep.subr.bf16.mxu0 %v1165
    %2108 = vmatpush1.bf16.msra.mxu0 %v1164
    %2109 = vmatprep.subr.bf16.mxu0 %v1171
    %2110 = vmatpush1.bf16.msra.mxu0 %v1170
    %2111 = vmatprep.subr.bf16.mxu0 %v1177
    %2112 = vmatpush1.bf16.msra.mxu0 %v1176
    %2113 = vmatprep.subr.bf16.mxu0 %v1183
    %2114 = vmatpush1.bf16.msra.mxu0 %v1182
    %2115 = vmatprep.subr.bf16.mxu0 %v1189
    %2116 = vmatpush1.bf16.msra.mxu0 %v1188
    %2117 = vmatprep.subr.bf16.mxu0 %v1195
    %2118 = vmatpush1.bf16.msra.mxu0 %v1194
    %2119 = vmatprep.subr.bf16.mxu0 %v1201
    %2120 = vmatpush1.bf16.msra.mxu0 %v1200
    %2121 = vmatprep.subr.bf16.mxu0 %v1207
    %2122 = vmatpush1.bf16.msra.mxu0 %v1206
    %2123 = vmatprep.mubr.bf16.mxu0 %v2090
    %2124 = vmatmul.mubr.bf16.gmra.mrb[0].mxu0 %v1987
    %v2125 = vpop.f32.mrb[0].mxu0
    %v2126 = vadd.f32 0.0, %v2125
    %v2127 = vpop.f32.mrb[0].mxu0
    %v2128 = vadd.f32 0.0, %v2127
    %v2129 = vpop.f32.mrb[0].mxu0
    %v2130 = vpop.f32.mrb[0].mxu0
    %2131 = vdwg.mxu0
    %2132 = vmatprep.subr.bf16.mxu0 %v1119
    %2133 = vmatpush1.bf16.msra.mxu0 %v1118
    %2134 = vmatprep.subr.bf16.mxu0 %v1125
    %2135 = vmatpush1.bf16.msra.mxu0 %v1124
    %2136 = vmatprep.subr.bf16.mxu0 %v1131
    %2137 = vmatpush1.bf16.msra.mxu0 %v1130
    %2138 = vmatprep.subr.bf16.mxu0 %v1137
    %2139 = vmatpush1.bf16.msra.mxu0 %v1136
    %2140 = vmatprep.subr.bf16.mxu0 %v1143
    %2141 = vmatpush1.bf16.msra.mxu0 %v1142
    %2142 = vmatprep.subr.bf16.mxu0 %v1149
    %2143 = vmatpush1.bf16.msra.mxu0 %v1148
    %2144 = vmatprep.subr.bf16.mxu0 %v1155
    %2145 = vmatpush1.bf16.msra.mxu0 %v1154
    %2146 = vmatprep.subr.bf16.mxu0 %v1161
    %2147 = vmatpush1.bf16.msra.mxu0 %v1160
    %2148 = vmatprep.subr.bf16.mxu0 %v1167
    %2149 = vmatpush1.bf16.msra.mxu0 %v1166
    %2150 = vmatprep.subr.bf16.mxu0 %v1173
    %2151 = vmatpush1.bf16.msra.mxu0 %v1172
    %2152 = vmatprep.subr.bf16.mxu0 %v1179
    %2153 = vmatpush1.bf16.msra.mxu0 %v1178
    %2154 = vmatprep.subr.bf16.mxu0 %v1185
    %2155 = vmatpush1.bf16.msra.mxu0 %v1184
    %2156 = vmatprep.subr.bf16.mxu0 %v1191
    %2157 = vmatpush1.bf16.msra.mxu0 %v1190
    %2158 = vmatprep.subr.bf16.mxu0 %v1197
    %2159 = vmatpush1.bf16.msra.mxu0 %v1196
    %2160 = vmatprep.subr.bf16.mxu0 %v1203
    %2161 = vmatpush1.bf16.msra.mxu0 %v1202
    %2162 = vmatprep.subr.bf16.mxu0 %v1209
    %2163 = vmatpush1.bf16.msra.mxu0 %v1208
    %2164 = vmatprep.mubr.bf16.mxu0 %v2090
    %2165 = vmatmul.mubr.bf16.gmra.mrb[0].mxu0 %v1987
    %v2166 = vpop.f32.mrb[0].mxu0
    %v2167 = vadd.f32 0.0, %v2166
    %v2168 = vpop.f32.mrb[0].mxu0
    %v2169 = vadd.f32 0.0, %v2168
    %v2170 = vpop.f32.mrb[0].mxu0
    %v2171 = vpop.f32.mrb[0].mxu0
    %2172 = vdwg.mxu0
    %2173 = vmatprep.subr.bf16.mxu0 %v1121
    %2174 = vmatpush1.bf16.msra.mxu0 %v1120
    %2175 = vmatprep.subr.bf16.mxu0 %v1127
    %2176 = vmatpush1.bf16.msra.mxu0 %v1126
    %2177 = vmatprep.subr.bf16.mxu0 %v1133
    %2178 = vmatpush1.bf16.msra.mxu0 %v1132
    %2179 = vmatprep.subr.bf16.mxu0 %v1139
    %2180 = vmatpush1.bf16.msra.mxu0 %v1138
    %2181 = vmatprep.subr.bf16.mxu0 %v1145
    %2182 = vmatpush1.bf16.msra.mxu0 %v1144
    %2183 = vmatprep.subr.bf16.mxu0 %v1151
    %2184 = vmatpush1.bf16.msra.mxu0 %v1150
    %2185 = vmatprep.subr.bf16.mxu0 %v1157
    %2186 = vmatpush1.bf16.msra.mxu0 %v1156
    %2187 = vmatprep.subr.bf16.mxu0 %v1163
    %2188 = vmatpush1.bf16.msra.mxu0 %v1162
    %2189 = vmatprep.subr.bf16.mxu0 %v1169
    %2190 = vmatpush1.bf16.msra.mxu0 %v1168
    %2191 = vmatprep.subr.bf16.mxu0 %v1175
    %2192 = vmatpush1.bf16.msra.mxu0 %v1174
    %2193 = vmatprep.subr.bf16.mxu0 %v1181
    %2194 = vmatpush1.bf16.msra.mxu0 %v1180
    %2195 = vmatprep.subr.bf16.mxu0 %v1187
    %2196 = vmatpush1.bf16.msra.mxu0 %v1186
    %2197 = vmatprep.subr.bf16.mxu0 %v1193
    %2198 = vmatpush1.bf16.msra.mxu0 %v1192
    %2199 = vmatprep.subr.bf16.mxu0 %v1199
    %2200 = vmatpush1.bf16.msra.mxu0 %v1198
    %2201 = vmatprep.subr.bf16.mxu0 %v1205
    %2202 = vmatpush1.bf16.msra.mxu0 %v1204
    %2203 = vmatprep.subr.bf16.mxu0 %v1211
    %2204 = vmatpush1.bf16.msra.mxu0 %v1210
    %2205 = vmatprep.mubr.bf16.mxu0 %v2090
    %2206 = vmatmul.mubr.bf16.gmra.mrb[0].mxu0 %v1987
    %v2207 = vpop.f32.mrb[0].mxu0
    %v2208 = vadd.f32 0.0, %v2207
    %v2209 = vpop.f32.mrb[0].mxu0
    %v2210 = vadd.f32 0.0, %v2209
    %v2211 = vpop.f32.mrb[0].mxu0
    %v2212 = vpop.f32.mrb[0].mxu0
    %2213 = vdwg.mxu0
    %v2214 = vadd.f32 %v2126, %v229
    %v2215 = vadd.f32 %v2128, %v233
    %v2216 = vadd.f32 %v2167, %v237
    %v2217 = vadd.f32 %v2169, %v247
    %v2218 = vadd.f32 %v2208, %v251
    %v2219 = vadd.f32 %v2210, %v255
    %v2220 = vadd.f32 %v2214, %v2217
    %v2221 = vxor.u32 %v2220, 2147483648
    %v2222 = vmul.f32 %v2221, 1.442695
    %v2223 = vpow.pop %v2222
    %v2224 = vadd.f32 %v2223, 1.0
    %v2225 = vrcp.pop %v2224
    %v2226 = vmul.f32 1.0, %v2225
    %v2227 = vadd.f32 %v2215, %v2218
    %v2228 = vxor.u32 %v2227, 2147483648
    %v2229 = vmul.f32 %v2228, 1.442695
    %v2230 = vpow.pop %v2229
    %v2231 = vadd.f32 %v2230, 1.0
    %v2232 = vrcp.pop %v2231
    %v2233 = vmul.f32 1.0, %v2232
    %v2234 = vmul.f32 %v2226, %v2219
    %v2235 = vadd.f32 %v2216, %v2234
    %v2236 = vtanh.pop %v2235
    %v2237 = vsub.f32 1.0, %v2233
    %v2238 = vmul.f32 %v2237, %v2236
    %v2239 = vmul.f32 %v2233, %v1979
    %v2240 = vadd.f32 %v2238, %v2239
    %vm2241 = vcmp.eq.s32.totalorder %v75, 3
    %v2242 = vsel %vm2241, 1, 0
    %2243 = vset.pattern.permute.xlu0 0
    %2244 = vperm.xlu0 %2243, %v2242
    %v2245 = vpop.permute.xlu0 %2244
    %vm2246 = vcmp.eq.s32.totalorder %v2245, 1
    %v2247 = vsel %vm2246, %v2240, %v1986
    %v2248 = vpack.c.bf16 %v2089, %v2089
    %2249 = vmatprep.subr.bf16.mxu0 %v575
    %2250 = vmatpush1.bf16.msra.mxu0 %v574
    %2251 = vmatprep.subr.bf16.mxu0 %v578
    %2252 = vmatpush1.bf16.msra.mxu0 %v577
    %2253 = vmatprep.subr.bf16.mxu0 %v581
    %2254 = vmatpush1.bf16.msra.mxu0 %v580
    %2255 = vmatprep.subr.bf16.mxu0 %v584
    %2256 = vmatpush1.bf16.msra.mxu0 %v583
    %2257 = vmatprep.subr.bf16.mxu0 %v587
    %2258 = vmatpush1.bf16.msra.mxu0 %v586
    %2259 = vmatprep.subr.bf16.mxu0 %v590
    %2260 = vmatpush1.bf16.msra.mxu0 %v589
    %2261 = vmatprep.subr.bf16.mxu0 %v593
    %2262 = vmatpush1.bf16.msra.mxu0 %v592
    %2263 = vmatprep.subr.bf16.mxu0 %v596
    %2264 = vmatpush1.bf16.msra.mxu0 %v595
    %2265 = vmatprep.subr.bf16.mxu0 0
    %2266 = vmatpush1.bf16.msra.mxu0 0
    %2267 = vmatprep.subr.bf16.mxu0 0
    %2268 = vmatpush1.bf16.msra.mxu0 0
    %2269 = vmatprep.subr.bf16.mxu0 0
    %2270 = vmatpush1.bf16.msra.mxu0 0
    %2271 = vmatprep.subr.bf16.mxu0 0
    %2272 = vmatpush1.bf16.msra.mxu0 0
    %2273 = vmatprep.subr.bf16.mxu0 0
    %2274 = vmatpush1.bf16.msra.mxu0 0
    %2275 = vmatprep.subr.bf16.mxu0 0
    %2276 = vmatpush1.bf16.msra.mxu0 0
    %2277 = vmatprep.subr.bf16.mxu0 0
    %2278 = vmatpush1.bf16.msra.mxu0 0
    %2279 = vmatprep.subr.bf16.mxu0 0
    %2280 = vmatpush1.bf16.msra.mxu0 0
    %2281 = vmatprep.mubr.bf16.mxu0 0
    %2282 = vmatmul.mubr.bf16.gmra.mrb[0].mxu0 %v2248
    %v2283 = vpop.f32.mrb[0].mxu0
    %v2284 = vadd.f32 %v211, %v2283
    %v2285 = vpop.f32.mrb[0].mxu0
    %v2286 = vadd.f32 %v215, %v2285
    %v2287 = vpop.f32.mrb[0].mxu0
    %v2288 = vpop.f32.mrb[0].mxu0
    %2289 = vdwg.mxu0
    %2290 = vmatprep.subr.bf16.mxu0 0
    %2291 = vmatpush1.bf16.msra.mxu0 %v576
    %2292 = vmatprep.subr.bf16.mxu0 0
    %2293 = vmatpush1.bf16.msra.mxu0 %v579
    %2294 = vmatprep.subr.bf16.mxu0 0
    %2295 = vmatpush1.bf16.msra.mxu0 %v582
    %2296 = vmatprep.subr.bf16.mxu0 0
    %2297 = vmatpush1.bf16.msra.mxu0 %v585
    %2298 = vmatprep.subr.bf16.mxu0 0
    %2299 = vmatpush1.bf16.msra.mxu0 %v588
    %2300 = vmatprep.subr.bf16.mxu0 0
    %2301 = vmatpush1.bf16.msra.mxu0 %v591
    %2302 = vmatprep.subr.bf16.mxu0 0
    %2303 = vmatpush1.bf16.msra.mxu0 %v594
    %2304 = vmatprep.subr.bf16.mxu0 0
    %2305 = vmatpush1.bf16.msra.mxu0 %v597
    %2306 = vmatprep.subr.bf16.mxu0 0
    %2307 = vmatpush1.bf16.msra.mxu0 0
    %2308 = vmatprep.subr.bf16.mxu0 0
    %2309 = vmatpush1.bf16.msra.mxu0 0
    %2310 = vmatprep.subr.bf16.mxu0 0
    %2311 = vmatpush1.bf16.msra.mxu0 0
    %2312 = vmatprep.subr.bf16.mxu0 0
    %2313 = vmatpush1.bf16.msra.mxu0 0
    %2314 = vmatprep.subr.bf16.mxu0 0
    %2315 = vmatpush1.bf16.msra.mxu0 0
    %2316 = vmatprep.subr.bf16.mxu0 0
    %2317 = vmatpush1.bf16.msra.mxu0 0
    %2318 = vmatprep.subr.bf16.mxu0 0
    %2319 = vmatpush1.bf16.msra.mxu0 0
    %2320 = vmatprep.subr.bf16.mxu0 0
    %2321 = vmatpush1.bf16.msra.mxu0 0
    %2322 = vmatprep.mubr.bf16.mxu0 0
    %2323 = vmatmul.mubr.bf16.gmra.mrb[0].mxu0 %v2248
    %v2324 = vpop.f32.mrb[0].mxu0
    %v2325 = vadd.f32 %v219, %v2324
    %v2326 = vpop.f32.mrb[0].mxu0
    %v2327 = vpop.f32.mrb[0].mxu0
    %v2328 = vpop.f32.mrb[0].mxu0
    %2329 = vdwg.mxu0
    %v2330 = vadd.f32 %v415, %v2284
    %v2331 = vxor.u32 %v2330, 2147483648
    %v2332 = vmul.f32 %v2331, 1.442695
    %v2333 = vpow.pop %v2332
    %v2334 = vadd.f32 %v2333, 1.0
    %v2335 = vrcp.pop %v2334
    %v2336 = vmul.f32 1.0, %v2335
    %v2337 = vadd.f32 %v417, %v2286
    %v2338 = vxor.u32 %v2337, 2147483648
    %v2339 = vmul.f32 %v2338, 1.442695
    %v2340 = vpow.pop %v2339
    %v2341 = vadd.f32 %v2340, 1.0
    %v2342 = vrcp.pop %v2341
    %v2343 = vmul.f32 1.0, %v2342
    %v2344 = vmul.f32 %v2336, %v2325
    %v2345 = vadd.f32 %v483, %v2344
    %v2346 = vtanh.pop %v2345
    %v2347 = vsub.f32 1.0, %v2343
    %v2348 = vmul.f32 %v2347, %v2346
    %v2349 = vmul.f32 %v2343, %v2089
    %v2350 = vadd.f32 %v2348, %v2349
    %v2351 = vpack.c.bf16 %v2240, %v2240
    %2352 = vmatprep.subr.bf16.mxu0 %v1117
    %2353 = vmatpush1.bf16.msra.mxu0 %v1116
    %2354 = vmatprep.subr.bf16.mxu0 %v1123
    %2355 = vmatpush1.bf16.msra.mxu0 %v1122
    %2356 = vmatprep.subr.bf16.mxu0 %v1129
    %2357 = vmatpush1.bf16.msra.mxu0 %v1128
    %2358 = vmatprep.subr.bf16.mxu0 %v1135
    %2359 = vmatpush1.bf16.msra.mxu0 %v1134
    %2360 = vmatprep.subr.bf16.mxu0 %v1141
    %2361 = vmatpush1.bf16.msra.mxu0 %v1140
    %2362 = vmatprep.subr.bf16.mxu0 %v1147
    %2363 = vmatpush1.bf16.msra.mxu0 %v1146
    %2364 = vmatprep.subr.bf16.mxu0 %v1153
    %2365 = vmatpush1.bf16.msra.mxu0 %v1152
    %2366 = vmatprep.subr.bf16.mxu0 %v1159
    %2367 = vmatpush1.bf16.msra.mxu0 %v1158
    %2368 = vmatprep.subr.bf16.mxu0 %v1165
    %2369 = vmatpush1.bf16.msra.mxu0 %v1164
    %2370 = vmatprep.subr.bf16.mxu0 %v1171
    %2371 = vmatpush1.bf16.msra.mxu0 %v1170
    %2372 = vmatprep.subr.bf16.mxu0 %v1177
    %2373 = vmatpush1.bf16.msra.mxu0 %v1176
    %2374 = vmatprep.subr.bf16.mxu0 %v1183
    %2375 = vmatpush1.bf16.msra.mxu0 %v1182
    %2376 = vmatprep.subr.bf16.mxu0 %v1189
    %2377 = vmatpush1.bf16.msra.mxu0 %v1188
    %2378 = vmatprep.subr.bf16.mxu0 %v1195
    %2379 = vmatpush1.bf16.msra.mxu0 %v1194
    %2380 = vmatprep.subr.bf16.mxu0 %v1201
    %2381 = vmatpush1.bf16.msra.mxu0 %v1200
    %2382 = vmatprep.subr.bf16.mxu0 %v1207
    %2383 = vmatpush1.bf16.msra.mxu0 %v1206
    %2384 = vmatprep.mubr.bf16.mxu0 %v2351
    %2385 = vmatmul.mubr.bf16.gmra.mrb[0].mxu0 %v2248
    %v2386 = vpop.f32.mrb[0].mxu0
    %v2387 = vadd.f32 0.0, %v2386
    %v2388 = vpop.f32.mrb[0].mxu0
    %v2389 = vadd.f32 0.0, %v2388
    %v2390 = vpop.f32.mrb[0].mxu0
    %v2391 = vpop.f32.mrb[0].mxu0
    %2392 = vdwg.mxu0
    %2393 = vmatprep.subr.bf16.mxu0 %v1119
    %2394 = vmatpush1.bf16.msra.mxu0 %v1118
    %2395 = vmatprep.subr.bf16.mxu0 %v1125
    %2396 = vmatpush1.bf16.msra.mxu0 %v1124
    %2397 = vmatprep.subr.bf16.mxu0 %v1131
    %2398 = vmatpush1.bf16.msra.mxu0 %v1130
    %2399 = vmatprep.subr.bf16.mxu0 %v1137
    %2400 = vmatpush1.bf16.msra.mxu0 %v1136
    %2401 = vmatprep.subr.bf16.mxu0 %v1143
    %2402 = vmatpush1.bf16.msra.mxu0 %v1142
    %2403 = vmatprep.subr.bf16.mxu0 %v1149
    %2404 = vmatpush1.bf16.msra.mxu0 %v1148
    %2405 = vmatprep.subr.bf16.mxu0 %v1155
    %2406 = vmatpush1.bf16.msra.mxu0 %v1154
    %2407 = vmatprep.subr.bf16.mxu0 %v1161
    %2408 = vmatpush1.bf16.msra.mxu0 %v1160
    %2409 = vmatprep.subr.bf16.mxu0 %v1167
    %2410 = vmatpush1.bf16.msra.mxu0 %v1166
    %2411 = vmatprep.subr.bf16.mxu0 %v1173
    %2412 = vmatpush1.bf16.msra.mxu0 %v1172
    %2413 = vmatprep.subr.bf16.mxu0 %v1179
    %2414 = vmatpush1.bf16.msra.mxu0 %v1178
    %2415 = vmatprep.subr.bf16.mxu0 %v1185
    %2416 = vmatpush1.bf16.msra.mxu0 %v1184
    %2417 = vmatprep.subr.bf16.mxu0 %v1191
    %2418 = vmatpush1.bf16.msra.mxu0 %v1190
    %2419 = vmatprep.subr.bf16.mxu0 %v1197
    %2420 = vmatpush1.bf16.msra.mxu0 %v1196
    %2421 = vmatprep.subr.bf16.mxu0 %v1203
    %2422 = vmatpush1.bf16.msra.mxu0 %v1202
    %2423 = vmatprep.subr.bf16.mxu0 %v1209
    %2424 = vmatpush1.bf16.msra.mxu0 %v1208
    %2425 = vmatprep.mubr.bf16.mxu0 %v2351
    %2426 = vmatmul.mubr.bf16.gmra.mrb[0].mxu0 %v2248
    %v2427 = vpop.f32.mrb[0].mxu0
    %v2428 = vadd.f32 0.0, %v2427
    %v2429 = vpop.f32.mrb[0].mxu0
    %v2430 = vadd.f32 0.0, %v2429
    %v2431 = vpop.f32.mrb[0].mxu0
    %v2432 = vpop.f32.mrb[0].mxu0
    %2433 = vdwg.mxu0
    %2434 = vmatprep.subr.bf16.mxu0 %v1121
    %2435 = vmatpush1.bf16.msra.mxu0 %v1120
    %2436 = vmatprep.subr.bf16.mxu0 %v1127
    %2437 = vmatpush1.bf16.msra.mxu0 %v1126
    %2438 = vmatprep.subr.bf16.mxu0 %v1133
    %2439 = vmatpush1.bf16.msra.mxu0 %v1132
    %2440 = vmatprep.subr.bf16.mxu0 %v1139
    %2441 = vmatpush1.bf16.msra.mxu0 %v1138
    %2442 = vmatprep.subr.bf16.mxu0 %v1145
    %2443 = vmatpush1.bf16.msra.mxu0 %v1144
    %2444 = vmatprep.subr.bf16.mxu0 %v1151
    %2445 = vmatpush1.bf16.msra.mxu0 %v1150
    %2446 = vmatprep.subr.bf16.mxu0 %v1157
    %2447 = vmatpush1.bf16.msra.mxu0 %v1156
    %2448 = vmatprep.subr.bf16.mxu0 %v1163
    %2449 = vmatpush1.bf16.msra.mxu0 %v1162
    %2450 = vmatprep.subr.bf16.mxu0 %v1169
    %2451 = vmatpush1.bf16.msra.mxu0 %v1168
    %2452 = vmatprep.subr.bf16.mxu0 %v1175
    %2453 = vmatpush1.bf16.msra.mxu0 %v1174
    %2454 = vmatprep.subr.bf16.mxu0 %v1181
    %2455 = vmatpush1.bf16.msra.mxu0 %v1180
    %2456 = vmatprep.subr.bf16.mxu0 %v1187
    %2457 = vmatpush1.bf16.msra.mxu0 %v1186
    %2458 = vmatprep.subr.bf16.mxu0 %v1193
    %2459 = vmatpush1.bf16.msra.mxu0 %v1192
    %2460 = vmatprep.subr.bf16.mxu0 %v1199
    %2461 = vmatpush1.bf16.msra.mxu0 %v1198
    %2462 = vmatprep.subr.bf16.mxu0 %v1205
    %2463 = vmatpush1.bf16.msra.mxu0 %v1204
    %2464 = vmatprep.subr.bf16.mxu0 %v1211
    %2465 = vmatpush1.bf16.msra.mxu0 %v1210
    %2466 = vmatprep.mubr.bf16.mxu0 %v2351
    %2467 = vmatmul.mubr.bf16.gmra.mrb[0].mxu0 %v2248
    %v2468 = vpop.f32.mrb[0].mxu0
    %v2469 = vadd.f32 0.0, %v2468
    %v2470 = vpop.f32.mrb[0].mxu0
    %v2471 = vadd.f32 0.0, %v2470
    %v2472 = vpop.f32.mrb[0].mxu0
    %v2473 = vpop.f32.mrb[0].mxu0
    %2474 = vdwg.mxu0
    %v2475 = vadd.f32 %v2387, %v229
    %v2476 = vadd.f32 %v2389, %v233
    %v2477 = vadd.f32 %v2428, %v237
    %v2478 = vadd.f32 %v2430, %v247
    %v2479 = vadd.f32 %v2469, %v251
    %v2480 = vadd.f32 %v2471, %v255
    %v2481 = vadd.f32 %v2475, %v2478
    %v2482 = vxor.u32 %v2481, 2147483648
    %v2483 = vmul.f32 %v2482, 1.442695
    %v2484 = vpow.pop %v2483
    %v2485 = vadd.f32 %v2484, 1.0
    %v2486 = vrcp.pop %v2485
    %v2487 = vmul.f32 1.0, %v2486
    %v2488 = vadd.f32 %v2476, %v2479
    %v2489 = vxor.u32 %v2488, 2147483648
    %v2490 = vmul.f32 %v2489, 1.442695
    %v2491 = vpow.pop %v2490
    %v2492 = vadd.f32 %v2491, 1.0
    %v2493 = vrcp.pop %v2492
    %v2494 = vmul.f32 1.0, %v2493
    %v2495 = vmul.f32 %v2487, %v2480
    %v2496 = vadd.f32 %v2477, %v2495
    %v2497 = vtanh.pop %v2496
    %v2498 = vsub.f32 1.0, %v2494
    %v2499 = vmul.f32 %v2498, %v2497
    %v2500 = vmul.f32 %v2494, %v2240
    %v2501 = vadd.f32 %v2499, %v2500
    %vm2502 = vcmp.eq.s32.totalorder %v75, 4
    %v2503 = vsel %vm2502, 1, 0
    %2504 = vset.pattern.permute.xlu0 0
    %2505 = vperm.xlu0 %2504, %v2503
    %v2506 = vpop.permute.xlu0 %2505
    %vm2507 = vcmp.eq.s32.totalorder %v2506, 1
    %v2508 = vsel %vm2507, %v2501, %v2247
    %v2509 = vpack.c.bf16 %v2350, %v2350
    %2510 = vmatprep.subr.bf16.mxu0 %v575
    %2511 = vmatpush1.bf16.msra.mxu0 %v574
    %2512 = vmatprep.subr.bf16.mxu0 %v578
    %2513 = vmatpush1.bf16.msra.mxu0 %v577
    %2514 = vmatprep.subr.bf16.mxu0 %v581
    %2515 = vmatpush1.bf16.msra.mxu0 %v580
    %2516 = vmatprep.subr.bf16.mxu0 %v584
    %2517 = vmatpush1.bf16.msra.mxu0 %v583
    %2518 = vmatprep.subr.bf16.mxu0 %v587
    %2519 = vmatpush1.bf16.msra.mxu0 %v586
    %2520 = vmatprep.subr.bf16.mxu0 %v590
    %2521 = vmatpush1.bf16.msra.mxu0 %v589
    %2522 = vmatprep.subr.bf16.mxu0 %v593
    %2523 = vmatpush1.bf16.msra.mxu0 %v592
    %2524 = vmatprep.subr.bf16.mxu0 %v596
    %2525 = vmatpush1.bf16.msra.mxu0 %v595
    %2526 = vmatprep.subr.bf16.mxu0 0
    %2527 = vmatpush1.bf16.msra.mxu0 0
    %2528 = vmatprep.subr.bf16.mxu0 0
    %2529 = vmatpush1.bf16.msra.mxu0 0
    %2530 = vmatprep.subr.bf16.mxu0 0
    %2531 = vmatpush1.bf16.msra.mxu0 0
    %2532 = vmatprep.subr.bf16.mxu0 0
    %2533 = vmatpush1.bf16.msra.mxu0 0
    %2534 = vmatprep.subr.bf16.mxu0 0
    %2535 = vmatpush1.bf16.msra.mxu0 0
    %2536 = vmatprep.subr.bf16.mxu0 0
    %2537 = vmatpush1.bf16.msra.mxu0 0
    %2538 = vmatprep.subr.bf16.mxu0 0
    %2539 = vmatpush1.bf16.msra.mxu0 0
    %2540 = vmatprep.subr.bf16.mxu0 0
    %2541 = vmatpush1.bf16.msra.mxu0 0
    %2542 = vmatprep.mubr.bf16.mxu0 0
    %2543 = vmatmul.mubr.bf16.gmra.mrb[0].mxu0 %v2509
    %v2544 = vpop.f32.mrb[0].mxu0
    %v2545 = vadd.f32 %v211, %v2544
    %v2546 = vpop.f32.mrb[0].mxu0
    %v2547 = vadd.f32 %v215, %v2546
    %v2548 = vpop.f32.mrb[0].mxu0
    %v2549 = vpop.f32.mrb[0].mxu0
    %2550 = vdwg.mxu0
    %2551 = vmatprep.subr.bf16.mxu0 0
    %2552 = vmatpush1.bf16.msra.mxu0 %v576
    %2553 = vmatprep.subr.bf16.mxu0 0
    %2554 = vmatpush1.bf16.msra.mxu0 %v579
    %2555 = vmatprep.subr.bf16.mxu0 0
    %2556 = vmatpush1.bf16.msra.mxu0 %v582
    %2557 = vmatprep.subr.bf16.mxu0 0
    %2558 = vmatpush1.bf16.msra.mxu0 %v585
    %2559 = vmatprep.subr.bf16.mxu0 0
    %2560 = vmatpush1.bf16.msra.mxu0 %v588
    %2561 = vmatprep.subr.bf16.mxu0 0
    %2562 = vmatpush1.bf16.msra.mxu0 %v591
    %2563 = vmatprep.subr.bf16.mxu0 0
    %2564 = vmatpush1.bf16.msra.mxu0 %v594
    %2565 = vmatprep.subr.bf16.mxu0 0
    %2566 = vmatpush1.bf16.msra.mxu0 %v597
    %2567 = vmatprep.subr.bf16.mxu0 0
    %2568 = vmatpush1.bf16.msra.mxu0 0
    %2569 = vmatprep.subr.bf16.mxu0 0
    %2570 = vmatpush1.bf16.msra.mxu0 0
    %2571 = vmatprep.subr.bf16.mxu0 0
    %2572 = vmatpush1.bf16.msra.mxu0 0
    %2573 = vmatprep.subr.bf16.mxu0 0
    %2574 = vmatpush1.bf16.msra.mxu0 0
    %2575 = vmatprep.subr.bf16.mxu0 0
    %2576 = vmatpush1.bf16.msra.mxu0 0
    %2577 = vmatprep.subr.bf16.mxu0 0
    %2578 = vmatpush1.bf16.msra.mxu0 0
    %2579 = vmatprep.subr.bf16.mxu0 0
    %2580 = vmatpush1.bf16.msra.mxu0 0
    %2581 = vmatprep.subr.bf16.mxu0 0
    %2582 = vmatpush1.bf16.msra.mxu0 0
    %2583 = vmatprep.mubr.bf16.mxu0 0
    %2584 = vmatmul.mubr.bf16.gmra.mrb[0].mxu0 %v2509
    %v2585 = vpop.f32.mrb[0].mxu0
    %v2586 = vadd.f32 %v219, %v2585
    %v2587 = vpop.f32.mrb[0].mxu0
    %v2588 = vpop.f32.mrb[0].mxu0
    %v2589 = vpop.f32.mrb[0].mxu0
    %2590 = vdwg.mxu0
    %v2591 = vadd.f32 %v421, %v2545
    %v2592 = vxor.u32 %v2591, 2147483648
    %v2593 = vmul.f32 %v2592, 1.442695
    %v2594 = vpow.pop %v2593
    %v2595 = vadd.f32 %v2594, 1.0
    %v2596 = vrcp.pop %v2595
    %v2597 = vmul.f32 1.0, %v2596
    %v2598 = vadd.f32 %v423, %v2547
    %v2599 = vxor.u32 %v2598, 2147483648
    %v2600 = vmul.f32 %v2599, 1.442695
    %v2601 = vpow.pop %v2600
    %v2602 = vadd.f32 %v2601, 1.0
    %v2603 = vrcp.pop %v2602
    %v2604 = vmul.f32 1.0, %v2603
    %v2605 = vmul.f32 %v2597, %v2586
    %v2606 = vadd.f32 %v488, %v2605
    %v2607 = vtanh.pop %v2606
    %v2608 = vsub.f32 1.0, %v2604
    %v2609 = vmul.f32 %v2608, %v2607
    %v2610 = vmul.f32 %v2604, %v2350
    %v2611 = vadd.f32 %v2609, %v2610
    %v2612 = vpack.c.bf16 %v2501, %v2501
    %2613 = vmatprep.subr.bf16.mxu0 %v1117
    %2614 = vmatpush1.bf16.msra.mxu0 %v1116
    %2615 = vmatprep.subr.bf16.mxu0 %v1123
    %2616 = vmatpush1.bf16.msra.mxu0 %v1122
    %2617 = vmatprep.subr.bf16.mxu0 %v1129
    %2618 = vmatpush1.bf16.msra.mxu0 %v1128
    %2619 = vmatprep.subr.bf16.mxu0 %v1135
    %2620 = vmatpush1.bf16.msra.mxu0 %v1134
    %2621 = vmatprep.subr.bf16.mxu0 %v1141
    %2622 = vmatpush1.bf16.msra.mxu0 %v1140
    %2623 = vmatprep.subr.bf16.mxu0 %v1147
    %2624 = vmatpush1.bf16.msra.mxu0 %v1146
    %2625 = vmatprep.subr.bf16.mxu0 %v1153
    %2626 = vmatpush1.bf16.msra.mxu0 %v1152
    %2627 = vmatprep.subr.bf16.mxu0 %v1159
    %2628 = vmatpush1.bf16.msra.mxu0 %v1158
    %2629 = vmatprep.subr.bf16.mxu0 %v1165
    %2630 = vmatpush1.bf16.msra.mxu0 %v1164
    %2631 = vmatprep.subr.bf16.mxu0 %v1171
    %2632 = vmatpush1.bf16.msra.mxu0 %v1170
    %2633 = vmatprep.subr.bf16.mxu0 %v1177
    %2634 = vmatpush1.bf16.msra.mxu0 %v1176
    %2635 = vmatprep.subr.bf16.mxu0 %v1183
    %2636 = vmatpush1.bf16.msra.mxu0 %v1182
    %2637 = vmatprep.subr.bf16.mxu0 %v1189
    %2638 = vmatpush1.bf16.msra.mxu0 %v1188
    %2639 = vmatprep.subr.bf16.mxu0 %v1195
    %2640 = vmatpush1.bf16.msra.mxu0 %v1194
    %2641 = vmatprep.subr.bf16.mxu0 %v1201
    %2642 = vmatpush1.bf16.msra.mxu0 %v1200
    %2643 = vmatprep.subr.bf16.mxu0 %v1207
    %2644 = vmatpush1.bf16.msra.mxu0 %v1206
    %2645 = vmatprep.mubr.bf16.mxu0 %v2612
    %2646 = vmatmul.mubr.bf16.gmra.mrb[0].mxu0 %v2509
    %v2647 = vpop.f32.mrb[0].mxu0
    %v2648 = vadd.f32 0.0, %v2647
    %v2649 = vpop.f32.mrb[0].mxu0
    %v2650 = vadd.f32 0.0, %v2649
    %v2651 = vpop.f32.mrb[0].mxu0
    %v2652 = vpop.f32.mrb[0].mxu0
    %2653 = vdwg.mxu0
    %2654 = vmatprep.subr.bf16.mxu0 %v1119
    %2655 = vmatpush1.bf16.msra.mxu0 %v1118
    %2656 = vmatprep.subr.bf16.mxu0 %v1125
    %2657 = vmatpush1.bf16.msra.mxu0 %v1124
    %2658 = vmatprep.subr.bf16.mxu0 %v1131
    %2659 = vmatpush1.bf16.msra.mxu0 %v1130
    %2660 = vmatprep.subr.bf16.mxu0 %v1137
    %2661 = vmatpush1.bf16.msra.mxu0 %v1136
    %2662 = vmatprep.subr.bf16.mxu0 %v1143
    %2663 = vmatpush1.bf16.msra.mxu0 %v1142
    %2664 = vmatprep.subr.bf16.mxu0 %v1149
    %2665 = vmatpush1.bf16.msra.mxu0 %v1148
    %2666 = vmatprep.subr.bf16.mxu0 %v1155
    %2667 = vmatpush1.bf16.msra.mxu0 %v1154
    %2668 = vmatprep.subr.bf16.mxu0 %v1161
    %2669 = vmatpush1.bf16.msra.mxu0 %v1160
    %2670 = vmatprep.subr.bf16.mxu0 %v1167
    %2671 = vmatpush1.bf16.msra.mxu0 %v1166
    %2672 = vmatprep.subr.bf16.mxu0 %v1173
    %2673 = vmatpush1.bf16.msra.mxu0 %v1172
    %2674 = vmatprep.subr.bf16.mxu0 %v1179
    %2675 = vmatpush1.bf16.msra.mxu0 %v1178
    %2676 = vmatprep.subr.bf16.mxu0 %v1185
    %2677 = vmatpush1.bf16.msra.mxu0 %v1184
    %2678 = vmatprep.subr.bf16.mxu0 %v1191
    %2679 = vmatpush1.bf16.msra.mxu0 %v1190
    %2680 = vmatprep.subr.bf16.mxu0 %v1197
    %2681 = vmatpush1.bf16.msra.mxu0 %v1196
    %2682 = vmatprep.subr.bf16.mxu0 %v1203
    %2683 = vmatpush1.bf16.msra.mxu0 %v1202
    %2684 = vmatprep.subr.bf16.mxu0 %v1209
    %2685 = vmatpush1.bf16.msra.mxu0 %v1208
    %2686 = vmatprep.mubr.bf16.mxu0 %v2612
    %2687 = vmatmul.mubr.bf16.gmra.mrb[0].mxu0 %v2509
    %v2688 = vpop.f32.mrb[0].mxu0
    %v2689 = vadd.f32 0.0, %v2688
    %v2690 = vpop.f32.mrb[0].mxu0
    %v2691 = vadd.f32 0.0, %v2690
    %v2692 = vpop.f32.mrb[0].mxu0
    %v2693 = vpop.f32.mrb[0].mxu0
    %2694 = vdwg.mxu0
    %2695 = vmatprep.subr.bf16.mxu0 %v1121
    %2696 = vmatpush1.bf16.msra.mxu0 %v1120
    %2697 = vmatprep.subr.bf16.mxu0 %v1127
    %2698 = vmatpush1.bf16.msra.mxu0 %v1126
    %2699 = vmatprep.subr.bf16.mxu0 %v1133
    %2700 = vmatpush1.bf16.msra.mxu0 %v1132
    %2701 = vmatprep.subr.bf16.mxu0 %v1139
    %2702 = vmatpush1.bf16.msra.mxu0 %v1138
    %2703 = vmatprep.subr.bf16.mxu0 %v1145
    %2704 = vmatpush1.bf16.msra.mxu0 %v1144
    %2705 = vmatprep.subr.bf16.mxu0 %v1151
    %2706 = vmatpush1.bf16.msra.mxu0 %v1150
    %2707 = vmatprep.subr.bf16.mxu0 %v1157
    %2708 = vmatpush1.bf16.msra.mxu0 %v1156
    %2709 = vmatprep.subr.bf16.mxu0 %v1163
    %2710 = vmatpush1.bf16.msra.mxu0 %v1162
    %2711 = vmatprep.subr.bf16.mxu0 %v1169
    %2712 = vmatpush1.bf16.msra.mxu0 %v1168
    %2713 = vmatprep.subr.bf16.mxu0 %v1175
    %2714 = vmatpush1.bf16.msra.mxu0 %v1174
    %2715 = vmatprep.subr.bf16.mxu0 %v1181
    %2716 = vmatpush1.bf16.msra.mxu0 %v1180
    %2717 = vmatprep.subr.bf16.mxu0 %v1187
    %2718 = vmatpush1.bf16.msra.mxu0 %v1186
    %2719 = vmatprep.subr.bf16.mxu0 %v1193
    %2720 = vmatpush1.bf16.msra.mxu0 %v1192
    %2721 = vmatprep.subr.bf16.mxu0 %v1199
    %2722 = vmatpush1.bf16.msra.mxu0 %v1198
    %2723 = vmatprep.subr.bf16.mxu0 %v1205
    %2724 = vmatpush1.bf16.msra.mxu0 %v1204
    %2725 = vmatprep.subr.bf16.mxu0 %v1211
    %2726 = vmatpush1.bf16.msra.mxu0 %v1210
    %2727 = vmatprep.mubr.bf16.mxu0 %v2612
    %2728 = vmatmul.mubr.bf16.gmra.mrb[0].mxu0 %v2509
    %v2729 = vpop.f32.mrb[0].mxu0
    %v2730 = vadd.f32 0.0, %v2729
    %v2731 = vpop.f32.mrb[0].mxu0
    %v2732 = vadd.f32 0.0, %v2731
    %v2733 = vpop.f32.mrb[0].mxu0
    %v2734 = vpop.f32.mrb[0].mxu0
    %2735 = vdwg.mxu0
    %v2736 = vadd.f32 %v2648, %v229
    %v2737 = vadd.f32 %v2650, %v233
    %v2738 = vadd.f32 %v2689, %v237
    %v2739 = vadd.f32 %v2691, %v247
    %v2740 = vadd.f32 %v2730, %v251
    %v2741 = vadd.f32 %v2732, %v255
    %v2742 = vadd.f32 %v2736, %v2739
    %v2743 = vxor.u32 %v2742, 2147483648
    %v2744 = vmul.f32 %v2743, 1.442695
    %v2745 = vpow.pop %v2744
    %v2746 = vadd.f32 %v2745, 1.0
    %v2747 = vrcp.pop %v2746
    %v2748 = vmul.f32 1.0, %v2747
    %v2749 = vadd.f32 %v2737, %v2740
    %v2750 = vxor.u32 %v2749, 2147483648
    %v2751 = vmul.f32 %v2750, 1.442695
    %v2752 = vpow.pop %v2751
    %v2753 = vadd.f32 %v2752, 1.0
    %v2754 = vrcp.pop %v2753
    %v2755 = vmul.f32 1.0, %v2754
    %v2756 = vmul.f32 %v2748, %v2741
    %v2757 = vadd.f32 %v2738, %v2756
    %v2758 = vtanh.pop %v2757
    %v2759 = vsub.f32 1.0, %v2755
    %v2760 = vmul.f32 %v2759, %v2758
    %v2761 = vmul.f32 %v2755, %v2501
    %v2762 = vadd.f32 %v2760, %v2761
    %vm2763 = vcmp.eq.s32.totalorder %v75, 5
    %v2764 = vsel %vm2763, 1, 0
    %2765 = vset.pattern.permute.xlu0 0
    %2766 = vperm.xlu0 %2765, %v2764
    %v2767 = vpop.permute.xlu0 %2766
    %vm2768 = vcmp.eq.s32.totalorder %v2767, 1
    %v2769 = vsel %vm2768, %v2762, %v2508
    %v2770 = vpack.c.bf16 %v2611, %v2611
    %2771 = vmatprep.subr.bf16.mxu0 %v575
    %2772 = vmatpush1.bf16.msra.mxu0 %v574
    %2773 = vmatprep.subr.bf16.mxu0 %v578
    %2774 = vmatpush1.bf16.msra.mxu0 %v577
    %2775 = vmatprep.subr.bf16.mxu0 %v581
    %2776 = vmatpush1.bf16.msra.mxu0 %v580
    %2777 = vmatprep.subr.bf16.mxu0 %v584
    %2778 = vmatpush1.bf16.msra.mxu0 %v583
    %2779 = vmatprep.subr.bf16.mxu0 %v587
    %2780 = vmatpush1.bf16.msra.mxu0 %v586
    %2781 = vmatprep.subr.bf16.mxu0 %v590
    %2782 = vmatpush1.bf16.msra.mxu0 %v589
    %2783 = vmatprep.subr.bf16.mxu0 %v593
    %2784 = vmatpush1.bf16.msra.mxu0 %v592
    %2785 = vmatprep.subr.bf16.mxu0 %v596
    %2786 = vmatpush1.bf16.msra.mxu0 %v595
    %2787 = vmatprep.subr.bf16.mxu0 0
    %2788 = vmatpush1.bf16.msra.mxu0 0
    %2789 = vmatprep.subr.bf16.mxu0 0
    %2790 = vmatpush1.bf16.msra.mxu0 0
    %2791 = vmatprep.subr.bf16.mxu0 0
    %2792 = vmatpush1.bf16.msra.mxu0 0
    %2793 = vmatprep.subr.bf16.mxu0 0
    %2794 = vmatpush1.bf16.msra.mxu0 0
    %2795 = vmatprep.subr.bf16.mxu0 0
    %2796 = vmatpush1.bf16.msra.mxu0 0
    %2797 = vmatprep.subr.bf16.mxu0 0
    %2798 = vmatpush1.bf16.msra.mxu0 0
    %2799 = vmatprep.subr.bf16.mxu0 0
    %2800 = vmatpush1.bf16.msra.mxu0 0
    %2801 = vmatprep.subr.bf16.mxu0 0
    %2802 = vmatpush1.bf16.msra.mxu0 0
    %2803 = vmatprep.mubr.bf16.mxu0 0
    %2804 = vmatmul.mubr.bf16.gmra.mrb[0].mxu0 %v2770
    %v2805 = vpop.f32.mrb[0].mxu0
    %v2806 = vadd.f32 %v211, %v2805
    %v2807 = vpop.f32.mrb[0].mxu0
    %v2808 = vadd.f32 %v215, %v2807
    %v2809 = vpop.f32.mrb[0].mxu0
    %v2810 = vpop.f32.mrb[0].mxu0
    %2811 = vdwg.mxu0
    %2812 = vmatprep.subr.bf16.mxu0 0
    %2813 = vmatpush1.bf16.msra.mxu0 %v576
    %2814 = vmatprep.subr.bf16.mxu0 0
    %2815 = vmatpush1.bf16.msra.mxu0 %v579
    %2816 = vmatprep.subr.bf16.mxu0 0
    %2817 = vmatpush1.bf16.msra.mxu0 %v582
    %2818 = vmatprep.subr.bf16.mxu0 0
    %2819 = vmatpush1.bf16.msra.mxu0 %v585
    %2820 = vmatprep.subr.bf16.mxu0 0
    %2821 = vmatpush1.bf16.msra.mxu0 %v588
    %2822 = vmatprep.subr.bf16.mxu0 0
    %2823 = vmatpush1.bf16.msra.mxu0 %v591
    %2824 = vmatprep.subr.bf16.mxu0 0
    %2825 = vmatpush1.bf16.msra.mxu0 %v594
    %2826 = vmatprep.subr.bf16.mxu0 0
    %2827 = vmatpush1.bf16.msra.mxu0 %v597
    %2828 = vmatprep.subr.bf16.mxu0 0
    %2829 = vmatpush1.bf16.msra.mxu0 0
    %2830 = vmatprep.subr.bf16.mxu0 0
    %2831 = vmatpush1.bf16.msra.mxu0 0
    %2832 = vmatprep.subr.bf16.mxu0 0
    %2833 = vmatpush1.bf16.msra.mxu0 0
    %2834 = vmatprep.subr.bf16.mxu0 0
    %2835 = vmatpush1.bf16.msra.mxu0 0
    %2836 = vmatprep.subr.bf16.mxu0 0
    %2837 = vmatpush1.bf16.msra.mxu0 0
    %2838 = vmatprep.subr.bf16.mxu0 0
    %2839 = vmatpush1.bf16.msra.mxu0 0
    %2840 = vmatprep.subr.bf16.mxu0 0
    %2841 = vmatpush1.bf16.msra.mxu0 0
    %2842 = vmatprep.subr.bf16.mxu0 0
    %2843 = vmatpush1.bf16.msra.mxu0 0
    %2844 = vmatprep.mubr.bf16.mxu0 0
    %2845 = vmatmul.mubr.bf16.gmra.mrb[0].mxu0 %v2770
    %v2846 = vpop.f32.mrb[0].mxu0
    %v2847 = vadd.f32 %v219, %v2846
    %v2848 = vpop.f32.mrb[0].mxu0
    %v2849 = vpop.f32.mrb[0].mxu0
    %v2850 = vpop.f32.mrb[0].mxu0
    %2851 = vdwg.mxu0
    %v2852 = vadd.f32 %v425, %v2806
    %v2853 = vxor.u32 %v2852, 2147483648
    %v2854 = vmul.f32 %v2853, 1.442695
    %v2855 = vpow.pop %v2854
    %v2856 = vadd.f32 %v2855, 1.0
    %v2857 = vrcp.pop %v2856
    %v2858 = vmul.f32 1.0, %v2857
    %v2859 = vadd.f32 %v427, %v2808
    %v2860 = vxor.u32 %v2859, 2147483648
    %v2861 = vmul.f32 %v2860, 1.442695
    %v2862 = vpow.pop %v2861
    %v2863 = vadd.f32 %v2862, 1.0
    %v2864 = vrcp.pop %v2863
    %v2865 = vmul.f32 1.0, %v2864
    %v2866 = vmul.f32 %v2858, %v2847
    %v2867 = vadd.f32 %v491, %v2866
    %v2868 = vtanh.pop %v2867
    %v2869 = vsub.f32 1.0, %v2865
    %v2870 = vmul.f32 %v2869, %v2868
    %v2871 = vmul.f32 %v2865, %v2611
    %v2872 = vadd.f32 %v2870, %v2871
    %v2873 = vpack.c.bf16 %v2762, %v2762
    %2874 = vmatprep.subr.bf16.mxu0 %v1117
    %2875 = vmatpush1.bf16.msra.mxu0 %v1116
    %2876 = vmatprep.subr.bf16.mxu0 %v1123
    %2877 = vmatpush1.bf16.msra.mxu0 %v1122
    %2878 = vmatprep.subr.bf16.mxu0 %v1129
    %2879 = vmatpush1.bf16.msra.mxu0 %v1128
    %2880 = vmatprep.subr.bf16.mxu0 %v1135
    %2881 = vmatpush1.bf16.msra.mxu0 %v1134
    %2882 = vmatprep.subr.bf16.mxu0 %v1141
    %2883 = vmatpush1.bf16.msra.mxu0 %v1140
    %2884 = vmatprep.subr.bf16.mxu0 %v1147
    %2885 = vmatpush1.bf16.msra.mxu0 %v1146
    %2886 = vmatprep.subr.bf16.mxu0 %v1153
    %2887 = vmatpush1.bf16.msra.mxu0 %v1152
    %2888 = vmatprep.subr.bf16.mxu0 %v1159
    %2889 = vmatpush1.bf16.msra.mxu0 %v1158
    %2890 = vmatprep.subr.bf16.mxu0 %v1165
    %2891 = vmatpush1.bf16.msra.mxu0 %v1164
    %2892 = vmatprep.subr.bf16.mxu0 %v1171
    %2893 = vmatpush1.bf16.msra.mxu0 %v1170
    %2894 = vmatprep.subr.bf16.mxu0 %v1177
    %2895 = vmatpush1.bf16.msra.mxu0 %v1176
    %2896 = vmatprep.subr.bf16.mxu0 %v1183
    %2897 = vmatpush1.bf16.msra.mxu0 %v1182
    %2898 = vmatprep.subr.bf16.mxu0 %v1189
    %2899 = vmatpush1.bf16.msra.mxu0 %v1188
    %2900 = vmatprep.subr.bf16.mxu0 %v1195
    %2901 = vmatpush1.bf16.msra.mxu0 %v1194
    %2902 = vmatprep.subr.bf16.mxu0 %v1201
    %2903 = vmatpush1.bf16.msra.mxu0 %v1200
    %2904 = vmatprep.subr.bf16.mxu0 %v1207
    %2905 = vmatpush1.bf16.msra.mxu0 %v1206
    %2906 = vmatprep.mubr.bf16.mxu0 %v2873
    %2907 = vmatmul.mubr.bf16.gmra.mrb[0].mxu0 %v2770
    %v2908 = vpop.f32.mrb[0].mxu0
    %v2909 = vadd.f32 0.0, %v2908
    %v2910 = vpop.f32.mrb[0].mxu0
    %v2911 = vadd.f32 0.0, %v2910
    %v2912 = vpop.f32.mrb[0].mxu0
    %v2913 = vpop.f32.mrb[0].mxu0
    %2914 = vdwg.mxu0
    %2915 = vmatprep.subr.bf16.mxu0 %v1119
    %2916 = vmatpush1.bf16.msra.mxu0 %v1118
    %2917 = vmatprep.subr.bf16.mxu0 %v1125
    %2918 = vmatpush1.bf16.msra.mxu0 %v1124
    %2919 = vmatprep.subr.bf16.mxu0 %v1131
    %2920 = vmatpush1.bf16.msra.mxu0 %v1130
    %2921 = vmatprep.subr.bf16.mxu0 %v1137
    %2922 = vmatpush1.bf16.msra.mxu0 %v1136
    %2923 = vmatprep.subr.bf16.mxu0 %v1143
    %2924 = vmatpush1.bf16.msra.mxu0 %v1142
    %2925 = vmatprep.subr.bf16.mxu0 %v1149
    %2926 = vmatpush1.bf16.msra.mxu0 %v1148
    %2927 = vmatprep.subr.bf16.mxu0 %v1155
    %2928 = vmatpush1.bf16.msra.mxu0 %v1154
    %2929 = vmatprep.subr.bf16.mxu0 %v1161
    %2930 = vmatpush1.bf16.msra.mxu0 %v1160
    %2931 = vmatprep.subr.bf16.mxu0 %v1167
    %2932 = vmatpush1.bf16.msra.mxu0 %v1166
    %2933 = vmatprep.subr.bf16.mxu0 %v1173
    %2934 = vmatpush1.bf16.msra.mxu0 %v1172
    %2935 = vmatprep.subr.bf16.mxu0 %v1179
    %2936 = vmatpush1.bf16.msra.mxu0 %v1178
    %2937 = vmatprep.subr.bf16.mxu0 %v1185
    %2938 = vmatpush1.bf16.msra.mxu0 %v1184
    %2939 = vmatprep.subr.bf16.mxu0 %v1191
    %2940 = vmatpush1.bf16.msra.mxu0 %v1190
    %2941 = vmatprep.subr.bf16.mxu0 %v1197
    %2942 = vmatpush1.bf16.msra.mxu0 %v1196
    %2943 = vmatprep.subr.bf16.mxu0 %v1203
    %2944 = vmatpush1.bf16.msra.mxu0 %v1202
    %2945 = vmatprep.subr.bf16.mxu0 %v1209
    %2946 = vmatpush1.bf16.msra.mxu0 %v1208
    %2947 = vmatprep.mubr.bf16.mxu0 %v2873
    %2948 = vmatmul.mubr.bf16.gmra.mrb[0].mxu0 %v2770
    %v2949 = vpop.f32.mrb[0].mxu0
    %v2950 = vadd.f32 0.0, %v2949
    %v2951 = vpop.f32.mrb[0].mxu0
    %v2952 = vadd.f32 0.0, %v2951
    %v2953 = vpop.f32.mrb[0].mxu0
    %v2954 = vpop.f32.mrb[0].mxu0
    %2955 = vdwg.mxu0
    %2956 = vmatprep.subr.bf16.mxu0 %v1121
    %2957 = vmatpush1.bf16.msra.mxu0 %v1120
    %2958 = vmatprep.subr.bf16.mxu0 %v1127
    %2959 = vmatpush1.bf16.msra.mxu0 %v1126
    %2960 = vmatprep.subr.bf16.mxu0 %v1133
    %2961 = vmatpush1.bf16.msra.mxu0 %v1132
    %2962 = vmatprep.subr.bf16.mxu0 %v1139
    %2963 = vmatpush1.bf16.msra.mxu0 %v1138
    %2964 = vmatprep.subr.bf16.mxu0 %v1145
    %2965 = vmatpush1.bf16.msra.mxu0 %v1144
    %2966 = vmatprep.subr.bf16.mxu0 %v1151
    %2967 = vmatpush1.bf16.msra.mxu0 %v1150
    %2968 = vmatprep.subr.bf16.mxu0 %v1157
    %2969 = vmatpush1.bf16.msra.mxu0 %v1156
    %2970 = vmatprep.subr.bf16.mxu0 %v1163
    %2971 = vmatpush1.bf16.msra.mxu0 %v1162
    %2972 = vmatprep.subr.bf16.mxu0 %v1169
    %2973 = vmatpush1.bf16.msra.mxu0 %v1168
    %2974 = vmatprep.subr.bf16.mxu0 %v1175
    %2975 = vmatpush1.bf16.msra.mxu0 %v1174
    %2976 = vmatprep.subr.bf16.mxu0 %v1181
    %2977 = vmatpush1.bf16.msra.mxu0 %v1180
    %2978 = vmatprep.subr.bf16.mxu0 %v1187
    %2979 = vmatpush1.bf16.msra.mxu0 %v1186
    %2980 = vmatprep.subr.bf16.mxu0 %v1193
    %2981 = vmatpush1.bf16.msra.mxu0 %v1192
    %2982 = vmatprep.subr.bf16.mxu0 %v1199
    %2983 = vmatpush1.bf16.msra.mxu0 %v1198
    %2984 = vmatprep.subr.bf16.mxu0 %v1205
    %2985 = vmatpush1.bf16.msra.mxu0 %v1204
    %2986 = vmatprep.subr.bf16.mxu0 %v1211
    %2987 = vmatpush1.bf16.msra.mxu0 %v1210
    %2988 = vmatprep.mubr.bf16.mxu0 %v2873
    %2989 = vmatmul.mubr.bf16.gmra.mrb[0].mxu0 %v2770
    %v2990 = vpop.f32.mrb[0].mxu0
    %v2991 = vadd.f32 0.0, %v2990
    %v2992 = vpop.f32.mrb[0].mxu0
    %v2993 = vadd.f32 0.0, %v2992
    %v2994 = vpop.f32.mrb[0].mxu0
    %v2995 = vpop.f32.mrb[0].mxu0
    %2996 = vdwg.mxu0
    %v2997 = vadd.f32 %v2909, %v229
    %v2998 = vadd.f32 %v2911, %v233
    %v2999 = vadd.f32 %v2950, %v237
    %v3000 = vadd.f32 %v2952, %v247
    %v3001 = vadd.f32 %v2991, %v251
    %v3002 = vadd.f32 %v2993, %v255
    %v3003 = vadd.f32 %v2997, %v3000
    %v3004 = vxor.u32 %v3003, 2147483648
    %v3005 = vmul.f32 %v3004, 1.442695
    %v3006 = vpow.pop %v3005
    %v3007 = vadd.f32 %v3006, 1.0
    %v3008 = vrcp.pop %v3007
    %v3009 = vmul.f32 1.0, %v3008
    %v3010 = vadd.f32 %v2998, %v3001
    %v3011 = vxor.u32 %v3010, 2147483648
    %v3012 = vmul.f32 %v3011, 1.442695
    %v3013 = vpow.pop %v3012
    %v3014 = vadd.f32 %v3013, 1.0
    %v3015 = vrcp.pop %v3014
    %v3016 = vmul.f32 1.0, %v3015
    %v3017 = vmul.f32 %v3009, %v3002
    %v3018 = vadd.f32 %v2999, %v3017
    %v3019 = vtanh.pop %v3018
    %v3020 = vsub.f32 1.0, %v3016
    %v3021 = vmul.f32 %v3020, %v3019
    %v3022 = vmul.f32 %v3016, %v2762
    %v3023 = vadd.f32 %v3021, %v3022
    %vm3024 = vcmp.eq.s32.totalorder %v75, 6
    %v3025 = vsel %vm3024, 1, 0
    %3026 = vset.pattern.permute.xlu0 0
    %3027 = vperm.xlu0 %3026, %v3025
    %v3028 = vpop.permute.xlu0 %3027
    %vm3029 = vcmp.eq.s32.totalorder %v3028, 1
    %v3030 = vsel %vm3029, %v3023, %v2769
    %v3031 = vpack.c.bf16 %v2872, %v2872
    %v3032 = vpack.c.bf16 %v3023, %v3023
    %3033 = vmatprep.subr.bf16.mxu0 %v1117
    %3034 = vmatpush1.bf16.msra.mxu0 %v1116
    %3035 = vmatprep.subr.bf16.mxu0 %v1123
    %3036 = vmatpush1.bf16.msra.mxu0 %v1122
    %3037 = vmatprep.subr.bf16.mxu0 %v1129
    %3038 = vmatpush1.bf16.msra.mxu0 %v1128
    %3039 = vmatprep.subr.bf16.mxu0 %v1135
    %3040 = vmatpush1.bf16.msra.mxu0 %v1134
    %3041 = vmatprep.subr.bf16.mxu0 %v1141
    %3042 = vmatpush1.bf16.msra.mxu0 %v1140
    %3043 = vmatprep.subr.bf16.mxu0 %v1147
    %3044 = vmatpush1.bf16.msra.mxu0 %v1146
    %3045 = vmatprep.subr.bf16.mxu0 %v1153
    %3046 = vmatpush1.bf16.msra.mxu0 %v1152
    %3047 = vmatprep.subr.bf16.mxu0 %v1159
    %3048 = vmatpush1.bf16.msra.mxu0 %v1158
    %3049 = vmatprep.subr.bf16.mxu0 %v1165
    %3050 = vmatpush1.bf16.msra.mxu0 %v1164
    %3051 = vmatprep.subr.bf16.mxu0 %v1171
    %3052 = vmatpush1.bf16.msra.mxu0 %v1170
    %3053 = vmatprep.subr.bf16.mxu0 %v1177
    %3054 = vmatpush1.bf16.msra.mxu0 %v1176
    %3055 = vmatprep.subr.bf16.mxu0 %v1183
    %3056 = vmatpush1.bf16.msra.mxu0 %v1182
    %3057 = vmatprep.subr.bf16.mxu0 %v1189
    %3058 = vmatpush1.bf16.msra.mxu0 %v1188
    %3059 = vmatprep.subr.bf16.mxu0 %v1195
    %3060 = vmatpush1.bf16.msra.mxu0 %v1194
    %3061 = vmatprep.subr.bf16.mxu0 %v1201
    %3062 = vmatpush1.bf16.msra.mxu0 %v1200
    %3063 = vmatprep.subr.bf16.mxu0 %v1207
    %3064 = vmatpush1.bf16.msra.mxu0 %v1206
    %3065 = vmatprep.mubr.bf16.mxu0 %v3032
    %3066 = vmatmul.mubr.bf16.gmra.mrb[0].mxu0 %v3031
    %v3067 = vpop.f32.mrb[0].mxu0
    %v3068 = vadd.f32 0.0, %v3067
    %v3069 = vpop.f32.mrb[0].mxu0
    %v3070 = vadd.f32 0.0, %v3069
    %v3071 = vpop.f32.mrb[0].mxu0
    %v3072 = vpop.f32.mrb[0].mxu0
    %3073 = vdwg.mxu0
    %3074 = vmatprep.subr.bf16.mxu0 %v1119
    %3075 = vmatpush1.bf16.msra.mxu0 %v1118
    %3076 = vmatprep.subr.bf16.mxu0 %v1125
    %3077 = vmatpush1.bf16.msra.mxu0 %v1124
    %3078 = vmatprep.subr.bf16.mxu0 %v1131
    %3079 = vmatpush1.bf16.msra.mxu0 %v1130
    %3080 = vmatprep.subr.bf16.mxu0 %v1137
    %3081 = vmatpush1.bf16.msra.mxu0 %v1136
    %3082 = vmatprep.subr.bf16.mxu0 %v1143
    %3083 = vmatpush1.bf16.msra.mxu0 %v1142
    %3084 = vmatprep.subr.bf16.mxu0 %v1149
    %3085 = vmatpush1.bf16.msra.mxu0 %v1148
    %3086 = vmatprep.subr.bf16.mxu0 %v1155
    %3087 = vmatpush1.bf16.msra.mxu0 %v1154
    %3088 = vmatprep.subr.bf16.mxu0 %v1161
    %3089 = vmatpush1.bf16.msra.mxu0 %v1160
    %3090 = vmatprep.subr.bf16.mxu0 %v1167
    %3091 = vmatpush1.bf16.msra.mxu0 %v1166
    %3092 = vmatprep.subr.bf16.mxu0 %v1173
    %3093 = vmatpush1.bf16.msra.mxu0 %v1172
    %3094 = vmatprep.subr.bf16.mxu0 %v1179
    %3095 = vmatpush1.bf16.msra.mxu0 %v1178
    %3096 = vmatprep.subr.bf16.mxu0 %v1185
    %3097 = vmatpush1.bf16.msra.mxu0 %v1184
    %3098 = vmatprep.subr.bf16.mxu0 %v1191
    %3099 = vmatpush1.bf16.msra.mxu0 %v1190
    %3100 = vmatprep.subr.bf16.mxu0 %v1197
    %3101 = vmatpush1.bf16.msra.mxu0 %v1196
    %3102 = vmatprep.subr.bf16.mxu0 %v1203
    %3103 = vmatpush1.bf16.msra.mxu0 %v1202
    %3104 = vmatprep.subr.bf16.mxu0 %v1209
    %3105 = vmatpush1.bf16.msra.mxu0 %v1208
    %3106 = vmatprep.mubr.bf16.mxu0 %v3032
    %3107 = vmatmul.mubr.bf16.gmra.mrb[0].mxu0 %v3031
    %v3108 = vpop.f32.mrb[0].mxu0
    %v3109 = vadd.f32 0.0, %v3108
    %v3110 = vpop.f32.mrb[0].mxu0
    %v3111 = vadd.f32 0.0, %v3110
    %v3112 = vpop.f32.mrb[0].mxu0
    %v3113 = vpop.f32.mrb[0].mxu0
    %3114 = vdwg.mxu0
    %3115 = vmatprep.subr.bf16.mxu0 %v1121
    %3116 = vmatpush1.bf16.msra.mxu0 %v1120
    %3117 = vmatprep.subr.bf16.mxu0 %v1127
    %3118 = vmatpush1.bf16.msra.mxu0 %v1126
    %3119 = vmatprep.subr.bf16.mxu0 %v1133
    %3120 = vmatpush1.bf16.msra.mxu0 %v1132
    %3121 = vmatprep.subr.bf16.mxu0 %v1139
    %3122 = vmatpush1.bf16.msra.mxu0 %v1138
    %3123 = vmatprep.subr.bf16.mxu0 %v1145
    %3124 = vmatpush1.bf16.msra.mxu0 %v1144
    %3125 = vmatprep.subr.bf16.mxu0 %v1151
    %3126 = vmatpush1.bf16.msra.mxu0 %v1150
    %3127 = vmatprep.subr.bf16.mxu0 %v1157
    %3128 = vmatpush1.bf16.msra.mxu0 %v1156
    %3129 = vmatprep.subr.bf16.mxu0 %v1163
    %3130 = vmatpush1.bf16.msra.mxu0 %v1162
    %3131 = vmatprep.subr.bf16.mxu0 %v1169
    %3132 = vmatpush1.bf16.msra.mxu0 %v1168
    %3133 = vmatprep.subr.bf16.mxu0 %v1175
    %3134 = vmatpush1.bf16.msra.mxu0 %v1174
    %3135 = vmatprep.subr.bf16.mxu0 %v1181
    %3136 = vmatpush1.bf16.msra.mxu0 %v1180
    %3137 = vmatprep.subr.bf16.mxu0 %v1187
    %3138 = vmatpush1.bf16.msra.mxu0 %v1186
    %3139 = vmatprep.subr.bf16.mxu0 %v1193
    %3140 = vmatpush1.bf16.msra.mxu0 %v1192
    %3141 = vmatprep.subr.bf16.mxu0 %v1199
    %3142 = vmatpush1.bf16.msra.mxu0 %v1198
    %3143 = vmatprep.subr.bf16.mxu0 %v1205
    %3144 = vmatpush1.bf16.msra.mxu0 %v1204
    %3145 = vmatprep.subr.bf16.mxu0 %v1211
    %3146 = vmatpush1.bf16.msra.mxu0 %v1210
    %3147 = vmatprep.mubr.bf16.mxu0 %v3032
    %3148 = vmatmul.mubr.bf16.gmra.mrb[0].mxu0 %v3031
    %v3149 = vpop.f32.mrb[0].mxu0
    %v3150 = vadd.f32 0.0, %v3149
    %v3151 = vpop.f32.mrb[0].mxu0
    %v3152 = vadd.f32 0.0, %v3151
    %v3153 = vpop.f32.mrb[0].mxu0
    %v3154 = vpop.f32.mrb[0].mxu0
    %3155 = vdwg.mxu0
    %v3156 = vadd.f32 %v3068, %v229
    %v3157 = vadd.f32 %v3070, %v233
    %v3158 = vadd.f32 %v3109, %v237
    %v3159 = vadd.f32 %v3111, %v247
    %v3160 = vadd.f32 %v3150, %v251
    %v3161 = vadd.f32 %v3152, %v255
    %v3162 = vadd.f32 %v3156, %v3159
    %v3163 = vxor.u32 %v3162, 2147483648
    %v3164 = vmul.f32 %v3163, 1.442695
    %v3165 = vpow.pop %v3164
    %v3166 = vadd.f32 %v3165, 1.0
    %v3167 = vrcp.pop %v3166
    %v3168 = vmul.f32 1.0, %v3167
    %v3169 = vadd.f32 %v3157, %v3160
    %v3170 = vxor.u32 %v3169, 2147483648
    %v3171 = vmul.f32 %v3170, 1.442695
    %v3172 = vpow.pop %v3171
    %v3173 = vadd.f32 %v3172, 1.0
    %v3174 = vrcp.pop %v3173
    %v3175 = vmul.f32 1.0, %v3174
    %v3176 = vmul.f32 %v3168, %v3161
    %v3177 = vadd.f32 %v3158, %v3176
    %v3178 = vtanh.pop %v3177
    %v3179 = vsub.f32 1.0, %v3175
    %v3180 = vmul.f32 %v3179, %v3178
    %v3181 = vmul.f32 %v3175, %v3023
    %v3182 = vadd.f32 %v3180, %v3181
    %vm3183 = vcmp.eq.s32.totalorder %v75, 7
    %v3184 = vsel %vm3183, 1, 0
    %3185 = vset.pattern.permute.xlu0 0
    %3186 = vperm.xlu0 %3185, %v3184
    %v3187 = vpop.permute.xlu0 %3186
    %vm3188 = vcmp.eq.s32.totalorder %v3187, 1
    %v3189 = vsel %vm3188, %v3182, %v3030
    %v3190 = vpack.c.bf16 %v3189, %v3189
    %v3191 = vld [vmem:[%s6] sm:$0xf]
    %v3192 = vld [vmem:[%s6 + $0x4] sm:$0xf]
    %v3193 = vld [vmem:[%s6 + $0x8] sm:$0xf]
    %v3194 = vld [vmem:[%s6 + $0xc] sm:$0xf]
    %v3195 = vld [vmem:[%s6 + $0x10] sm:$0xf]
    %v3196 = vld [vmem:[%s6 + $0x14] sm:$0xf]
    %v3197 = vld [vmem:[%s6 + $0x18] sm:$0xf]
    %v3198 = vld [vmem:[%s6 + $0x1c] sm:$0xf]
    %v3199 = vld [vmem:[%s6 + $0x20] sm:$0xf]
    %v3200 = vld [vmem:[%s6 + $0x24] sm:$0xf]
    %v3201 = vld [vmem:[%s6 + $0x28] sm:$0xf]
    %v3202 = vld [vmem:[%s6 + $0x2c] sm:$0xf]
    %v3203 = vld [vmem:[%s6 + $0x30] sm:$0xf]
    %v3204 = vld [vmem:[%s6 + $0x34] sm:$0xf]
    %v3205 = vld [vmem:[%s6 + $0x38] sm:$0xf]
    %v3206 = vld [vmem:[%s6 + $0x3c] sm:$0xf]
    %v3207 = vld [vmem:[%s7] sm:$0x1]
    %v3209 = vlaneseq
    %v3210 = vshrl.u32 %v3209, 7
    %v3211 = vsub.s32 0, %v3210
    %v3212 = vrot.slane %v3207, %v3211
    %v3230 = vunpack.c.l.b16 %v3191
    %v3231 = vunpack.c.l.b16 %v3192
    %v3232 = vunpack.c.l.b16 %v3193
    %v3233 = vunpack.c.l.b16 %v3194
    %v3234 = vunpack.c.l.b16 %v3195
    %v3235 = vunpack.c.l.b16 %v3196
    %v3236 = vunpack.c.l.b16 %v3197
    %v3237 = vunpack.c.l.b16 %v3198
    %v3238 = vunpack.c.l.b16 %v3199
    %v3239 = vunpack.c.l.b16 %v3200
    %v3240 = vunpack.c.l.b16 %v3201
    %v3241 = vunpack.c.l.b16 %v3202
    %v3242 = vunpack.c.l.b16 %v3203
    %v3243 = vunpack.c.l.b16 %v3204
    %v3244 = vunpack.c.l.b16 %v3205
    %v3245 = vunpack.c.l.b16 %v3206
    %v3246 = vpack.c.b16 %v3231, %v3230
    %v3247 = vpack.c.b16 %v3233, %v3232
    %v3248 = vpack.c.b16 %v3235, %v3234
    %v3249 = vpack.c.b16 %v3237, %v3236
    %v3250 = vpack.c.b16 %v3239, %v3238
    %v3251 = vpack.c.b16 %v3241, %v3240
    %v3252 = vpack.c.b16 %v3243, %v3242
    %v3253 = vpack.c.b16 %v3245, %v3244
    %3262 = vmatprep.subr.bf16.mxu0 0
    %3263 = vmatpush1.bf16.msra.mxu0 %v3246
    %3264 = vmatprep.subr.bf16.mxu0 0
    %3265 = vmatpush1.bf16.msra.mxu0 %v3247
    %3266 = vmatprep.subr.bf16.mxu0 0
    %3267 = vmatpush1.bf16.msra.mxu0 %v3248
    %3268 = vmatprep.subr.bf16.mxu0 0
    %3269 = vmatpush1.bf16.msra.mxu0 %v3249
    %3270 = vmatprep.subr.bf16.mxu0 0
    %3271 = vmatpush1.bf16.msra.mxu0 %v3250
    %3272 = vmatprep.subr.bf16.mxu0 0
    %3273 = vmatpush1.bf16.msra.mxu0 %v3251
    %3274 = vmatprep.subr.bf16.mxu0 0
    %3275 = vmatpush1.bf16.msra.mxu0 %v3252
    %3276 = vmatprep.subr.bf16.mxu0 0
    %3277 = vmatpush1.bf16.msra.mxu0 %v3253
    %3278 = vmatprep.subr.bf16.mxu0 0
    %3279 = vmatpush1.bf16.msra.mxu0 0
    %3280 = vmatprep.subr.bf16.mxu0 0
    %3281 = vmatpush1.bf16.msra.mxu0 0
    %3282 = vmatprep.subr.bf16.mxu0 0
    %3283 = vmatpush1.bf16.msra.mxu0 0
    %3284 = vmatprep.subr.bf16.mxu0 0
    %3285 = vmatpush1.bf16.msra.mxu0 0
    %3286 = vmatprep.subr.bf16.mxu0 0
    %3287 = vmatpush1.bf16.msra.mxu0 0
    %3288 = vmatprep.subr.bf16.mxu0 0
    %3289 = vmatpush1.bf16.msra.mxu0 0
    %3290 = vmatprep.subr.bf16.mxu0 0
    %3291 = vmatpush1.bf16.msra.mxu0 0
    %3292 = vmatprep.subr.bf16.mxu0 0
    %3293 = vmatpush1.bf16.msra.mxu0 0
    %3294 = vmatprep.mubr.bf16.mxu0 0
    %3295 = vmatmul.mubr.bf16.gmra.mrb[0].mxu0 %v3190
    %v3296 = vpop.f32.mrb[0].mxu0
    %v3297 = vadd.f32 %v3212, %v3296
    %v3298 = vpop.f32.mrb[0].mxu0
    %v3299 = vpop.f32.mrb[0].mxu0
    %v3300 = vpop.f32.mrb[0].mxu0
    %3301 = vdwg.mxu0
    %v3302 = vmax.f32 %v3297, 0.0
    %v3303 = vpack.c.bf16 %v3302, %v3302
    %v3304 = vld [vmem:[%s8] sm:$0xf]
    %v3305 = vld [vmem:[%s8 + $0x4] sm:$0xf]
    %v3306 = vld [vmem:[%s9] sm:$0x1]
    %v3308 = vlaneseq
    %v3309 = vshrl.u32 %v3308, 7
    %v3310 = vsub.s32 0, %v3309
    %v3311 = vrot.slane %v3306, %v3310
    %v3315 = vunpack.c.l.b16 %v3304
    %v3316 = vunpack.c.l.b16 %v3305
    %v3317 = vpack.c.b16 %v3316, %v3315
    %vm3319 = vcmask 130048
    %v3321 = vsel %vm3319, %v3303, 0
    %3323 = vmatprep.subr.bf16.mxu0 0
    %3324 = vmatpush1.bf16.msra.mxu0 %v3317
    %3325 = vmatprep.subr.bf16.mxu0 0
    %3326 = vmatpush1.bf16.msra.mxu0 0
    %3327 = vmatprep.subr.bf16.mxu0 0
    %3328 = vmatpush1.bf16.msra.mxu0 0
    %3329 = vmatprep.subr.bf16.mxu0 0
    %3330 = vmatpush1.bf16.msra.mxu0 0
    %3331 = vmatprep.subr.bf16.mxu0 0
    %3332 = vmatpush1.bf16.msra.mxu0 0
    %3333 = vmatprep.subr.bf16.mxu0 0
    %3334 = vmatpush1.bf16.msra.mxu0 0
    %3335 = vmatprep.subr.bf16.mxu0 0
    %3336 = vmatpush1.bf16.msra.mxu0 0
    %3337 = vmatprep.subr.bf16.mxu0 0
    %3338 = vmatpush1.bf16.msra.mxu0 0
    %3339 = vmatprep.subr.bf16.mxu0 0
    %3340 = vmatpush1.bf16.msra.mxu0 0
    %3341 = vmatprep.subr.bf16.mxu0 0
    %3342 = vmatpush1.bf16.msra.mxu0 0
    %3343 = vmatprep.subr.bf16.mxu0 0
    %3344 = vmatpush1.bf16.msra.mxu0 0
    %3345 = vmatprep.subr.bf16.mxu0 0
    %3346 = vmatpush1.bf16.msra.mxu0 0
    %3347 = vmatprep.subr.bf16.mxu0 0
    %3348 = vmatpush1.bf16.msra.mxu0 0
    %3349 = vmatprep.subr.bf16.mxu0 0
    %3350 = vmatpush1.bf16.msra.mxu0 0
    %3351 = vmatprep.subr.bf16.mxu0 0
    %3352 = vmatpush1.bf16.msra.mxu0 0
    %3353 = vmatprep.subr.bf16.mxu0 0
    %3354 = vmatpush1.bf16.msra.mxu0 0
    %3355 = vmatprep.mubr.bf16.mxu0 0
    %3356 = vmatmul.mubr.bf16.gmra.mrb[0].mxu0 %v3321
    %v3357 = vpop.f32.mrb[0].mxu0
    %v3358 = vadd.f32 %v3311, %v3357
    %v3359 = vpop.f32.mrb[0].mxu0
    %v3360 = vpop.f32.mrb[0].mxu0
    %v3361 = vpop.f32.mrb[0].mxu0
    %3362 = vdwg.mxu0
    %v3363 = vmax.f32 %v3358, 0.0
    %v3364 = vpack.c.bf16 %v3363, %v3363
    %v3365 = vld [vmem:[%s10] sm:$0xf]
    %v3366 = vld [vmem:[#allocation2] sm:$0x1]
    %v3368 = vlaneseq
    %v3369 = vshrl.u32 %v3368, 7
    %v3370 = vsub.s32 0, %v3369
    %v3371 = vrot.slane %v3366, %v3370
    %vm3373 = vcmask 64512
    %v3375 = vsel %vm3373, %v3364, 0
    %vm3377 = vcmask 1043456
    %v3379 = vsel %vm3377, %v3365, 0
    %3381 = vmatprep.subr.bf16.mxu0 0
    %3382 = vmatpush1.bf16.msra.mxu0 %v3379
    %3383 = vmatprep.subr.bf16.mxu0 0
    %3384 = vmatpush1.bf16.msra.mxu0 0
    %3385 = vmatprep.subr.bf16.mxu0 0
    %3386 = vmatpush1.bf16.msra.mxu0 0
    %3387 = vmatprep.subr.bf16.mxu0 0
    %3388 = vmatpush1.bf16.msra.mxu0 0
    %3389 = vmatprep.subr.bf16.mxu0 0
    %3390 = vmatpush1.bf16.msra.mxu0 0
    %3391 = vmatprep.subr.bf16.mxu0 0
    %3392 = vmatpush1.bf16.msra.mxu0 0
    %3393 = vmatprep.subr.bf16.mxu0 0
    %3394 = vmatpush1.bf16.msra.mxu0 0
    %3395 = vmatprep.subr.bf16.mxu0 0
    %3396 = vmatpush1.bf16.msra.mxu0 0
    %3397 = vmatprep.subr.bf16.mxu0 0
    %3398 = vmatpush1.bf16.msra.mxu0 0
    %3399 = vmatprep.subr.bf16.mxu0 0
    %3400 = vmatpush1.bf16.msra.mxu0 0
    %3401 = vmatprep.subr.bf16.mxu0 0
    %3402 = vmatpush1.bf16.msra.mxu0 0
    %3403 = vmatprep.subr.bf16.mxu0 0
    %3404 = vmatpush1.bf16.msra.mxu0 0
    %3405 = vmatprep.subr.bf16.mxu0 0
    %3406 = vmatpush1.bf16.msra.mxu0 0
    %3407 = vmatprep.subr.bf16.mxu0 0
    %3408 = vmatpush1.bf16.msra.mxu0 0
    %3409 = vmatprep.subr.bf16.mxu0 0
    %3410 = vmatpush1.bf16.msra.mxu0 0
    %3411 = vmatprep.subr.bf16.mxu0 0
    %3412 = vmatpush1.bf16.msra.mxu0 0
    %3413 = vmatprep.mubr.bf16.mxu0 0
    %3414 = vmatmul.mubr.bf16.gmra.mrb[0].mxu0 %v3375
    %v3415 = vpop.f32.mrb[0].mxu0
    %v3416 = vadd.f32 %v3371, %v3415
    %v3417 = vpop.f32.mrb[0].mxu0
    %v3418 = vpop.f32.mrb[0].mxu0
    %v3419 = vpop.f32.mrb[0].mxu0
    %3420 = vdwg.mxu0
    %vm3421 = vcmask 7168
    %3422 = vst.msk [vmem:[%s12] sm:$0xff] %vm3421, %v3416
    // Predicated region
    $region58: #{tpu_custom_call.1} parent=1 // pred_check
      _
    $region59: #{tpu_custom_call.1} parent=1 // pred_check_branch
      %3424 = sbr.rel (0) target = $region61
    $region60: #{tpu_custom_call.1} parent=1 // pred_region
      _
    $region61: #{tpu_custom_call.1} parent=1 // pred_fallthru
      _
    // Predicated region
    $region62: #{tpu_custom_call.1} parent=1 // pred_check
      _
    $region63: #{tpu_custom_call.1} parent=1 // pred_check_branch
      %3426 = sbr.rel (0) target = $region65
    $region64: #{tpu_custom_call.1} parent=1 // pred_region
      _
    $region65: #{tpu_custom_call.1} parent=1 // pred_fallthru
      _
    %3427 = vsyncpa [#allocation4], 1
    %3428 = vsyncpa [#allocation6], 1

</llo_original>
